<compile_context>
chip_gen: v7x
topology: tpu7x:2x2x1
jax: 0.10.0
libtpu: 0.0.40
codegen_flags: <defaults>
</compile_context>

<pallas_src>
import jax
import jax.numpy as jnp
from jax.experimental import pallas as pl
from jax.experimental.pallas import tpu as pltpu

FEAT_C = 4320  # channel count of pnasnet5large features feeding the fc layer


def _largest_divisor_le(n, cap):
    best = 1
    for d in range(1, min(n, cap) + 1):
        if n % d == 0:
            best = d
    return best


def _channel_tile(C, min_steps=4):
    """Largest multiple-of-8 divisor of C giving at least `min_steps` reduction steps."""
    best = None
    for ct in range(8, C // min_steps + 1, 8):
        if C % ct == 0:
            best = ct
    return best if best is not None else C


def pnasnet_head(x_nchw, fc_weight, fc_bias, *, batch_tile_cap=8):
    """Fused global-avg-pool + fc.

    x_nchw:    (B, 4320, H, W) backbone features (f32 or bf16).
    fc_weight: (num_class, 4320)  (PyTorch nn.Linear layout)
    fc_bias:   (num_class,)
    returns    (B, num_class) f32 logits.
    """
    B, C, H, W = x_nchw.shape
    num_class = fc_weight.shape[0]
    assert C == fc_weight.shape[1]
    HW = H * W

    bt = _largest_divisor_le(B, batch_tile_cap)   # exact grid, no batch padding copy
    G = B // bt

    ct = _channel_tile(C)                         # channel-reduction block (1080 for C=4320)
    K = C // ct

    # Free reshape only (no transpose, no extra HBM traffic): NCHW -> (G, Bt, C, HW).
    x = x_nchw.reshape(G, bt, C, HW)

    # Pad num_class up to a lane-dense multiple of 128 (tiny one-off cost; unmasked stores).
    n_pad = ((num_class + 127) // 128) * 128
    w_t = jnp.zeros((C, n_pad), fc_weight.dtype).at[:, :num_class].set(fc_weight.T)
    b2 = jnp.zeros((1, n_pad), jnp.float32).at[0, :num_class].set(
        fc_bias.astype(jnp.float32))

    inv_hw = 1.0 / float(HW)

    def head_kernel(x_ref, w_ref, b_ref, o_ref, acc_ref):
        # x_ref:   (bt, ct, HW)  channel block k of batch group g
        # w_ref:   (C, n_pad)    full fc weight, resident in VMEM (constant block index)
        # b_ref:   (1, n_pad)
        # o_ref:   (bt, n_pad)
        # acc_ref: (bt, n_pad) f32 scratch, persists across the K reduction steps
        k = pl.program_id(1)

        @pl.when(k == 0)
        def _():
            acc_ref[...] = jnp.zeros_like(acc_ref)

        # Global-sum pool over the spatial (lane) axis for this channel block.
        pooled = jnp.sum(x_ref[...].astype(jnp.float32), axis=-1)          # (bt, ct)

        # Partial matmul against the matching channel slice of the resident weight.
        start = pl.multiple_of(k * ct, ct)
        w_blk = w_ref[pl.ds(start, ct), :].astype(jnp.float32)             # (ct, n_pad)
        acc_ref[...] += jnp.dot(pooled, w_blk, preferred_element_type=jnp.float32)

        @pl.when(k == pl.num_programs(1) - 1)
        def _():
            # Fold the 1/HW pooling scale and the bias into the final step.
            o_ref[...] = (acc_ref[...] * inv_hw + b_ref[...]).astype(o_ref.dtype)

    out = pl.pallas_call(
        head_kernel,
        out_shape=jax.ShapeDtypeStruct((G, bt, n_pad), jnp.float32),
        grid_spec=pltpu.PrefetchScalarGridSpec(
            num_scalar_prefetch=0,
            grid=(G, K),                        # reduction (channel) axis innermost
            in_specs=[
                # leading grid dim squeezed (None); last two dims (ct, HW): ct%8==0, HW full
                pl.BlockSpec((None, bt, ct, HW), lambda g, k: (g, 0, k, 0)),
                # full weight, constant block index -> DMA'd once, stays resident in VMEM
                pl.BlockSpec((C, n_pad), lambda g, k: (0, 0)),
                pl.BlockSpec((1, n_pad), lambda g, k: (0, 0)),
            ],
            out_specs=pl.BlockSpec((None, bt, n_pad), lambda g, k: (g, 0, 0)),
            scratch_shapes=[pltpu.VMEM((bt, n_pad), jnp.float32)],
        ),
        compiler_params=pltpu.CompilerParams(
            dimension_semantics=("parallel", "arbitrary"),   # batch groups across 2 TCs
            vmem_limit_bytes=32 * 1024 * 1024,               # ~14 MB used at full scale
        ),
    )(x, w_t, b2)

    return out.reshape(B, n_pad)[:, :num_class]


def reference(x_nchw, fc_weight, fc_bias):
    pooled = jnp.mean(x_nchw.astype(jnp.float32), axis=(2, 3))   # AdaptiveAvgPool2d(1)+view
    return pooled @ fc_weight.T + fc_bias                        # (B, num_class)


if __name__ == "__main__":
    num_class = 10
    B, H, W = 2, 4, 4

    key = jax.random.PRNGKey(0)
    kx, kw, kb = jax.random.split(key, 3)

    # backbone feature map (stands in for self.pnas.features(x) output)
    x = jax.random.normal(kx, (B, FEAT_C, H, W), dtype=jnp.float32)

    # deterministic nn.Linear(4320, num_class) parameters
    bound = 1.0 / jnp.sqrt(FEAT_C)
    fc_weight = jax.random.uniform(kw, (num_class, FEAT_C), jnp.float32, -bound, bound)
    fc_bias = jax.random.uniform(kb, (num_class,), jnp.float32, -bound, bound)

    out = jax.block_until_ready(pnasnet_head(x, fc_weight, fc_bias))
    ref = reference(x, fc_weight, fc_bias)

    assert out.shape == (B, num_class), out.shape
    assert jnp.allclose(out, ref, atol=1e-4, rtol=1e-4), (
        float(jnp.max(jnp.abs(out - ref))))
    print("KERNEL_OK")
</pallas_src>

<mosaic_0001>
module attributes {stable_mosaic.version = 11 : i64} {
  func.func @head_kernel(%arg0: i32, %arg1: i32, %arg2: memref<1x2x1080x16xf32, #tpu.memory_space<vmem>>, %arg3: memref<4320x128xf32, #tpu.memory_space<vmem>>, %arg4: memref<1x128xf32, #tpu.memory_space<vmem>>, %arg5: memref<1x2x128xf32, #tpu.memory_space<vmem>>, %arg6: memref<2x128xf32, #tpu.memory_space<vmem>>) attributes {dimension_semantics = [#tpu.dimension_semantics<parallel>, #tpu.dimension_semantics<arbitrary>], iteration_bounds = array<i64: 1, 4>, scalar_prefetch = 0 : i64, scratch_operands = 1 : i64, tpu.core_type = #tpu.core_type<tc>, window_params = [{transform_indices = @transform_0, window_bounds = array<i64: 1, 2, 1080, 16>}, {pipeline_mode = #tpu.pipeline_mode<synchronous>, transform_indices = @transform_1, window_bounds = array<i64: 4320, 128>}, {pipeline_mode = #tpu.pipeline_mode<synchronous>, transform_indices = @transform_2, window_bounds = array<i64: 1, 128>}, {transform_indices = @transform_3, window_bounds = array<i64: 1, 2, 128>}]} {
    %c0_i32 = arith.constant 0 : i32
    %0 = arith.cmpi eq, %arg1, %c0_i32 : i32
    %1 = arith.extui %0 : i1 to i32
    %c0_i32_0 = arith.constant 0 : i32
    %2 = arith.cmpi ne, %1, %c0_i32_0 : i32
    scf.if %2 {
      %cst_11 = arith.constant 0.000000e+00 : f32
      %17 = vector.broadcast %cst_11 : f32 to vector<2x128xf32>
      %c0_12 = arith.constant 0 : index
      %c0_13 = arith.constant 0 : index
      %18 = vector.load %arg6[%c0_12, %c0_13] : memref<2x128xf32, #tpu.memory_space<vmem>>, vector<2x128xf32>
      tpu.vector_store %arg6[%c0_12, %c0_13], %17 {strides = array<i32>} : memref<2x128xf32, #tpu.memory_space<vmem>>, vector<2x128xf32>,
    } else {
    }
    %c0 = arith.constant 0 : index
    %c0_1 = arith.constant 0 : index
    %c0_2 = arith.constant 0 : index
    %c0_3 = arith.constant 0 : index
    %3 = vector.load %arg2[%c0, %c0_1, %c0_2, %c0_3] : memref<1x2x1080x16xf32, #tpu.memory_space<vmem>>, vector<1x2x1080x16xf32>
    %4 = vector.shape_cast %3 : vector<1x2x1080x16xf32> to vector<2x1080x16xf32>
    %cst = arith.constant dense<0.000000e+00> : vector<2x1080xf32>
    %5 = vector.multi_reduction <add>, %4, %cst [2] : vector<2x1080x16xf32> to vector<2x1080xf32>
    %c1080_i32 = arith.constant 1080 : i32
    %6 = arith.muli %arg1, %c1080_i32 : i32
    %7 = tpu.assume_multiple %6, 1080 : i32
    %8 = arith.index_cast %7 : i32 to index
    %c0_4 = arith.constant 0 : index
    %9 = vector.load %arg3[%8, %c0_4] : memref<4320x128xf32, #tpu.memory_space<vmem>>, vector<1080x128xf32>
    %c0_5 = arith.constant 0 : index
    %c0_6 = arith.constant 0 : index
    %10 = vector.load %arg6[%c0_5, %c0_6] : memref<2x128xf32, #tpu.memory_space<vmem>>, vector<2x128xf32>
    %cst_7 = arith.constant dense<0.000000e+00> : vector<2x128xf32>
    %11 = tpu.matmul %5, %9, %cst_7 {dimension_numbers = #tpu.dot_dimension_numbers<[1], [0], [0], [1], [0, 0, 1, 1], [], []>} : vector<2x1080xf32>, vector<1080x128xf32>, vector<2x128xf32> -> vector<2x128xf32>
    %12 = arith.addf %10, %11 : vector<2x128xf32>
    %c0_8 = arith.constant 0 : index
    %c0_9 = arith.constant 0 : index
    %13 = vector.load %arg6[%c0_8, %c0_9] : memref<2x128xf32, #tpu.memory_space<vmem>>, vector<2x128xf32>
    tpu.vector_store %arg6[%c0_8, %c0_9], %12 {strides = array<i32>} : memref<2x128xf32, #tpu.memory_space<vmem>>, vector<2x128xf32>,
    %c3_i32 = arith.constant 3 : i32
    %14 = arith.cmpi eq, %arg1, %c3_i32 : i32
    %15 = arith.extui %14 : i1 to i32
    %c0_i32_10 = arith.constant 0 : i32
    %16 = arith.cmpi ne, %15, %c0_i32_10 : i32
    scf.if %16 {
      %c0_11 = arith.constant 0 : index
      %c0_12 = arith.constant 0 : index
      %17 = vector.load %arg6[%c0_11, %c0_12] : memref<2x128xf32, #tpu.memory_space<vmem>>, vector<2x128xf32>
      %cst_13 = arith.constant 6.250000e-02 : f32
      %18 = vector.broadcast %cst_13 : f32 to vector<2x128xf32>
      %19 = arith.mulf %17, %18 : vector<2x128xf32>
      %c0_14 = arith.constant 0 : index
      %c0_15 = arith.constant 0 : index
      %20 = vector.load %arg4[%c0_14, %c0_15] : memref<1x128xf32, #tpu.memory_space<vmem>>, vector<1x128xf32>
      %21 = vector.broadcast %20 : vector<1x128xf32> to vector<2x128xf32>
      %22 = arith.addf %19, %21 : vector<2x128xf32>
      %c0_16 = arith.constant 0 : index
      %c0_17 = arith.constant 0 : index
      %c0_18 = arith.constant 0 : index
      %23 = vector.load %arg5[%c0_16, %c0_17, %c0_18] : memref<1x2x128xf32, #tpu.memory_space<vmem>>, vector<1x2x128xf32>
      %24 = vector.shape_cast %23 : vector<1x2x128xf32> to vector<2x128xf32>
      %25 = vector.shape_cast %22 : vector<2x128xf32> to vector<1x2x128xf32>
      tpu.vector_store %arg5[%c0_16, %c0_17, %c0_18], %25 {strides = array<i32>} : memref<1x2x128xf32, #tpu.memory_space<vmem>>, vector<1x2x128xf32>,
    } else {
    }
    return
  }
  func.func @transform_0(%arg0: i32, %arg1: i32) -> (i32, i32, i32, i32) {
    %c0_i32 = arith.constant 0 : i32
    %c0_i32_0 = arith.constant 0 : i32
    %c0_i32_1 = arith.constant 0 : i32
    return %arg0, %c0_i32, %arg1, %c0_i32_0 : i32, i32, i32, i32
  }
  func.func @transform_1(%arg0: i32, %arg1: i32) -> (i32, i32) {
    %c0_i32 = arith.constant 0 : i32
    %c0_i32_0 = arith.constant 0 : i32
    %c0_i32_1 = arith.constant 0 : i32
    return %c0_i32, %c0_i32_0 : i32, i32
  }
  func.func @transform_2(%arg0: i32, %arg1: i32) -> (i32, i32) {
    %c0_i32 = arith.constant 0 : i32
    %c0_i32_0 = arith.constant 0 : i32
    %c0_i32_1 = arith.constant 0 : i32
    return %c0_i32, %c0_i32_0 : i32, i32
  }
  func.func @transform_3(%arg0: i32, %arg1: i32) -> (i32, i32, i32) {
    %c0_i32 = arith.constant 0 : i32
    %c0_i32_0 = arith.constant 0 : i32
    %c0_i32_1 = arith.constant 0 : i32
    return %arg0, %c0_i32, %c0_i32_0 : i32, i32, i32
  }
}

</mosaic_0001>

<llo_original>
// kernel: tpu_custom_call.1
$region0: #{tpu_custom_call.1}
  #allocation0 [shape = 'u32[]', space=smem, size = 0x4, offset = 0x4, fixed_abs, tag = 'smem constant byte address 0x4 - core index']
  #allocation1 [shape = 'u32[144,128]{1,0:T(1,128)}', space=vmem, size = 0x12000, scoped, tag = 'internal scratch']
  #allocation2 [shape = 'f32[2,128]{1,0:T(2,128)}', space=vmem, size = 0x400, scoped, tag = 'scratch operand']
  %s0 = inlined_call_operand.vmem [shape: f32[1,2,4320,16], index: 0, kind: input, shape index: {}]
  %s1 = inlined_call_operand.vmem [shape: f32[4320,128], index: 1, kind: input, shape index: {}]
  %s2 = inlined_call_operand.vmem [shape: f32[1,128], index: 2, kind: input, shape index: {}]
  %s3 = inlined_call_operand.hbm [shape: f32[1,2,128], index: 3, kind: output, shape index: {}]
  %s4 = sld [smem:[#allocation0]]
  $region91: #{tpu_custom_call.1} parent=0
    _
  %s6 = ssub.s32 1, %s4
  %s7 = scalar_select 0, %s6, %s4
  $region1: #{tpu_custom_call.1} parent=0
    #allocation3 [shape = 'u8[2211840]{0}', space=vmem, size = 0x21c000, scoped, tag = 'input window, operand 0']
    #allocation4 [shape = 'u8[1024]{0}', space=vmem, size = 0x400, scoped, tag = 'output window, operand 0, single buffered']
    #allocation5 [shape = 's32[2]{0}', space=sflag, size = 0x8, scoped, tag = 'scoped memory for tpu_custom_call.1']
    %8 = vsyncpa [#allocation5], 0
    loop: start=0, step=1, limit=6
    $region2: #{tpu_custom_call.1} parent=1 // loop_pre_header
      _
    $region3: #{tpu_custom_call.1} parent=1 // loop_header
      %s10 = sphi 0, %s14
      %p11 = scmp.ge.s32.totalorder %s10, 6
      %s17 = sphi 0, %s29
      %s18 = sphi 0, %s25
      %s19 = sphi 0, %s17
      %s20 = sphi 0, %s18
      %s21 = sphi 0, %s19
      %s22 = sphi 0, %s20
      %s34 = sphi 0, %s36
      %s37 = sphi 0, %s34
      %s38 = sphi 0, %s37
      %s54 = sphi 0, %s38
      %s58 = sphi 0, %s58
      %s60 = sphi 0, %s58
      %s61 = sphi 0, %s60
      %s75 = sphi 0, %s61
      %s79 = sphi 0, %s79
      %s81 = sphi 0, %s79
      %s82 = sphi 0, %s81
      %s96 = sphi 0, %s82
      %s102 = sphi 0, %s104
      %s105 = sphi 0, %s102
      %s106 = sphi 0, %s105
      %s122 = sphi 0, %s106
    $region4: #{tpu_custom_call.1} parent=1 // loop_header_branch
      %13 = sbr.rel (%p11) target = $region8
    $region5: #{tpu_custom_call.1} parent=1 // loop_body
      %s15 = ssub.s32 %s10, 1
      %s16 = ssub.s32 %s10, 2
      %s23 = sadd.s32 1, %s18
      %p24 = scmp.ge.s32.totalorder %s23, 4
      %s25 = scalar_select %p24, 0, %s23
      %s26 = sadd.s32 1, %s17
      %s27 = scalar_select %p24, %s26, %s17
      %p28 = scmp.ge.s32.totalorder %s27, 1
      %s29 = scalar_select %p28, 0, %s27
      %s30 = ssub.s32 %s17, %s29
      %s31 = ssub.s32 %s18, %s25
      %s32 = sor.u32 %s30, %s31
      %p33 = scmp.eq.s32.totalorder %s32, 0
      %s35 = sadd.s32 %s34, 1
      %s36 = scalar_select %p33, %s34, %s35
      %p39 = pneg %p33
      %p40 = scmp.eq.s32.totalorder %s10, 3
      %p41 = por %p39, %p40
      %p42 = scmp.ne.s32.totalorder %s34, %s37
      %p43 = scmp.eq.s32.totalorder %s10, 0
      %p44 = por %p42, %p43
      %p45 = scmp.ne.s32.totalorder %s34, %s37
      %p46 = scmp.eq.s32.totalorder %s15, 3
      %p47 = por %p45, %p46
      %p48 = scmp.ne.s32.totalorder %s37, %s38
      %p49 = scmp.eq.s32.totalorder %s15, 0
      %p50 = por %p48, %p49
      %p51 = scmp.ne.s32.totalorder %s37, %s38
      %p52 = scmp.eq.s32.totalorder %s16, 3
      %p53 = por %p51, %p52
      %p55 = scmp.ne.s32.totalorder %s38, %s54
      %p56 = scmp.eq.s32.totalorder %s16, 0
      %p57 = por %p55, %p56
      %s59 = sadd.s32 %s58, 1
      %p62 = scmp.eq.s32.totalorder %s10, 3
      %p63 = scmp.ne.s32.totalorder %s58, %s60
      %p64 = scmp.eq.s32.totalorder %s10, 0
      %p65 = por %p63, %p64
      %p66 = scmp.ne.s32.totalorder %s58, %s60
      %p67 = scmp.eq.s32.totalorder %s15, 3
      %p68 = por %p66, %p67
      %p69 = scmp.ne.s32.totalorder %s60, %s61
      %p70 = scmp.eq.s32.totalorder %s15, 0
      %p71 = por %p69, %p70
      %p72 = scmp.ne.s32.totalorder %s60, %s61
      %p73 = scmp.eq.s32.totalorder %s16, 3
      %p74 = por %p72, %p73
      %p76 = scmp.ne.s32.totalorder %s61, %s75
      %p77 = scmp.eq.s32.totalorder %s16, 0
      %p78 = por %p76, %p77
      %s80 = sadd.s32 %s79, 1
      %p83 = scmp.eq.s32.totalorder %s10, 3
      %p84 = scmp.ne.s32.totalorder %s79, %s81
      %p85 = scmp.eq.s32.totalorder %s10, 0
      %p86 = por %p84, %p85
      %p87 = scmp.ne.s32.totalorder %s79, %s81
      %p88 = scmp.eq.s32.totalorder %s15, 3
      %p89 = por %p87, %p88
      %p90 = scmp.ne.s32.totalorder %s81, %s82
      %p91 = scmp.eq.s32.totalorder %s15, 0
      %p92 = por %p90, %p91
      %p93 = scmp.ne.s32.totalorder %s81, %s82
      %p94 = scmp.eq.s32.totalorder %s16, 3
      %p95 = por %p93, %p94
      %p97 = scmp.ne.s32.totalorder %s82, %s96
      %p98 = scmp.eq.s32.totalorder %s16, 0
      %p99 = por %p97, %p98
      %s100 = ssub.s32 %s17, %s29
      %p101 = scmp.eq.s32.totalorder %s100, 0
      %s103 = sadd.s32 %s102, 1
      %s104 = scalar_select %p101, %s102, %s103
      %p107 = pneg %p101
      %p108 = scmp.eq.s32.totalorder %s10, 3
      %p109 = por %p107, %p108
      %p110 = scmp.ne.s32.totalorder %s102, %s105
      %p111 = scmp.eq.s32.totalorder %s10, 0
      %p112 = por %p110, %p111
      %p113 = scmp.ne.s32.totalorder %s102, %s105
      %p114 = scmp.eq.s32.totalorder %s15, 3
      %p115 = por %p113, %p114
      %p116 = scmp.ne.s32.totalorder %s105, %s106
      %p117 = scmp.eq.s32.totalorder %s15, 0
      %p118 = por %p116, %p117
      %p119 = scmp.ne.s32.totalorder %s105, %s106
      %p120 = scmp.eq.s32.totalorder %s16, 3
      %p121 = por %p119, %p120
      %p123 = scmp.ne.s32.totalorder %s106, %s122
      %p124 = scmp.eq.s32.totalorder %s16, 0
      %p125 = por %p123, %p124
      %p126 = scmp.le.s32.totalorder 1, %s10
      %p127 = scmp.lt.s32.totalorder %s10, 5
      %p128 = pnand %p126, %p127
      %p129 = pneg %p128
      // Predicated region
      $region9: #{tpu_custom_call.1} parent=5 // pred_check
        _
      $region10: #{tpu_custom_call.1} parent=5 // pred_check_branch
        %131 = sbr.rel (%p128) target = $region12
      $region11: #{tpu_custom_call.1} parent=5 // pred_region
        %s132 = ssub.s32 %s10, 1
        // Predicated region
        $region13: #{tpu_custom_call.1} parent=11 // pred_check
          %p133 = pneg %p71
        $region14: #{tpu_custom_call.1} parent=11 // pred_check_branch
          %135 = sbr.rel (%p133) target = $region16
        $region15: #{tpu_custom_call.1} parent=11 // pred_region
          _
        $region16: #{tpu_custom_call.1} parent=11 // pred_fallthru
          _
        // Predicated region
        $region17: #{tpu_custom_call.1} parent=11 // pred_check
          %p136 = pneg %p92
        $region18: #{tpu_custom_call.1} parent=11 // pred_check_branch
          %138 = sbr.rel (%p136) target = $region20
        $region19: #{tpu_custom_call.1} parent=11 // pred_region
          _
        $region20: #{tpu_custom_call.1} parent=11 // pred_fallthru
          _
      $region12: #{tpu_custom_call.1} parent=5 // pred_fallthru
        _
      %p139 = scmp.lt.s32.totalorder %s10, 4
      // Predicated region
      $region21: #{tpu_custom_call.1} parent=5 // pred_check
        %p140 = pneg %p139
      $region22: #{tpu_custom_call.1} parent=5 // pred_check_branch
        %142 = sbr.rel (%p140) target = $region24
      $region23: #{tpu_custom_call.1} parent=5 // pred_region
        // Predicated region
        $region25: #{tpu_custom_call.1} parent=23 // pred_check
          %p143 = pneg %p44
        $region26: #{tpu_custom_call.1} parent=23 // pred_check_branch
          %145 = sbr.rel (%p143) target = $region28
        $region27: #{tpu_custom_call.1} parent=23 // pred_region
          %s146 = sand.u32 %s34, 1
          %s147 = sand.u32 %s34, 1
          %s148 = smul.addr %s147, 2160
          %s149 = scalar_lea.vmem [#allocation3], %s148
          %s150 = smul.u32 135, %s18
          %s151 = smul.addr %s17, 1080
          %s152 = sadd.s32 %s150, %s151
          %s153 = smul.addr %s152, 8
          %s154 = scalar_lea.vmem %s0, %s153
          // Predicated region
          $region29: #{tpu_custom_call.1} parent=27 // pred_check
            _
          $region30: #{tpu_custom_call.1} parent=27 // pred_check_branch
            %156 = sbr.rel (0) target = $region32
          $region31: #{tpu_custom_call.1} parent=27 // pred_region
            // Predicated region
            $region33: #{tpu_custom_call.1} parent=31 // pred_check
              _
            $region34: #{tpu_custom_call.1} parent=31 // pred_check_branch
              %158 = sbr.rel (0) target = $region36
            $region35: #{tpu_custom_call.1} parent=31 // pred_region
              // Predicated region
              $region48: #{tpu_custom_call.1} parent=35 // pred_check
                _
              $region49: #{tpu_custom_call.1} parent=35 // pred_check_branch
                %711 = sbr.rel (0) target = $region51
              $region50: #{tpu_custom_call.1} parent=35 // pred_region
                loop: start=0, step=1, limit=1
                $region52: #{tpu_custom_call.1} parent=50 // loop_pre_header
                  _
                $region53: #{tpu_custom_call.1} parent=50 // loop_header
                  %s713 = sphi 0, %s717
                  %p714 = scmp.ge.s32.totalorder %s713, 1
                  %s718 = sphi %s154, %s154
                  %s719 = sphi %s149, %s149
                $region54: #{tpu_custom_call.1} parent=50 // loop_header_branch
                  %716 = sbr.rel (%p714) target = $region58
                $region55: #{tpu_custom_call.1} parent=50 // loop_body
                  %v720 = vld [vmem:[%s718] sm:$0xff]
                  %721 = vst [vmem:[%s719] sm:$0xff] %v720
                  %v722 = vld [vmem:[%s718 + $0x8] sm:$0xff]
                  %723 = vst [vmem:[%s719 + $0x8] sm:$0xff] %v722
                  %v724 = vld [vmem:[%s718 + $0x10] sm:$0xff]
                  %725 = vst [vmem:[%s719 + $0x10] sm:$0xff] %v724
                  %v726 = vld [vmem:[%s718 + $0x18] sm:$0xff]
                  %727 = vst [vmem:[%s719 + $0x18] sm:$0xff] %v726
                  %v728 = vld [vmem:[%s718 + $0x20] sm:$0xff]
                  %729 = vst [vmem:[%s719 + $0x20] sm:$0xff] %v728
                  %v730 = vld [vmem:[%s718 + $0x28] sm:$0xff]
                  %731 = vst [vmem:[%s719 + $0x28] sm:$0xff] %v730
                  %v732 = vld [vmem:[%s718 + $0x30] sm:$0xff]
                  %733 = vst [vmem:[%s719 + $0x30] sm:$0xff] %v732
                  %v734 = vld [vmem:[%s718 + $0x38] sm:$0xff]
                  %735 = vst [vmem:[%s719 + $0x38] sm:$0xff] %v734
                  %v736 = vld [vmem:[%s718 + $0x40] sm:$0xff]
                  %737 = vst [vmem:[%s719 + $0x40] sm:$0xff] %v736
                  %v738 = vld [vmem:[%s718 + $0x48] sm:$0xff]
                  %739 = vst [vmem:[%s719 + $0x48] sm:$0xff] %v738
                  %v740 = vld [vmem:[%s718 + $0x50] sm:$0xff]
                  %741 = vst [vmem:[%s719 + $0x50] sm:$0xff] %v740
                  %v742 = vld [vmem:[%s718 + $0x58] sm:$0xff]
                  %743 = vst [vmem:[%s719 + $0x58] sm:$0xff] %v742
                  %v744 = vld [vmem:[%s718 + $0x60] sm:$0xff]
                  %745 = vst [vmem:[%s719 + $0x60] sm:$0xff] %v744
                  %v746 = vld [vmem:[%s718 + $0x68] sm:$0xff]
                  %747 = vst [vmem:[%s719 + $0x68] sm:$0xff] %v746
                  %v748 = vld [vmem:[%s718 + $0x70] sm:$0xff]
                  %749 = vst [vmem:[%s719 + $0x70] sm:$0xff] %v748
                  %v750 = vld [vmem:[%s718 + $0x78] sm:$0xff]
                  %751 = vst [vmem:[%s719 + $0x78] sm:$0xff] %v750
                  %v752 = vld [vmem:[%s718 + $0x80] sm:$0xff]
                  %753 = vst [vmem:[%s719 + $0x80] sm:$0xff] %v752
                  %v754 = vld [vmem:[%s718 + $0x88] sm:$0xff]
                  %755 = vst [vmem:[%s719 + $0x88] sm:$0xff] %v754
                  %v756 = vld [vmem:[%s718 + $0x90] sm:$0xff]
                  %757 = vst [vmem:[%s719 + $0x90] sm:$0xff] %v756
                  %v758 = vld [vmem:[%s718 + $0x98] sm:$0xff]
                  %759 = vst [vmem:[%s719 + $0x98] sm:$0xff] %v758
                  %v760 = vld [vmem:[%s718 + $0xa0] sm:$0xff]
                  %761 = vst [vmem:[%s719 + $0xa0] sm:$0xff] %v760
                  %v762 = vld [vmem:[%s718 + $0xa8] sm:$0xff]
                  %763 = vst [vmem:[%s719 + $0xa8] sm:$0xff] %v762
                  %v764 = vld [vmem:[%s718 + $0xb0] sm:$0xff]
                  %765 = vst [vmem:[%s719 + $0xb0] sm:$0xff] %v764
                  %v766 = vld [vmem:[%s718 + $0xb8] sm:$0xff]
                  %767 = vst [vmem:[%s719 + $0xb8] sm:$0xff] %v766
                  %v768 = vld [vmem:[%s718 + $0xc0] sm:$0xff]
                  %769 = vst [vmem:[%s719 + $0xc0] sm:$0xff] %v768
                  %v770 = vld [vmem:[%s718 + $0xc8] sm:$0xff]
                  %771 = vst [vmem:[%s719 + $0xc8] sm:$0xff] %v770
                  %v772 = vld [vmem:[%s718 + $0xd0] sm:$0xff]
                  %773 = vst [vmem:[%s719 + $0xd0] sm:$0xff] %v772
                  %v774 = vld [vmem:[%s718 + $0xd8] sm:$0xff]
                  %775 = vst [vmem:[%s719 + $0xd8] sm:$0xff] %v774
                  %v776 = vld [vmem:[%s718 + $0xe0] sm:$0xff]
                  %777 = vst [vmem:[%s719 + $0xe0] sm:$0xff] %v776
                  %v778 = vld [vmem:[%s718 + $0xe8] sm:$0xff]
                  %779 = vst [vmem:[%s719 + $0xe8] sm:$0xff] %v778
                  %v780 = vld [vmem:[%s718 + $0xf0] sm:$0xff]
                  %781 = vst [vmem:[%s719 + $0xf0] sm:$0xff] %v780
                  %v782 = vld [vmem:[%s718 + $0xf8] sm:$0xff]
                  %783 = vst [vmem:[%s719 + $0xf8] sm:$0xff] %v782
                  %v784 = vld [vmem:[%s718 + $0x100] sm:$0xff]
                  %785 = vst [vmem:[%s719 + $0x100] sm:$0xff] %v784
                  %v786 = vld [vmem:[%s718 + $0x108] sm:$0xff]
                  %787 = vst [vmem:[%s719 + $0x108] sm:$0xff] %v786
                  %v788 = vld [vmem:[%s718 + $0x110] sm:$0xff]
                  %789 = vst [vmem:[%s719 + $0x110] sm:$0xff] %v788
                  %v790 = vld [vmem:[%s718 + $0x118] sm:$0xff]
                  %791 = vst [vmem:[%s719 + $0x118] sm:$0xff] %v790
                  %v792 = vld [vmem:[%s718 + $0x120] sm:$0xff]
                  %793 = vst [vmem:[%s719 + $0x120] sm:$0xff] %v792
                  %v794 = vld [vmem:[%s718 + $0x128] sm:$0xff]
                  %795 = vst [vmem:[%s719 + $0x128] sm:$0xff] %v794
                  %v796 = vld [vmem:[%s718 + $0x130] sm:$0xff]
                  %797 = vst [vmem:[%s719 + $0x130] sm:$0xff] %v796
                  %v798 = vld [vmem:[%s718 + $0x138] sm:$0xff]
                  %799 = vst [vmem:[%s719 + $0x138] sm:$0xff] %v798
                  %v800 = vld [vmem:[%s718 + $0x140] sm:$0xff]
                  %801 = vst [vmem:[%s719 + $0x140] sm:$0xff] %v800
                  %v802 = vld [vmem:[%s718 + $0x148] sm:$0xff]
                  %803 = vst [vmem:[%s719 + $0x148] sm:$0xff] %v802
                  %v804 = vld [vmem:[%s718 + $0x150] sm:$0xff]
                  %805 = vst [vmem:[%s719 + $0x150] sm:$0xff] %v804
                  %v806 = vld [vmem:[%s718 + $0x158] sm:$0xff]
                  %807 = vst [vmem:[%s719 + $0x158] sm:$0xff] %v806
                  %v808 = vld [vmem:[%s718 + $0x160] sm:$0xff]
                  %809 = vst [vmem:[%s719 + $0x160] sm:$0xff] %v808
                  %v810 = vld [vmem:[%s718 + $0x168] sm:$0xff]
                  %811 = vst [vmem:[%s719 + $0x168] sm:$0xff] %v810
                  %v812 = vld [vmem:[%s718 + $0x170] sm:$0xff]
                  %813 = vst [vmem:[%s719 + $0x170] sm:$0xff] %v812
                  %v814 = vld [vmem:[%s718 + $0x178] sm:$0xff]
                  %815 = vst [vmem:[%s719 + $0x178] sm:$0xff] %v814
                  %v816 = vld [vmem:[%s718 + $0x180] sm:$0xff]
                  %817 = vst [vmem:[%s719 + $0x180] sm:$0xff] %v816
                  %v818 = vld [vmem:[%s718 + $0x188] sm:$0xff]
                  %819 = vst [vmem:[%s719 + $0x188] sm:$0xff] %v818
                  %v820 = vld [vmem:[%s718 + $0x190] sm:$0xff]
                  %821 = vst [vmem:[%s719 + $0x190] sm:$0xff] %v820
                  %v822 = vld [vmem:[%s718 + $0x198] sm:$0xff]
                  %823 = vst [vmem:[%s719 + $0x198] sm:$0xff] %v822
                  %v824 = vld [vmem:[%s718 + $0x1a0] sm:$0xff]
                  %825 = vst [vmem:[%s719 + $0x1a0] sm:$0xff] %v824
                  %v826 = vld [vmem:[%s718 + $0x1a8] sm:$0xff]
                  %827 = vst [vmem:[%s719 + $0x1a8] sm:$0xff] %v826
                  %v828 = vld [vmem:[%s718 + $0x1b0] sm:$0xff]
                  %829 = vst [vmem:[%s719 + $0x1b0] sm:$0xff] %v828
                  %v830 = vld [vmem:[%s718 + $0x1b8] sm:$0xff]
                  %831 = vst [vmem:[%s719 + $0x1b8] sm:$0xff] %v830
                  %v832 = vld [vmem:[%s718 + $0x1c0] sm:$0xff]
                  %833 = vst [vmem:[%s719 + $0x1c0] sm:$0xff] %v832
                  %v834 = vld [vmem:[%s718 + $0x1c8] sm:$0xff]
                  %835 = vst [vmem:[%s719 + $0x1c8] sm:$0xff] %v834
                  %v836 = vld [vmem:[%s718 + $0x1d0] sm:$0xff]
                  %837 = vst [vmem:[%s719 + $0x1d0] sm:$0xff] %v836
                  %v838 = vld [vmem:[%s718 + $0x1d8] sm:$0xff]
                  %839 = vst [vmem:[%s719 + $0x1d8] sm:$0xff] %v838
                  %v840 = vld [vmem:[%s718 + $0x1e0] sm:$0xff]
                  %841 = vst [vmem:[%s719 + $0x1e0] sm:$0xff] %v840
                  %v842 = vld [vmem:[%s718 + $0x1e8] sm:$0xff]
                  %843 = vst [vmem:[%s719 + $0x1e8] sm:$0xff] %v842
                  %v844 = vld [vmem:[%s718 + $0x1f0] sm:$0xff]
                  %845 = vst [vmem:[%s719 + $0x1f0] sm:$0xff] %v844
                  %v846 = vld [vmem:[%s718 + $0x1f8] sm:$0xff]
                  %847 = vst [vmem:[%s719 + $0x1f8] sm:$0xff] %v846
                  %v848 = vld [vmem:[%s718 + $0x200] sm:$0xff]
                  %849 = vst [vmem:[%s719 + $0x200] sm:$0xff] %v848
                  %v850 = vld [vmem:[%s718 + $0x208] sm:$0xff]
                  %851 = vst [vmem:[%s719 + $0x208] sm:$0xff] %v850
                  %v852 = vld [vmem:[%s718 + $0x210] sm:$0xff]
                  %853 = vst [vmem:[%s719 + $0x210] sm:$0xff] %v852
                  %v854 = vld [vmem:[%s718 + $0x218] sm:$0xff]
                  %855 = vst [vmem:[%s719 + $0x218] sm:$0xff] %v854
                  %v856 = vld [vmem:[%s718 + $0x220] sm:$0xff]
                  %857 = vst [vmem:[%s719 + $0x220] sm:$0xff] %v856
                  %v858 = vld [vmem:[%s718 + $0x228] sm:$0xff]
                  %859 = vst [vmem:[%s719 + $0x228] sm:$0xff] %v858
                  %v860 = vld [vmem:[%s718 + $0x230] sm:$0xff]
                  %861 = vst [vmem:[%s719 + $0x230] sm:$0xff] %v860
                  %v862 = vld [vmem:[%s718 + $0x238] sm:$0xff]
                  %863 = vst [vmem:[%s719 + $0x238] sm:$0xff] %v862
                  %v864 = vld [vmem:[%s718 + $0x240] sm:$0xff]
                  %865 = vst [vmem:[%s719 + $0x240] sm:$0xff] %v864
                  %v866 = vld [vmem:[%s718 + $0x248] sm:$0xff]
                  %867 = vst [vmem:[%s719 + $0x248] sm:$0xff] %v866
                  %v868 = vld [vmem:[%s718 + $0x250] sm:$0xff]
                  %869 = vst [vmem:[%s719 + $0x250] sm:$0xff] %v868
                  %v870 = vld [vmem:[%s718 + $0x258] sm:$0xff]
                  %871 = vst [vmem:[%s719 + $0x258] sm:$0xff] %v870
                  %v872 = vld [vmem:[%s718 + $0x260] sm:$0xff]
                  %873 = vst [vmem:[%s719 + $0x260] sm:$0xff] %v872
                  %v874 = vld [vmem:[%s718 + $0x268] sm:$0xff]
                  %875 = vst [vmem:[%s719 + $0x268] sm:$0xff] %v874
                  %v876 = vld [vmem:[%s718 + $0x270] sm:$0xff]
                  %877 = vst [vmem:[%s719 + $0x270] sm:$0xff] %v876
                  %v878 = vld [vmem:[%s718 + $0x278] sm:$0xff]
                  %879 = vst [vmem:[%s719 + $0x278] sm:$0xff] %v878
                  %v880 = vld [vmem:[%s718 + $0x280] sm:$0xff]
                  %881 = vst [vmem:[%s719 + $0x280] sm:$0xff] %v880
                  %v882 = vld [vmem:[%s718 + $0x288] sm:$0xff]
                  %883 = vst [vmem:[%s719 + $0x288] sm:$0xff] %v882
                  %v884 = vld [vmem:[%s718 + $0x290] sm:$0xff]
                  %885 = vst [vmem:[%s719 + $0x290] sm:$0xff] %v884
                  %v886 = vld [vmem:[%s718 + $0x298] sm:$0xff]
                  %887 = vst [vmem:[%s719 + $0x298] sm:$0xff] %v886
                  %v888 = vld [vmem:[%s718 + $0x2a0] sm:$0xff]
                  %889 = vst [vmem:[%s719 + $0x2a0] sm:$0xff] %v888
                  %v890 = vld [vmem:[%s718 + $0x2a8] sm:$0xff]
                  %891 = vst [vmem:[%s719 + $0x2a8] sm:$0xff] %v890
                  %v892 = vld [vmem:[%s718 + $0x2b0] sm:$0xff]
                  %893 = vst [vmem:[%s719 + $0x2b0] sm:$0xff] %v892
                  %v894 = vld [vmem:[%s718 + $0x2b8] sm:$0xff]
                  %895 = vst [vmem:[%s719 + $0x2b8] sm:$0xff] %v894
                  %v896 = vld [vmem:[%s718 + $0x2c0] sm:$0xff]
                  %897 = vst [vmem:[%s719 + $0x2c0] sm:$0xff] %v896
                  %v898 = vld [vmem:[%s718 + $0x2c8] sm:$0xff]
                  %899 = vst [vmem:[%s719 + $0x2c8] sm:$0xff] %v898
                  %v900 = vld [vmem:[%s718 + $0x2d0] sm:$0xff]
                  %901 = vst [vmem:[%s719 + $0x2d0] sm:$0xff] %v900
                  %v902 = vld [vmem:[%s718 + $0x2d8] sm:$0xff]
                  %903 = vst [vmem:[%s719 + $0x2d8] sm:$0xff] %v902
                  %v904 = vld [vmem:[%s718 + $0x2e0] sm:$0xff]
                  %905 = vst [vmem:[%s719 + $0x2e0] sm:$0xff] %v904
                  %v906 = vld [vmem:[%s718 + $0x2e8] sm:$0xff]
                  %907 = vst [vmem:[%s719 + $0x2e8] sm:$0xff] %v906
                  %v908 = vld [vmem:[%s718 + $0x2f0] sm:$0xff]
                  %909 = vst [vmem:[%s719 + $0x2f0] sm:$0xff] %v908
                  %v910 = vld [vmem:[%s718 + $0x2f8] sm:$0xff]
                  %911 = vst [vmem:[%s719 + $0x2f8] sm:$0xff] %v910
                  %v912 = vld [vmem:[%s718 + $0x300] sm:$0xff]
                  %913 = vst [vmem:[%s719 + $0x300] sm:$0xff] %v912
                  %v914 = vld [vmem:[%s718 + $0x308] sm:$0xff]
                  %915 = vst [vmem:[%s719 + $0x308] sm:$0xff] %v914
                  %v916 = vld [vmem:[%s718 + $0x310] sm:$0xff]
                  %917 = vst [vmem:[%s719 + $0x310] sm:$0xff] %v916
                  %v918 = vld [vmem:[%s718 + $0x318] sm:$0xff]
                  %919 = vst [vmem:[%s719 + $0x318] sm:$0xff] %v918
                  %v920 = vld [vmem:[%s718 + $0x320] sm:$0xff]
                  %921 = vst [vmem:[%s719 + $0x320] sm:$0xff] %v920
                  %v922 = vld [vmem:[%s718 + $0x328] sm:$0xff]
                  %923 = vst [vmem:[%s719 + $0x328] sm:$0xff] %v922
                  %v924 = vld [vmem:[%s718 + $0x330] sm:$0xff]
                  %925 = vst [vmem:[%s719 + $0x330] sm:$0xff] %v924
                  %v926 = vld [vmem:[%s718 + $0x338] sm:$0xff]
                  %927 = vst [vmem:[%s719 + $0x338] sm:$0xff] %v926
                  %v928 = vld [vmem:[%s718 + $0x340] sm:$0xff]
                  %929 = vst [vmem:[%s719 + $0x340] sm:$0xff] %v928
                  %v930 = vld [vmem:[%s718 + $0x348] sm:$0xff]
                  %931 = vst [vmem:[%s719 + $0x348] sm:$0xff] %v930
                  %v932 = vld [vmem:[%s718 + $0x350] sm:$0xff]
                  %933 = vst [vmem:[%s719 + $0x350] sm:$0xff] %v932
                  %v934 = vld [vmem:[%s718 + $0x358] sm:$0xff]
                  %935 = vst [vmem:[%s719 + $0x358] sm:$0xff] %v934
                  %v936 = vld [vmem:[%s718 + $0x360] sm:$0xff]
                  %937 = vst [vmem:[%s719 + $0x360] sm:$0xff] %v936
                  %v938 = vld [vmem:[%s718 + $0x368] sm:$0xff]
                  %939 = vst [vmem:[%s719 + $0x368] sm:$0xff] %v938
                  %v940 = vld [vmem:[%s718 + $0x370] sm:$0xff]
                  %941 = vst [vmem:[%s719 + $0x370] sm:$0xff] %v940
                  %v942 = vld [vmem:[%s718 + $0x378] sm:$0xff]
                  %943 = vst [vmem:[%s719 + $0x378] sm:$0xff] %v942
                  %v944 = vld [vmem:[%s718 + $0x380] sm:$0xff]
                  %945 = vst [vmem:[%s719 + $0x380] sm:$0xff] %v944
                  %v946 = vld [vmem:[%s718 + $0x388] sm:$0xff]
                  %947 = vst [vmem:[%s719 + $0x388] sm:$0xff] %v946
                  %v948 = vld [vmem:[%s718 + $0x390] sm:$0xff]
                  %949 = vst [vmem:[%s719 + $0x390] sm:$0xff] %v948
                  %v950 = vld [vmem:[%s718 + $0x398] sm:$0xff]
                  %951 = vst [vmem:[%s719 + $0x398] sm:$0xff] %v950
                  %v952 = vld [vmem:[%s718 + $0x3a0] sm:$0xff]
                  %953 = vst [vmem:[%s719 + $0x3a0] sm:$0xff] %v952
                  %v954 = vld [vmem:[%s718 + $0x3a8] sm:$0xff]
                  %955 = vst [vmem:[%s719 + $0x3a8] sm:$0xff] %v954
                  %v956 = vld [vmem:[%s718 + $0x3b0] sm:$0xff]
                  %957 = vst [vmem:[%s719 + $0x3b0] sm:$0xff] %v956
                  %v958 = vld [vmem:[%s718 + $0x3b8] sm:$0xff]
                  %959 = vst [vmem:[%s719 + $0x3b8] sm:$0xff] %v958
                  %v960 = vld [vmem:[%s718 + $0x3c0] sm:$0xff]
                  %961 = vst [vmem:[%s719 + $0x3c0] sm:$0xff] %v960
                  %v962 = vld [vmem:[%s718 + $0x3c8] sm:$0xff]
                  %963 = vst [vmem:[%s719 + $0x3c8] sm:$0xff] %v962
                  %v964 = vld [vmem:[%s718 + $0x3d0] sm:$0xff]
                  %965 = vst [vmem:[%s719 + $0x3d0] sm:$0xff] %v964
                  %v966 = vld [vmem:[%s718 + $0x3d8] sm:$0xff]
                  %967 = vst [vmem:[%s719 + $0x3d8] sm:$0xff] %v966
                  %v968 = vld [vmem:[%s718 + $0x3e0] sm:$0xff]
                  %969 = vst [vmem:[%s719 + $0x3e0] sm:$0xff] %v968
                  %v970 = vld [vmem:[%s718 + $0x3e8] sm:$0xff]
                  %971 = vst [vmem:[%s719 + $0x3e8] sm:$0xff] %v970
                  %v972 = vld [vmem:[%s718 + $0x3f0] sm:$0xff]
                  %973 = vst [vmem:[%s719 + $0x3f0] sm:$0xff] %v972
                  %v974 = vld [vmem:[%s718 + $0x3f8] sm:$0xff]
                  %975 = vst [vmem:[%s719 + $0x3f8] sm:$0xff] %v974
                  %v976 = vld [vmem:[%s718 + $0x400] sm:$0xff]
                  %977 = vst [vmem:[%s719 + $0x400] sm:$0xff] %v976
                  %v978 = vld [vmem:[%s718 + $0x408] sm:$0xff]
                  %979 = vst [vmem:[%s719 + $0x408] sm:$0xff] %v978
                  %v980 = vld [vmem:[%s718 + $0x410] sm:$0xff]
                  %981 = vst [vmem:[%s719 + $0x410] sm:$0xff] %v980
                  %v982 = vld [vmem:[%s718 + $0x418] sm:$0xff]
                  %983 = vst [vmem:[%s719 + $0x418] sm:$0xff] %v982
                  %v984 = vld [vmem:[%s718 + $0x420] sm:$0xff]
                  %985 = vst [vmem:[%s719 + $0x420] sm:$0xff] %v984
                  %v986 = vld [vmem:[%s718 + $0x428] sm:$0xff]
                  %987 = vst [vmem:[%s719 + $0x428] sm:$0xff] %v986
                  %v988 = vld [vmem:[%s718 + $0x430] sm:$0xff]
                  %989 = vst [vmem:[%s719 + $0x430] sm:$0xff] %v988
                  %v990 = vld [vmem:[%s718 + $0x10e0] sm:$0xff]
                  %991 = vst [vmem:[%s719 + $0x438] sm:$0xff] %v990
                  %v992 = vld [vmem:[%s718 + $0x10e8] sm:$0xff]
                  %993 = vst [vmem:[%s719 + $0x440] sm:$0xff] %v992
                  %v994 = vld [vmem:[%s718 + $0x10f0] sm:$0xff]
                  %995 = vst [vmem:[%s719 + $0x448] sm:$0xff] %v994
                  %v996 = vld [vmem:[%s718 + $0x10f8] sm:$0xff]
                  %997 = vst [vmem:[%s719 + $0x450] sm:$0xff] %v996
                  %v998 = vld [vmem:[%s718 + $0x1100] sm:$0xff]
                  %999 = vst [vmem:[%s719 + $0x458] sm:$0xff] %v998
                  %v1000 = vld [vmem:[%s718 + $0x1108] sm:$0xff]
                  %1001 = vst [vmem:[%s719 + $0x460] sm:$0xff] %v1000
                  %v1002 = vld [vmem:[%s718 + $0x1110] sm:$0xff]
                  %1003 = vst [vmem:[%s719 + $0x468] sm:$0xff] %v1002
                  %v1004 = vld [vmem:[%s718 + $0x1118] sm:$0xff]
                  %1005 = vst [vmem:[%s719 + $0x470] sm:$0xff] %v1004
                  %v1006 = vld [vmem:[%s718 + $0x1120] sm:$0xff]
                  %1007 = vst [vmem:[%s719 + $0x478] sm:$0xff] %v1006
                  %v1008 = vld [vmem:[%s718 + $0x1128] sm:$0xff]
                  %1009 = vst [vmem:[%s719 + $0x480] sm:$0xff] %v1008
                  %v1010 = vld [vmem:[%s718 + $0x1130] sm:$0xff]
                  %1011 = vst [vmem:[%s719 + $0x488] sm:$0xff] %v1010
                  %v1012 = vld [vmem:[%s718 + $0x1138] sm:$0xff]
                  %1013 = vst [vmem:[%s719 + $0x490] sm:$0xff] %v1012
                  %v1014 = vld [vmem:[%s718 + $0x1140] sm:$0xff]
                  %1015 = vst [vmem:[%s719 + $0x498] sm:$0xff] %v1014
                  %v1016 = vld [vmem:[%s718 + $0x1148] sm:$0xff]
                  %1017 = vst [vmem:[%s719 + $0x4a0] sm:$0xff] %v1016
                  %v1018 = vld [vmem:[%s718 + $0x1150] sm:$0xff]
                  %1019 = vst [vmem:[%s719 + $0x4a8] sm:$0xff] %v1018
                  %v1020 = vld [vmem:[%s718 + $0x1158] sm:$0xff]
                  %1021 = vst [vmem:[%s719 + $0x4b0] sm:$0xff] %v1020
                  %v1022 = vld [vmem:[%s718 + $0x1160] sm:$0xff]
                  %1023 = vst [vmem:[%s719 + $0x4b8] sm:$0xff] %v1022
                  %v1024 = vld [vmem:[%s718 + $0x1168] sm:$0xff]
                  %1025 = vst [vmem:[%s719 + $0x4c0] sm:$0xff] %v1024
                  %v1026 = vld [vmem:[%s718 + $0x1170] sm:$0xff]
                  %1027 = vst [vmem:[%s719 + $0x4c8] sm:$0xff] %v1026
                  %v1028 = vld [vmem:[%s718 + $0x1178] sm:$0xff]
                  %1029 = vst [vmem:[%s719 + $0x4d0] sm:$0xff] %v1028
                  %v1030 = vld [vmem:[%s718 + $0x1180] sm:$0xff]
                  %1031 = vst [vmem:[%s719 + $0x4d8] sm:$0xff] %v1030
                  %v1032 = vld [vmem:[%s718 + $0x1188] sm:$0xff]
                  %1033 = vst [vmem:[%s719 + $0x4e0] sm:$0xff] %v1032
                  %v1034 = vld [vmem:[%s718 + $0x1190] sm:$0xff]
                  %1035 = vst [vmem:[%s719 + $0x4e8] sm:$0xff] %v1034
                  %v1036 = vld [vmem:[%s718 + $0x1198] sm:$0xff]
                  %1037 = vst [vmem:[%s719 + $0x4f0] sm:$0xff] %v1036
                  %v1038 = vld [vmem:[%s718 + $0x11a0] sm:$0xff]
                  %1039 = vst [vmem:[%s719 + $0x4f8] sm:$0xff] %v1038
                  %v1040 = vld [vmem:[%s718 + $0x11a8] sm:$0xff]
                  %1041 = vst [vmem:[%s719 + $0x500] sm:$0xff] %v1040
                  %v1042 = vld [vmem:[%s718 + $0x11b0] sm:$0xff]
                  %1043 = vst [vmem:[%s719 + $0x508] sm:$0xff] %v1042
                  %v1044 = vld [vmem:[%s718 + $0x11b8] sm:$0xff]
                  %1045 = vst [vmem:[%s719 + $0x510] sm:$0xff] %v1044
                  %v1046 = vld [vmem:[%s718 + $0x11c0] sm:$0xff]
                  %1047 = vst [vmem:[%s719 + $0x518] sm:$0xff] %v1046
                  %v1048 = vld [vmem:[%s718 + $0x11c8] sm:$0xff]
                  %1049 = vst [vmem:[%s719 + $0x520] sm:$0xff] %v1048
                  %v1050 = vld [vmem:[%s718 + $0x11d0] sm:$0xff]
                  %1051 = vst [vmem:[%s719 + $0x528] sm:$0xff] %v1050
                  %v1052 = vld [vmem:[%s718 + $0x11d8] sm:$0xff]
                  %1053 = vst [vmem:[%s719 + $0x530] sm:$0xff] %v1052
                  %v1054 = vld [vmem:[%s718 + $0x11e0] sm:$0xff]
                  %1055 = vst [vmem:[%s719 + $0x538] sm:$0xff] %v1054
                  %v1056 = vld [vmem:[%s718 + $0x11e8] sm:$0xff]
                  %1057 = vst [vmem:[%s719 + $0x540] sm:$0xff] %v1056
                  %v1058 = vld [vmem:[%s718 + $0x11f0] sm:$0xff]
                  %1059 = vst [vmem:[%s719 + $0x548] sm:$0xff] %v1058
                  %v1060 = vld [vmem:[%s718 + $0x11f8] sm:$0xff]
                  %1061 = vst [vmem:[%s719 + $0x550] sm:$0xff] %v1060
                  %v1062 = vld [vmem:[%s718 + $0x1200] sm:$0xff]
                  %1063 = vst [vmem:[%s719 + $0x558] sm:$0xff] %v1062
                  %v1064 = vld [vmem:[%s718 + $0x1208] sm:$0xff]
                  %1065 = vst [vmem:[%s719 + $0x560] sm:$0xff] %v1064
                  %v1066 = vld [vmem:[%s718 + $0x1210] sm:$0xff]
                  %1067 = vst [vmem:[%s719 + $0x568] sm:$0xff] %v1066
                  %v1068 = vld [vmem:[%s718 + $0x1218] sm:$0xff]
                  %1069 = vst [vmem:[%s719 + $0x570] sm:$0xff] %v1068
                  %v1070 = vld [vmem:[%s718 + $0x1220] sm:$0xff]
                  %1071 = vst [vmem:[%s719 + $0x578] sm:$0xff] %v1070
                  %v1072 = vld [vmem:[%s718 + $0x1228] sm:$0xff]
                  %1073 = vst [vmem:[%s719 + $0x580] sm:$0xff] %v1072
                  %v1074 = vld [vmem:[%s718 + $0x1230] sm:$0xff]
                  %1075 = vst [vmem:[%s719 + $0x588] sm:$0xff] %v1074
                  %v1076 = vld [vmem:[%s718 + $0x1238] sm:$0xff]
                  %1077 = vst [vmem:[%s719 + $0x590] sm:$0xff] %v1076
                  %v1078 = vld [vmem:[%s718 + $0x1240] sm:$0xff]
                  %1079 = vst [vmem:[%s719 + $0x598] sm:$0xff] %v1078
                  %v1080 = vld [vmem:[%s718 + $0x1248] sm:$0xff]
                  %1081 = vst [vmem:[%s719 + $0x5a0] sm:$0xff] %v1080
                  %v1082 = vld [vmem:[%s718 + $0x1250] sm:$0xff]
                  %1083 = vst [vmem:[%s719 + $0x5a8] sm:$0xff] %v1082
                  %v1084 = vld [vmem:[%s718 + $0x1258] sm:$0xff]
                  %1085 = vst [vmem:[%s719 + $0x5b0] sm:$0xff] %v1084
                  %v1086 = vld [vmem:[%s718 + $0x1260] sm:$0xff]
                  %1087 = vst [vmem:[%s719 + $0x5b8] sm:$0xff] %v1086
                  %v1088 = vld [vmem:[%s718 + $0x1268] sm:$0xff]
                  %1089 = vst [vmem:[%s719 + $0x5c0] sm:$0xff] %v1088
                  %v1090 = vld [vmem:[%s718 + $0x1270] sm:$0xff]
                  %1091 = vst [vmem:[%s719 + $0x5c8] sm:$0xff] %v1090
                  %v1092 = vld [vmem:[%s718 + $0x1278] sm:$0xff]
                  %1093 = vst [vmem:[%s719 + $0x5d0] sm:$0xff] %v1092
                  %v1094 = vld [vmem:[%s718 + $0x1280] sm:$0xff]
                  %1095 = vst [vmem:[%s719 + $0x5d8] sm:$0xff] %v1094
                  %v1096 = vld [vmem:[%s718 + $0x1288] sm:$0xff]
                  %1097 = vst [vmem:[%s719 + $0x5e0] sm:$0xff] %v1096
                  %v1098 = vld [vmem:[%s718 + $0x1290] sm:$0xff]
                  %1099 = vst [vmem:[%s719 + $0x5e8] sm:$0xff] %v1098
                  %v1100 = vld [vmem:[%s718 + $0x1298] sm:$0xff]
                  %1101 = vst [vmem:[%s719 + $0x5f0] sm:$0xff] %v1100
                  %v1102 = vld [vmem:[%s718 + $0x12a0] sm:$0xff]
                  %1103 = vst [vmem:[%s719 + $0x5f8] sm:$0xff] %v1102
                  %v1104 = vld [vmem:[%s718 + $0x12a8] sm:$0xff]
                  %1105 = vst [vmem:[%s719 + $0x600] sm:$0xff] %v1104
                  %v1106 = vld [vmem:[%s718 + $0x12b0] sm:$0xff]
                  %1107 = vst [vmem:[%s719 + $0x608] sm:$0xff] %v1106
                  %v1108 = vld [vmem:[%s718 + $0x12b8] sm:$0xff]
                  %1109 = vst [vmem:[%s719 + $0x610] sm:$0xff] %v1108
                  %v1110 = vld [vmem:[%s718 + $0x12c0] sm:$0xff]
                  %1111 = vst [vmem:[%s719 + $0x618] sm:$0xff] %v1110
                  %v1112 = vld [vmem:[%s718 + $0x12c8] sm:$0xff]
                  %1113 = vst [vmem:[%s719 + $0x620] sm:$0xff] %v1112
                  %v1114 = vld [vmem:[%s718 + $0x12d0] sm:$0xff]
                  %1115 = vst [vmem:[%s719 + $0x628] sm:$0xff] %v1114
                  %v1116 = vld [vmem:[%s718 + $0x12d8] sm:$0xff]
                  %1117 = vst [vmem:[%s719 + $0x630] sm:$0xff] %v1116
                  %v1118 = vld [vmem:[%s718 + $0x12e0] sm:$0xff]
                  %1119 = vst [vmem:[%s719 + $0x638] sm:$0xff] %v1118
                  %v1120 = vld [vmem:[%s718 + $0x12e8] sm:$0xff]
                  %1121 = vst [vmem:[%s719 + $0x640] sm:$0xff] %v1120
                  %v1122 = vld [vmem:[%s718 + $0x12f0] sm:$0xff]
                  %1123 = vst [vmem:[%s719 + $0x648] sm:$0xff] %v1122
                  %v1124 = vld [vmem:[%s718 + $0x12f8] sm:$0xff]
                  %1125 = vst [vmem:[%s719 + $0x650] sm:$0xff] %v1124
                  %v1126 = vld [vmem:[%s718 + $0x1300] sm:$0xff]
                  %1127 = vst [vmem:[%s719 + $0x658] sm:$0xff] %v1126
                  %v1128 = vld [vmem:[%s718 + $0x1308] sm:$0xff]
                  %1129 = vst [vmem:[%s719 + $0x660] sm:$0xff] %v1128
                  %v1130 = vld [vmem:[%s718 + $0x1310] sm:$0xff]
                  %1131 = vst [vmem:[%s719 + $0x668] sm:$0xff] %v1130
                  %v1132 = vld [vmem:[%s718 + $0x1318] sm:$0xff]
                  %1133 = vst [vmem:[%s719 + $0x670] sm:$0xff] %v1132
                  %v1134 = vld [vmem:[%s718 + $0x1320] sm:$0xff]
                  %1135 = vst [vmem:[%s719 + $0x678] sm:$0xff] %v1134
                  %v1136 = vld [vmem:[%s718 + $0x1328] sm:$0xff]
                  %1137 = vst [vmem:[%s719 + $0x680] sm:$0xff] %v1136
                  %v1138 = vld [vmem:[%s718 + $0x1330] sm:$0xff]
                  %1139 = vst [vmem:[%s719 + $0x688] sm:$0xff] %v1138
                  %v1140 = vld [vmem:[%s718 + $0x1338] sm:$0xff]
                  %1141 = vst [vmem:[%s719 + $0x690] sm:$0xff] %v1140
                  %v1142 = vld [vmem:[%s718 + $0x1340] sm:$0xff]
                  %1143 = vst [vmem:[%s719 + $0x698] sm:$0xff] %v1142
                  %v1144 = vld [vmem:[%s718 + $0x1348] sm:$0xff]
                  %1145 = vst [vmem:[%s719 + $0x6a0] sm:$0xff] %v1144
                  %v1146 = vld [vmem:[%s718 + $0x1350] sm:$0xff]
                  %1147 = vst [vmem:[%s719 + $0x6a8] sm:$0xff] %v1146
                  %v1148 = vld [vmem:[%s718 + $0x1358] sm:$0xff]
                  %1149 = vst [vmem:[%s719 + $0x6b0] sm:$0xff] %v1148
                  %v1150 = vld [vmem:[%s718 + $0x1360] sm:$0xff]
                  %1151 = vst [vmem:[%s719 + $0x6b8] sm:$0xff] %v1150
                  %v1152 = vld [vmem:[%s718 + $0x1368] sm:$0xff]
                  %1153 = vst [vmem:[%s719 + $0x6c0] sm:$0xff] %v1152
                  %v1154 = vld [vmem:[%s718 + $0x1370] sm:$0xff]
                  %1155 = vst [vmem:[%s719 + $0x6c8] sm:$0xff] %v1154
                  %v1156 = vld [vmem:[%s718 + $0x1378] sm:$0xff]
                  %1157 = vst [vmem:[%s719 + $0x6d0] sm:$0xff] %v1156
                  %v1158 = vld [vmem:[%s718 + $0x1380] sm:$0xff]
                  %1159 = vst [vmem:[%s719 + $0x6d8] sm:$0xff] %v1158
                  %v1160 = vld [vmem:[%s718 + $0x1388] sm:$0xff]
                  %1161 = vst [vmem:[%s719 + $0x6e0] sm:$0xff] %v1160
                  %v1162 = vld [vmem:[%s718 + $0x1390] sm:$0xff]
                  %1163 = vst [vmem:[%s719 + $0x6e8] sm:$0xff] %v1162
                  %v1164 = vld [vmem:[%s718 + $0x1398] sm:$0xff]
                  %1165 = vst [vmem:[%s719 + $0x6f0] sm:$0xff] %v1164
                  %v1166 = vld [vmem:[%s718 + $0x13a0] sm:$0xff]
                  %1167 = vst [vmem:[%s719 + $0x6f8] sm:$0xff] %v1166
                  %v1168 = vld [vmem:[%s718 + $0x13a8] sm:$0xff]
                  %1169 = vst [vmem:[%s719 + $0x700] sm:$0xff] %v1168
                  %v1170 = vld [vmem:[%s718 + $0x13b0] sm:$0xff]
                  %1171 = vst [vmem:[%s719 + $0x708] sm:$0xff] %v1170
                  %v1172 = vld [vmem:[%s718 + $0x13b8] sm:$0xff]
                  %1173 = vst [vmem:[%s719 + $0x710] sm:$0xff] %v1172
                  %v1174 = vld [vmem:[%s718 + $0x13c0] sm:$0xff]
                  %1175 = vst [vmem:[%s719 + $0x718] sm:$0xff] %v1174
                  %v1176 = vld [vmem:[%s718 + $0x13c8] sm:$0xff]
                  %1177 = vst [vmem:[%s719 + $0x720] sm:$0xff] %v1176
                  %v1178 = vld [vmem:[%s718 + $0x13d0] sm:$0xff]
                  %1179 = vst [vmem:[%s719 + $0x728] sm:$0xff] %v1178
                  %v1180 = vld [vmem:[%s718 + $0x13d8] sm:$0xff]
                  %1181 = vst [vmem:[%s719 + $0x730] sm:$0xff] %v1180
                  %v1182 = vld [vmem:[%s718 + $0x13e0] sm:$0xff]
                  %1183 = vst [vmem:[%s719 + $0x738] sm:$0xff] %v1182
                  %v1184 = vld [vmem:[%s718 + $0x13e8] sm:$0xff]
                  %1185 = vst [vmem:[%s719 + $0x740] sm:$0xff] %v1184
                  %v1186 = vld [vmem:[%s718 + $0x13f0] sm:$0xff]
                  %1187 = vst [vmem:[%s719 + $0x748] sm:$0xff] %v1186
                  %v1188 = vld [vmem:[%s718 + $0x13f8] sm:$0xff]
                  %1189 = vst [vmem:[%s719 + $0x750] sm:$0xff] %v1188
                  %v1190 = vld [vmem:[%s718 + $0x1400] sm:$0xff]
                  %1191 = vst [vmem:[%s719 + $0x758] sm:$0xff] %v1190
                  %v1192 = vld [vmem:[%s718 + $0x1408] sm:$0xff]
                  %1193 = vst [vmem:[%s719 + $0x760] sm:$0xff] %v1192
                  %v1194 = vld [vmem:[%s718 + $0x1410] sm:$0xff]
                  %1195 = vst [vmem:[%s719 + $0x768] sm:$0xff] %v1194
                  %v1196 = vld [vmem:[%s718 + $0x1418] sm:$0xff]
                  %1197 = vst [vmem:[%s719 + $0x770] sm:$0xff] %v1196
                  %v1198 = vld [vmem:[%s718 + $0x1420] sm:$0xff]
                  %1199 = vst [vmem:[%s719 + $0x778] sm:$0xff] %v1198
                  %v1200 = vld [vmem:[%s718 + $0x1428] sm:$0xff]
                  %1201 = vst [vmem:[%s719 + $0x780] sm:$0xff] %v1200
                  %v1202 = vld [vmem:[%s718 + $0x1430] sm:$0xff]
                  %1203 = vst [vmem:[%s719 + $0x788] sm:$0xff] %v1202
                  %v1204 = vld [vmem:[%s718 + $0x1438] sm:$0xff]
                  %1205 = vst [vmem:[%s719 + $0x790] sm:$0xff] %v1204
                  %v1206 = vld [vmem:[%s718 + $0x1440] sm:$0xff]
                  %1207 = vst [vmem:[%s719 + $0x798] sm:$0xff] %v1206
                  %v1208 = vld [vmem:[%s718 + $0x1448] sm:$0xff]
                  %1209 = vst [vmem:[%s719 + $0x7a0] sm:$0xff] %v1208
                  %v1210 = vld [vmem:[%s718 + $0x1450] sm:$0xff]
                  %1211 = vst [vmem:[%s719 + $0x7a8] sm:$0xff] %v1210
                  %v1212 = vld [vmem:[%s718 + $0x1458] sm:$0xff]
                  %1213 = vst [vmem:[%s719 + $0x7b0] sm:$0xff] %v1212
                  %v1214 = vld [vmem:[%s718 + $0x1460] sm:$0xff]
                  %1215 = vst [vmem:[%s719 + $0x7b8] sm:$0xff] %v1214
                  %v1216 = vld [vmem:[%s718 + $0x1468] sm:$0xff]
                  %1217 = vst [vmem:[%s719 + $0x7c0] sm:$0xff] %v1216
                  %v1218 = vld [vmem:[%s718 + $0x1470] sm:$0xff]
                  %1219 = vst [vmem:[%s719 + $0x7c8] sm:$0xff] %v1218
                  %v1220 = vld [vmem:[%s718 + $0x1478] sm:$0xff]
                  %1221 = vst [vmem:[%s719 + $0x7d0] sm:$0xff] %v1220
                  %v1222 = vld [vmem:[%s718 + $0x1480] sm:$0xff]
                  %1223 = vst [vmem:[%s719 + $0x7d8] sm:$0xff] %v1222
                  %v1224 = vld [vmem:[%s718 + $0x1488] sm:$0xff]
                  %1225 = vst [vmem:[%s719 + $0x7e0] sm:$0xff] %v1224
                  %v1226 = vld [vmem:[%s718 + $0x1490] sm:$0xff]
                  %1227 = vst [vmem:[%s719 + $0x7e8] sm:$0xff] %v1226
                  %v1228 = vld [vmem:[%s718 + $0x1498] sm:$0xff]
                  %1229 = vst [vmem:[%s719 + $0x7f0] sm:$0xff] %v1228
                  %v1230 = vld [vmem:[%s718 + $0x14a0] sm:$0xff]
                  %1231 = vst [vmem:[%s719 + $0x7f8] sm:$0xff] %v1230
                  %v1232 = vld [vmem:[%s718 + $0x14a8] sm:$0xff]
                  %1233 = vst [vmem:[%s719 + $0x800] sm:$0xff] %v1232
                  %v1234 = vld [vmem:[%s718 + $0x14b0] sm:$0xff]
                  %1235 = vst [vmem:[%s719 + $0x808] sm:$0xff] %v1234
                  %v1236 = vld [vmem:[%s718 + $0x14b8] sm:$0xff]
                  %1237 = vst [vmem:[%s719 + $0x810] sm:$0xff] %v1236
                  %v1238 = vld [vmem:[%s718 + $0x14c0] sm:$0xff]
                  %1239 = vst [vmem:[%s719 + $0x818] sm:$0xff] %v1238
                  %v1240 = vld [vmem:[%s718 + $0x14c8] sm:$0xff]
                  %1241 = vst [vmem:[%s719 + $0x820] sm:$0xff] %v1240
                  %v1242 = vld [vmem:[%s718 + $0x14d0] sm:$0xff]
                  %1243 = vst [vmem:[%s719 + $0x828] sm:$0xff] %v1242
                  %v1244 = vld [vmem:[%s718 + $0x14d8] sm:$0xff]
                  %1245 = vst [vmem:[%s719 + $0x830] sm:$0xff] %v1244
                  %v1246 = vld [vmem:[%s718 + $0x14e0] sm:$0xff]
                  %1247 = vst [vmem:[%s719 + $0x838] sm:$0xff] %v1246
                  %v1248 = vld [vmem:[%s718 + $0x14e8] sm:$0xff]
                  %1249 = vst [vmem:[%s719 + $0x840] sm:$0xff] %v1248
                  %v1250 = vld [vmem:[%s718 + $0x14f0] sm:$0xff]
                  %1251 = vst [vmem:[%s719 + $0x848] sm:$0xff] %v1250
                  %v1252 = vld [vmem:[%s718 + $0x14f8] sm:$0xff]
                  %1253 = vst [vmem:[%s719 + $0x850] sm:$0xff] %v1252
                  %v1254 = vld [vmem:[%s718 + $0x1500] sm:$0xff]
                  %1255 = vst [vmem:[%s719 + $0x858] sm:$0xff] %v1254
                  %v1256 = vld [vmem:[%s718 + $0x1508] sm:$0xff]
                  %1257 = vst [vmem:[%s719 + $0x860] sm:$0xff] %v1256
                  %v1258 = vld [vmem:[%s718 + $0x1510] sm:$0xff]
                  %1259 = vst [vmem:[%s719 + $0x868] sm:$0xff] %v1258
                $region56: #{tpu_custom_call.1} parent=50 // loop_footer
                  %s717 = sadd.s32 1, %s713
                $region57: #{tpu_custom_call.1} parent=50 // loop_footer_branch
                  %712 = sbr.rel target = $region53
                $region58: #{tpu_custom_call.1} parent=50 // loop_exit
                  _
              $region51: #{tpu_custom_call.1} parent=35 // pred_fallthru
                _
              // Predicated region
              $region59: #{tpu_custom_call.1} parent=35 // pred_check
                _
              $region60: #{tpu_custom_call.1} parent=35 // pred_check_branch
                %1261 = sbr.rel target = $region62
              $region61: #{tpu_custom_call.1} parent=35 // pred_region
                _
              $region62: #{tpu_custom_call.1} parent=35 // pred_fallthru
                _
            $region36: #{tpu_custom_call.1} parent=31 // pred_fallthru
              _
            // Predicated region
            $region37: #{tpu_custom_call.1} parent=31 // pred_check
              _
            $region38: #{tpu_custom_call.1} parent=31 // pred_check_branch
              %160 = sbr.rel target = $region40
            $region39: #{tpu_custom_call.1} parent=31 // pred_region
              loop: start=0, step=1, limit=1
              $region41: #{tpu_custom_call.1} parent=39 // loop_pre_header
                _
              $region42: #{tpu_custom_call.1} parent=39 // loop_header
                %s163 = sphi 0, %s167
                %p164 = scmp.ge.s32.totalorder %s163, 1
                %s168 = sphi %s154, %s154
                %s169 = sphi %s149, %s149
              $region43: #{tpu_custom_call.1} parent=39 // loop_header_branch
                %166 = sbr.rel (%p164) target = $region47
              $region44: #{tpu_custom_call.1} parent=39 // loop_body
                %v170 = vld [vmem:[%s168] sm:$0xff]
                %171 = vst [vmem:[%s169] sm:$0xff] %v170
                %v172 = vld [vmem:[%s168 + $0x8] sm:$0xff]
                %173 = vst [vmem:[%s169 + $0x8] sm:$0xff] %v172
                %v174 = vld [vmem:[%s168 + $0x10] sm:$0xff]
                %175 = vst [vmem:[%s169 + $0x10] sm:$0xff] %v174
                %v176 = vld [vmem:[%s168 + $0x18] sm:$0xff]
                %177 = vst [vmem:[%s169 + $0x18] sm:$0xff] %v176
                %v178 = vld [vmem:[%s168 + $0x20] sm:$0xff]
                %179 = vst [vmem:[%s169 + $0x20] sm:$0xff] %v178
                %v180 = vld [vmem:[%s168 + $0x28] sm:$0xff]
                %181 = vst [vmem:[%s169 + $0x28] sm:$0xff] %v180
                %v182 = vld [vmem:[%s168 + $0x30] sm:$0xff]
                %183 = vst [vmem:[%s169 + $0x30] sm:$0xff] %v182
                %v184 = vld [vmem:[%s168 + $0x38] sm:$0xff]
                %185 = vst [vmem:[%s169 + $0x38] sm:$0xff] %v184
                %v186 = vld [vmem:[%s168 + $0x40] sm:$0xff]
                %187 = vst [vmem:[%s169 + $0x40] sm:$0xff] %v186
                %v188 = vld [vmem:[%s168 + $0x48] sm:$0xff]
                %189 = vst [vmem:[%s169 + $0x48] sm:$0xff] %v188
                %v190 = vld [vmem:[%s168 + $0x50] sm:$0xff]
                %191 = vst [vmem:[%s169 + $0x50] sm:$0xff] %v190
                %v192 = vld [vmem:[%s168 + $0x58] sm:$0xff]
                %193 = vst [vmem:[%s169 + $0x58] sm:$0xff] %v192
                %v194 = vld [vmem:[%s168 + $0x60] sm:$0xff]
                %195 = vst [vmem:[%s169 + $0x60] sm:$0xff] %v194
                %v196 = vld [vmem:[%s168 + $0x68] sm:$0xff]
                %197 = vst [vmem:[%s169 + $0x68] sm:$0xff] %v196
                %v198 = vld [vmem:[%s168 + $0x70] sm:$0xff]
                %199 = vst [vmem:[%s169 + $0x70] sm:$0xff] %v198
                %v200 = vld [vmem:[%s168 + $0x78] sm:$0xff]
                %201 = vst [vmem:[%s169 + $0x78] sm:$0xff] %v200
                %v202 = vld [vmem:[%s168 + $0x80] sm:$0xff]
                %203 = vst [vmem:[%s169 + $0x80] sm:$0xff] %v202
                %v204 = vld [vmem:[%s168 + $0x88] sm:$0xff]
                %205 = vst [vmem:[%s169 + $0x88] sm:$0xff] %v204
                %v206 = vld [vmem:[%s168 + $0x90] sm:$0xff]
                %207 = vst [vmem:[%s169 + $0x90] sm:$0xff] %v206
                %v208 = vld [vmem:[%s168 + $0x98] sm:$0xff]
                %209 = vst [vmem:[%s169 + $0x98] sm:$0xff] %v208
                %v210 = vld [vmem:[%s168 + $0xa0] sm:$0xff]
                %211 = vst [vmem:[%s169 + $0xa0] sm:$0xff] %v210
                %v212 = vld [vmem:[%s168 + $0xa8] sm:$0xff]
                %213 = vst [vmem:[%s169 + $0xa8] sm:$0xff] %v212
                %v214 = vld [vmem:[%s168 + $0xb0] sm:$0xff]
                %215 = vst [vmem:[%s169 + $0xb0] sm:$0xff] %v214
                %v216 = vld [vmem:[%s168 + $0xb8] sm:$0xff]
                %217 = vst [vmem:[%s169 + $0xb8] sm:$0xff] %v216
                %v218 = vld [vmem:[%s168 + $0xc0] sm:$0xff]
                %219 = vst [vmem:[%s169 + $0xc0] sm:$0xff] %v218
                %v220 = vld [vmem:[%s168 + $0xc8] sm:$0xff]
                %221 = vst [vmem:[%s169 + $0xc8] sm:$0xff] %v220
                %v222 = vld [vmem:[%s168 + $0xd0] sm:$0xff]
                %223 = vst [vmem:[%s169 + $0xd0] sm:$0xff] %v222
                %v224 = vld [vmem:[%s168 + $0xd8] sm:$0xff]
                %225 = vst [vmem:[%s169 + $0xd8] sm:$0xff] %v224
                %v226 = vld [vmem:[%s168 + $0xe0] sm:$0xff]
                %227 = vst [vmem:[%s169 + $0xe0] sm:$0xff] %v226
                %v228 = vld [vmem:[%s168 + $0xe8] sm:$0xff]
                %229 = vst [vmem:[%s169 + $0xe8] sm:$0xff] %v228
                %v230 = vld [vmem:[%s168 + $0xf0] sm:$0xff]
                %231 = vst [vmem:[%s169 + $0xf0] sm:$0xff] %v230
                %v232 = vld [vmem:[%s168 + $0xf8] sm:$0xff]
                %233 = vst [vmem:[%s169 + $0xf8] sm:$0xff] %v232
                %v234 = vld [vmem:[%s168 + $0x100] sm:$0xff]
                %235 = vst [vmem:[%s169 + $0x100] sm:$0xff] %v234
                %v236 = vld [vmem:[%s168 + $0x108] sm:$0xff]
                %237 = vst [vmem:[%s169 + $0x108] sm:$0xff] %v236
                %v238 = vld [vmem:[%s168 + $0x110] sm:$0xff]
                %239 = vst [vmem:[%s169 + $0x110] sm:$0xff] %v238
                %v240 = vld [vmem:[%s168 + $0x118] sm:$0xff]
                %241 = vst [vmem:[%s169 + $0x118] sm:$0xff] %v240
                %v242 = vld [vmem:[%s168 + $0x120] sm:$0xff]
                %243 = vst [vmem:[%s169 + $0x120] sm:$0xff] %v242
                %v244 = vld [vmem:[%s168 + $0x128] sm:$0xff]
                %245 = vst [vmem:[%s169 + $0x128] sm:$0xff] %v244
                %v246 = vld [vmem:[%s168 + $0x130] sm:$0xff]
                %247 = vst [vmem:[%s169 + $0x130] sm:$0xff] %v246
                %v248 = vld [vmem:[%s168 + $0x138] sm:$0xff]
                %249 = vst [vmem:[%s169 + $0x138] sm:$0xff] %v248
                %v250 = vld [vmem:[%s168 + $0x140] sm:$0xff]
                %251 = vst [vmem:[%s169 + $0x140] sm:$0xff] %v250
                %v252 = vld [vmem:[%s168 + $0x148] sm:$0xff]
                %253 = vst [vmem:[%s169 + $0x148] sm:$0xff] %v252
                %v254 = vld [vmem:[%s168 + $0x150] sm:$0xff]
                %255 = vst [vmem:[%s169 + $0x150] sm:$0xff] %v254
                %v256 = vld [vmem:[%s168 + $0x158] sm:$0xff]
                %257 = vst [vmem:[%s169 + $0x158] sm:$0xff] %v256
                %v258 = vld [vmem:[%s168 + $0x160] sm:$0xff]
                %259 = vst [vmem:[%s169 + $0x160] sm:$0xff] %v258
                %v260 = vld [vmem:[%s168 + $0x168] sm:$0xff]
                %261 = vst [vmem:[%s169 + $0x168] sm:$0xff] %v260
                %v262 = vld [vmem:[%s168 + $0x170] sm:$0xff]
                %263 = vst [vmem:[%s169 + $0x170] sm:$0xff] %v262
                %v264 = vld [vmem:[%s168 + $0x178] sm:$0xff]
                %265 = vst [vmem:[%s169 + $0x178] sm:$0xff] %v264
                %v266 = vld [vmem:[%s168 + $0x180] sm:$0xff]
                %267 = vst [vmem:[%s169 + $0x180] sm:$0xff] %v266
                %v268 = vld [vmem:[%s168 + $0x188] sm:$0xff]
                %269 = vst [vmem:[%s169 + $0x188] sm:$0xff] %v268
                %v270 = vld [vmem:[%s168 + $0x190] sm:$0xff]
                %271 = vst [vmem:[%s169 + $0x190] sm:$0xff] %v270
                %v272 = vld [vmem:[%s168 + $0x198] sm:$0xff]
                %273 = vst [vmem:[%s169 + $0x198] sm:$0xff] %v272
                %v274 = vld [vmem:[%s168 + $0x1a0] sm:$0xff]
                %275 = vst [vmem:[%s169 + $0x1a0] sm:$0xff] %v274
                %v276 = vld [vmem:[%s168 + $0x1a8] sm:$0xff]
                %277 = vst [vmem:[%s169 + $0x1a8] sm:$0xff] %v276
                %v278 = vld [vmem:[%s168 + $0x1b0] sm:$0xff]
                %279 = vst [vmem:[%s169 + $0x1b0] sm:$0xff] %v278
                %v280 = vld [vmem:[%s168 + $0x1b8] sm:$0xff]
                %281 = vst [vmem:[%s169 + $0x1b8] sm:$0xff] %v280
                %v282 = vld [vmem:[%s168 + $0x1c0] sm:$0xff]
                %283 = vst [vmem:[%s169 + $0x1c0] sm:$0xff] %v282
                %v284 = vld [vmem:[%s168 + $0x1c8] sm:$0xff]
                %285 = vst [vmem:[%s169 + $0x1c8] sm:$0xff] %v284
                %v286 = vld [vmem:[%s168 + $0x1d0] sm:$0xff]
                %287 = vst [vmem:[%s169 + $0x1d0] sm:$0xff] %v286
                %v288 = vld [vmem:[%s168 + $0x1d8] sm:$0xff]
                %289 = vst [vmem:[%s169 + $0x1d8] sm:$0xff] %v288
                %v290 = vld [vmem:[%s168 + $0x1e0] sm:$0xff]
                %291 = vst [vmem:[%s169 + $0x1e0] sm:$0xff] %v290
                %v292 = vld [vmem:[%s168 + $0x1e8] sm:$0xff]
                %293 = vst [vmem:[%s169 + $0x1e8] sm:$0xff] %v292
                %v294 = vld [vmem:[%s168 + $0x1f0] sm:$0xff]
                %295 = vst [vmem:[%s169 + $0x1f0] sm:$0xff] %v294
                %v296 = vld [vmem:[%s168 + $0x1f8] sm:$0xff]
                %297 = vst [vmem:[%s169 + $0x1f8] sm:$0xff] %v296
                %v298 = vld [vmem:[%s168 + $0x200] sm:$0xff]
                %299 = vst [vmem:[%s169 + $0x200] sm:$0xff] %v298
                %v300 = vld [vmem:[%s168 + $0x208] sm:$0xff]
                %301 = vst [vmem:[%s169 + $0x208] sm:$0xff] %v300
                %v302 = vld [vmem:[%s168 + $0x210] sm:$0xff]
                %303 = vst [vmem:[%s169 + $0x210] sm:$0xff] %v302
                %v304 = vld [vmem:[%s168 + $0x218] sm:$0xff]
                %305 = vst [vmem:[%s169 + $0x218] sm:$0xff] %v304
                %v306 = vld [vmem:[%s168 + $0x220] sm:$0xff]
                %307 = vst [vmem:[%s169 + $0x220] sm:$0xff] %v306
                %v308 = vld [vmem:[%s168 + $0x228] sm:$0xff]
                %309 = vst [vmem:[%s169 + $0x228] sm:$0xff] %v308
                %v310 = vld [vmem:[%s168 + $0x230] sm:$0xff]
                %311 = vst [vmem:[%s169 + $0x230] sm:$0xff] %v310
                %v312 = vld [vmem:[%s168 + $0x238] sm:$0xff]
                %313 = vst [vmem:[%s169 + $0x238] sm:$0xff] %v312
                %v314 = vld [vmem:[%s168 + $0x240] sm:$0xff]
                %315 = vst [vmem:[%s169 + $0x240] sm:$0xff] %v314
                %v316 = vld [vmem:[%s168 + $0x248] sm:$0xff]
                %317 = vst [vmem:[%s169 + $0x248] sm:$0xff] %v316
                %v318 = vld [vmem:[%s168 + $0x250] sm:$0xff]
                %319 = vst [vmem:[%s169 + $0x250] sm:$0xff] %v318
                %v320 = vld [vmem:[%s168 + $0x258] sm:$0xff]
                %321 = vst [vmem:[%s169 + $0x258] sm:$0xff] %v320
                %v322 = vld [vmem:[%s168 + $0x260] sm:$0xff]
                %323 = vst [vmem:[%s169 + $0x260] sm:$0xff] %v322
                %v324 = vld [vmem:[%s168 + $0x268] sm:$0xff]
                %325 = vst [vmem:[%s169 + $0x268] sm:$0xff] %v324
                %v326 = vld [vmem:[%s168 + $0x270] sm:$0xff]
                %327 = vst [vmem:[%s169 + $0x270] sm:$0xff] %v326
                %v328 = vld [vmem:[%s168 + $0x278] sm:$0xff]
                %329 = vst [vmem:[%s169 + $0x278] sm:$0xff] %v328
                %v330 = vld [vmem:[%s168 + $0x280] sm:$0xff]
                %331 = vst [vmem:[%s169 + $0x280] sm:$0xff] %v330
                %v332 = vld [vmem:[%s168 + $0x288] sm:$0xff]
                %333 = vst [vmem:[%s169 + $0x288] sm:$0xff] %v332
                %v334 = vld [vmem:[%s168 + $0x290] sm:$0xff]
                %335 = vst [vmem:[%s169 + $0x290] sm:$0xff] %v334
                %v336 = vld [vmem:[%s168 + $0x298] sm:$0xff]
                %337 = vst [vmem:[%s169 + $0x298] sm:$0xff] %v336
                %v338 = vld [vmem:[%s168 + $0x2a0] sm:$0xff]
                %339 = vst [vmem:[%s169 + $0x2a0] sm:$0xff] %v338
                %v340 = vld [vmem:[%s168 + $0x2a8] sm:$0xff]
                %341 = vst [vmem:[%s169 + $0x2a8] sm:$0xff] %v340
                %v342 = vld [vmem:[%s168 + $0x2b0] sm:$0xff]
                %343 = vst [vmem:[%s169 + $0x2b0] sm:$0xff] %v342
                %v344 = vld [vmem:[%s168 + $0x2b8] sm:$0xff]
                %345 = vst [vmem:[%s169 + $0x2b8] sm:$0xff] %v344
                %v346 = vld [vmem:[%s168 + $0x2c0] sm:$0xff]
                %347 = vst [vmem:[%s169 + $0x2c0] sm:$0xff] %v346
                %v348 = vld [vmem:[%s168 + $0x2c8] sm:$0xff]
                %349 = vst [vmem:[%s169 + $0x2c8] sm:$0xff] %v348
                %v350 = vld [vmem:[%s168 + $0x2d0] sm:$0xff]
                %351 = vst [vmem:[%s169 + $0x2d0] sm:$0xff] %v350
                %v352 = vld [vmem:[%s168 + $0x2d8] sm:$0xff]
                %353 = vst [vmem:[%s169 + $0x2d8] sm:$0xff] %v352
                %v354 = vld [vmem:[%s168 + $0x2e0] sm:$0xff]
                %355 = vst [vmem:[%s169 + $0x2e0] sm:$0xff] %v354
                %v356 = vld [vmem:[%s168 + $0x2e8] sm:$0xff]
                %357 = vst [vmem:[%s169 + $0x2e8] sm:$0xff] %v356
                %v358 = vld [vmem:[%s168 + $0x2f0] sm:$0xff]
                %359 = vst [vmem:[%s169 + $0x2f0] sm:$0xff] %v358
                %v360 = vld [vmem:[%s168 + $0x2f8] sm:$0xff]
                %361 = vst [vmem:[%s169 + $0x2f8] sm:$0xff] %v360
                %v362 = vld [vmem:[%s168 + $0x300] sm:$0xff]
                %363 = vst [vmem:[%s169 + $0x300] sm:$0xff] %v362
                %v364 = vld [vmem:[%s168 + $0x308] sm:$0xff]
                %365 = vst [vmem:[%s169 + $0x308] sm:$0xff] %v364
                %v366 = vld [vmem:[%s168 + $0x310] sm:$0xff]
                %367 = vst [vmem:[%s169 + $0x310] sm:$0xff] %v366
                %v368 = vld [vmem:[%s168 + $0x318] sm:$0xff]
                %369 = vst [vmem:[%s169 + $0x318] sm:$0xff] %v368
                %v370 = vld [vmem:[%s168 + $0x320] sm:$0xff]
                %371 = vst [vmem:[%s169 + $0x320] sm:$0xff] %v370
                %v372 = vld [vmem:[%s168 + $0x328] sm:$0xff]
                %373 = vst [vmem:[%s169 + $0x328] sm:$0xff] %v372
                %v374 = vld [vmem:[%s168 + $0x330] sm:$0xff]
                %375 = vst [vmem:[%s169 + $0x330] sm:$0xff] %v374
                %v376 = vld [vmem:[%s168 + $0x338] sm:$0xff]
                %377 = vst [vmem:[%s169 + $0x338] sm:$0xff] %v376
                %v378 = vld [vmem:[%s168 + $0x340] sm:$0xff]
                %379 = vst [vmem:[%s169 + $0x340] sm:$0xff] %v378
                %v380 = vld [vmem:[%s168 + $0x348] sm:$0xff]
                %381 = vst [vmem:[%s169 + $0x348] sm:$0xff] %v380
                %v382 = vld [vmem:[%s168 + $0x350] sm:$0xff]
                %383 = vst [vmem:[%s169 + $0x350] sm:$0xff] %v382
                %v384 = vld [vmem:[%s168 + $0x358] sm:$0xff]
                %385 = vst [vmem:[%s169 + $0x358] sm:$0xff] %v384
                %v386 = vld [vmem:[%s168 + $0x360] sm:$0xff]
                %387 = vst [vmem:[%s169 + $0x360] sm:$0xff] %v386
                %v388 = vld [vmem:[%s168 + $0x368] sm:$0xff]
                %389 = vst [vmem:[%s169 + $0x368] sm:$0xff] %v388
                %v390 = vld [vmem:[%s168 + $0x370] sm:$0xff]
                %391 = vst [vmem:[%s169 + $0x370] sm:$0xff] %v390
                %v392 = vld [vmem:[%s168 + $0x378] sm:$0xff]
                %393 = vst [vmem:[%s169 + $0x378] sm:$0xff] %v392
                %v394 = vld [vmem:[%s168 + $0x380] sm:$0xff]
                %395 = vst [vmem:[%s169 + $0x380] sm:$0xff] %v394
                %v396 = vld [vmem:[%s168 + $0x388] sm:$0xff]
                %397 = vst [vmem:[%s169 + $0x388] sm:$0xff] %v396
                %v398 = vld [vmem:[%s168 + $0x390] sm:$0xff]
                %399 = vst [vmem:[%s169 + $0x390] sm:$0xff] %v398
                %v400 = vld [vmem:[%s168 + $0x398] sm:$0xff]
                %401 = vst [vmem:[%s169 + $0x398] sm:$0xff] %v400
                %v402 = vld [vmem:[%s168 + $0x3a0] sm:$0xff]
                %403 = vst [vmem:[%s169 + $0x3a0] sm:$0xff] %v402
                %v404 = vld [vmem:[%s168 + $0x3a8] sm:$0xff]
                %405 = vst [vmem:[%s169 + $0x3a8] sm:$0xff] %v404
                %v406 = vld [vmem:[%s168 + $0x3b0] sm:$0xff]
                %407 = vst [vmem:[%s169 + $0x3b0] sm:$0xff] %v406
                %v408 = vld [vmem:[%s168 + $0x3b8] sm:$0xff]
                %409 = vst [vmem:[%s169 + $0x3b8] sm:$0xff] %v408
                %v410 = vld [vmem:[%s168 + $0x3c0] sm:$0xff]
                %411 = vst [vmem:[%s169 + $0x3c0] sm:$0xff] %v410
                %v412 = vld [vmem:[%s168 + $0x3c8] sm:$0xff]
                %413 = vst [vmem:[%s169 + $0x3c8] sm:$0xff] %v412
                %v414 = vld [vmem:[%s168 + $0x3d0] sm:$0xff]
                %415 = vst [vmem:[%s169 + $0x3d0] sm:$0xff] %v414
                %v416 = vld [vmem:[%s168 + $0x3d8] sm:$0xff]
                %417 = vst [vmem:[%s169 + $0x3d8] sm:$0xff] %v416
                %v418 = vld [vmem:[%s168 + $0x3e0] sm:$0xff]
                %419 = vst [vmem:[%s169 + $0x3e0] sm:$0xff] %v418
                %v420 = vld [vmem:[%s168 + $0x3e8] sm:$0xff]
                %421 = vst [vmem:[%s169 + $0x3e8] sm:$0xff] %v420
                %v422 = vld [vmem:[%s168 + $0x3f0] sm:$0xff]
                %423 = vst [vmem:[%s169 + $0x3f0] sm:$0xff] %v422
                %v424 = vld [vmem:[%s168 + $0x3f8] sm:$0xff]
                %425 = vst [vmem:[%s169 + $0x3f8] sm:$0xff] %v424
                %v426 = vld [vmem:[%s168 + $0x400] sm:$0xff]
                %427 = vst [vmem:[%s169 + $0x400] sm:$0xff] %v426
                %v428 = vld [vmem:[%s168 + $0x408] sm:$0xff]
                %429 = vst [vmem:[%s169 + $0x408] sm:$0xff] %v428
                %v430 = vld [vmem:[%s168 + $0x410] sm:$0xff]
                %431 = vst [vmem:[%s169 + $0x410] sm:$0xff] %v430
                %v432 = vld [vmem:[%s168 + $0x418] sm:$0xff]
                %433 = vst [vmem:[%s169 + $0x418] sm:$0xff] %v432
                %v434 = vld [vmem:[%s168 + $0x420] sm:$0xff]
                %435 = vst [vmem:[%s169 + $0x420] sm:$0xff] %v434
                %v436 = vld [vmem:[%s168 + $0x428] sm:$0xff]
                %437 = vst [vmem:[%s169 + $0x428] sm:$0xff] %v436
                %v438 = vld [vmem:[%s168 + $0x430] sm:$0xff]
                %439 = vst [vmem:[%s169 + $0x430] sm:$0xff] %v438
                %v440 = vld [vmem:[%s168 + $0x10e0] sm:$0xff]
                %441 = vst [vmem:[%s169 + $0x438] sm:$0xff] %v440
                %v442 = vld [vmem:[%s168 + $0x10e8] sm:$0xff]
                %443 = vst [vmem:[%s169 + $0x440] sm:$0xff] %v442
                %v444 = vld [vmem:[%s168 + $0x10f0] sm:$0xff]
                %445 = vst [vmem:[%s169 + $0x448] sm:$0xff] %v444
                %v446 = vld [vmem:[%s168 + $0x10f8] sm:$0xff]
                %447 = vst [vmem:[%s169 + $0x450] sm:$0xff] %v446
                %v448 = vld [vmem:[%s168 + $0x1100] sm:$0xff]
                %449 = vst [vmem:[%s169 + $0x458] sm:$0xff] %v448
                %v450 = vld [vmem:[%s168 + $0x1108] sm:$0xff]
                %451 = vst [vmem:[%s169 + $0x460] sm:$0xff] %v450
                %v452 = vld [vmem:[%s168 + $0x1110] sm:$0xff]
                %453 = vst [vmem:[%s169 + $0x468] sm:$0xff] %v452
                %v454 = vld [vmem:[%s168 + $0x1118] sm:$0xff]
                %455 = vst [vmem:[%s169 + $0x470] sm:$0xff] %v454
                %v456 = vld [vmem:[%s168 + $0x1120] sm:$0xff]
                %457 = vst [vmem:[%s169 + $0x478] sm:$0xff] %v456
                %v458 = vld [vmem:[%s168 + $0x1128] sm:$0xff]
                %459 = vst [vmem:[%s169 + $0x480] sm:$0xff] %v458
                %v460 = vld [vmem:[%s168 + $0x1130] sm:$0xff]
                %461 = vst [vmem:[%s169 + $0x488] sm:$0xff] %v460
                %v462 = vld [vmem:[%s168 + $0x1138] sm:$0xff]
                %463 = vst [vmem:[%s169 + $0x490] sm:$0xff] %v462
                %v464 = vld [vmem:[%s168 + $0x1140] sm:$0xff]
                %465 = vst [vmem:[%s169 + $0x498] sm:$0xff] %v464
                %v466 = vld [vmem:[%s168 + $0x1148] sm:$0xff]
                %467 = vst [vmem:[%s169 + $0x4a0] sm:$0xff] %v466
                %v468 = vld [vmem:[%s168 + $0x1150] sm:$0xff]
                %469 = vst [vmem:[%s169 + $0x4a8] sm:$0xff] %v468
                %v470 = vld [vmem:[%s168 + $0x1158] sm:$0xff]
                %471 = vst [vmem:[%s169 + $0x4b0] sm:$0xff] %v470
                %v472 = vld [vmem:[%s168 + $0x1160] sm:$0xff]
                %473 = vst [vmem:[%s169 + $0x4b8] sm:$0xff] %v472
                %v474 = vld [vmem:[%s168 + $0x1168] sm:$0xff]
                %475 = vst [vmem:[%s169 + $0x4c0] sm:$0xff] %v474
                %v476 = vld [vmem:[%s168 + $0x1170] sm:$0xff]
                %477 = vst [vmem:[%s169 + $0x4c8] sm:$0xff] %v476
                %v478 = vld [vmem:[%s168 + $0x1178] sm:$0xff]
                %479 = vst [vmem:[%s169 + $0x4d0] sm:$0xff] %v478
                %v480 = vld [vmem:[%s168 + $0x1180] sm:$0xff]
                %481 = vst [vmem:[%s169 + $0x4d8] sm:$0xff] %v480
                %v482 = vld [vmem:[%s168 + $0x1188] sm:$0xff]
                %483 = vst [vmem:[%s169 + $0x4e0] sm:$0xff] %v482
                %v484 = vld [vmem:[%s168 + $0x1190] sm:$0xff]
                %485 = vst [vmem:[%s169 + $0x4e8] sm:$0xff] %v484
                %v486 = vld [vmem:[%s168 + $0x1198] sm:$0xff]
                %487 = vst [vmem:[%s169 + $0x4f0] sm:$0xff] %v486
                %v488 = vld [vmem:[%s168 + $0x11a0] sm:$0xff]
                %489 = vst [vmem:[%s169 + $0x4f8] sm:$0xff] %v488
                %v490 = vld [vmem:[%s168 + $0x11a8] sm:$0xff]
                %491 = vst [vmem:[%s169 + $0x500] sm:$0xff] %v490
                %v492 = vld [vmem:[%s168 + $0x11b0] sm:$0xff]
                %493 = vst [vmem:[%s169 + $0x508] sm:$0xff] %v492
                %v494 = vld [vmem:[%s168 + $0x11b8] sm:$0xff]
                %495 = vst [vmem:[%s169 + $0x510] sm:$0xff] %v494
                %v496 = vld [vmem:[%s168 + $0x11c0] sm:$0xff]
                %497 = vst [vmem:[%s169 + $0x518] sm:$0xff] %v496
                %v498 = vld [vmem:[%s168 + $0x11c8] sm:$0xff]
                %499 = vst [vmem:[%s169 + $0x520] sm:$0xff] %v498
                %v500 = vld [vmem:[%s168 + $0x11d0] sm:$0xff]
                %501 = vst [vmem:[%s169 + $0x528] sm:$0xff] %v500
                %v502 = vld [vmem:[%s168 + $0x11d8] sm:$0xff]
                %503 = vst [vmem:[%s169 + $0x530] sm:$0xff] %v502
                %v504 = vld [vmem:[%s168 + $0x11e0] sm:$0xff]
                %505 = vst [vmem:[%s169 + $0x538] sm:$0xff] %v504
                %v506 = vld [vmem:[%s168 + $0x11e8] sm:$0xff]
                %507 = vst [vmem:[%s169 + $0x540] sm:$0xff] %v506
                %v508 = vld [vmem:[%s168 + $0x11f0] sm:$0xff]
                %509 = vst [vmem:[%s169 + $0x548] sm:$0xff] %v508
                %v510 = vld [vmem:[%s168 + $0x11f8] sm:$0xff]
                %511 = vst [vmem:[%s169 + $0x550] sm:$0xff] %v510
                %v512 = vld [vmem:[%s168 + $0x1200] sm:$0xff]
                %513 = vst [vmem:[%s169 + $0x558] sm:$0xff] %v512
                %v514 = vld [vmem:[%s168 + $0x1208] sm:$0xff]
                %515 = vst [vmem:[%s169 + $0x560] sm:$0xff] %v514
                %v516 = vld [vmem:[%s168 + $0x1210] sm:$0xff]
                %517 = vst [vmem:[%s169 + $0x568] sm:$0xff] %v516
                %v518 = vld [vmem:[%s168 + $0x1218] sm:$0xff]
                %519 = vst [vmem:[%s169 + $0x570] sm:$0xff] %v518
                %v520 = vld [vmem:[%s168 + $0x1220] sm:$0xff]
                %521 = vst [vmem:[%s169 + $0x578] sm:$0xff] %v520
                %v522 = vld [vmem:[%s168 + $0x1228] sm:$0xff]
                %523 = vst [vmem:[%s169 + $0x580] sm:$0xff] %v522
                %v524 = vld [vmem:[%s168 + $0x1230] sm:$0xff]
                %525 = vst [vmem:[%s169 + $0x588] sm:$0xff] %v524
                %v526 = vld [vmem:[%s168 + $0x1238] sm:$0xff]
                %527 = vst [vmem:[%s169 + $0x590] sm:$0xff] %v526
                %v528 = vld [vmem:[%s168 + $0x1240] sm:$0xff]
                %529 = vst [vmem:[%s169 + $0x598] sm:$0xff] %v528
                %v530 = vld [vmem:[%s168 + $0x1248] sm:$0xff]
                %531 = vst [vmem:[%s169 + $0x5a0] sm:$0xff] %v530
                %v532 = vld [vmem:[%s168 + $0x1250] sm:$0xff]
                %533 = vst [vmem:[%s169 + $0x5a8] sm:$0xff] %v532
                %v534 = vld [vmem:[%s168 + $0x1258] sm:$0xff]
                %535 = vst [vmem:[%s169 + $0x5b0] sm:$0xff] %v534
                %v536 = vld [vmem:[%s168 + $0x1260] sm:$0xff]
                %537 = vst [vmem:[%s169 + $0x5b8] sm:$0xff] %v536
                %v538 = vld [vmem:[%s168 + $0x1268] sm:$0xff]
                %539 = vst [vmem:[%s169 + $0x5c0] sm:$0xff] %v538
                %v540 = vld [vmem:[%s168 + $0x1270] sm:$0xff]
                %541 = vst [vmem:[%s169 + $0x5c8] sm:$0xff] %v540
                %v542 = vld [vmem:[%s168 + $0x1278] sm:$0xff]
                %543 = vst [vmem:[%s169 + $0x5d0] sm:$0xff] %v542
                %v544 = vld [vmem:[%s168 + $0x1280] sm:$0xff]
                %545 = vst [vmem:[%s169 + $0x5d8] sm:$0xff] %v544
                %v546 = vld [vmem:[%s168 + $0x1288] sm:$0xff]
                %547 = vst [vmem:[%s169 + $0x5e0] sm:$0xff] %v546
                %v548 = vld [vmem:[%s168 + $0x1290] sm:$0xff]
                %549 = vst [vmem:[%s169 + $0x5e8] sm:$0xff] %v548
                %v550 = vld [vmem:[%s168 + $0x1298] sm:$0xff]
                %551 = vst [vmem:[%s169 + $0x5f0] sm:$0xff] %v550
                %v552 = vld [vmem:[%s168 + $0x12a0] sm:$0xff]
                %553 = vst [vmem:[%s169 + $0x5f8] sm:$0xff] %v552
                %v554 = vld [vmem:[%s168 + $0x12a8] sm:$0xff]
                %555 = vst [vmem:[%s169 + $0x600] sm:$0xff] %v554
                %v556 = vld [vmem:[%s168 + $0x12b0] sm:$0xff]
                %557 = vst [vmem:[%s169 + $0x608] sm:$0xff] %v556
                %v558 = vld [vmem:[%s168 + $0x12b8] sm:$0xff]
                %559 = vst [vmem:[%s169 + $0x610] sm:$0xff] %v558
                %v560 = vld [vmem:[%s168 + $0x12c0] sm:$0xff]
                %561 = vst [vmem:[%s169 + $0x618] sm:$0xff] %v560
                %v562 = vld [vmem:[%s168 + $0x12c8] sm:$0xff]
                %563 = vst [vmem:[%s169 + $0x620] sm:$0xff] %v562
                %v564 = vld [vmem:[%s168 + $0x12d0] sm:$0xff]
                %565 = vst [vmem:[%s169 + $0x628] sm:$0xff] %v564
                %v566 = vld [vmem:[%s168 + $0x12d8] sm:$0xff]
                %567 = vst [vmem:[%s169 + $0x630] sm:$0xff] %v566
                %v568 = vld [vmem:[%s168 + $0x12e0] sm:$0xff]
                %569 = vst [vmem:[%s169 + $0x638] sm:$0xff] %v568
                %v570 = vld [vmem:[%s168 + $0x12e8] sm:$0xff]
                %571 = vst [vmem:[%s169 + $0x640] sm:$0xff] %v570
                %v572 = vld [vmem:[%s168 + $0x12f0] sm:$0xff]
                %573 = vst [vmem:[%s169 + $0x648] sm:$0xff] %v572
                %v574 = vld [vmem:[%s168 + $0x12f8] sm:$0xff]
                %575 = vst [vmem:[%s169 + $0x650] sm:$0xff] %v574
                %v576 = vld [vmem:[%s168 + $0x1300] sm:$0xff]
                %577 = vst [vmem:[%s169 + $0x658] sm:$0xff] %v576
                %v578 = vld [vmem:[%s168 + $0x1308] sm:$0xff]
                %579 = vst [vmem:[%s169 + $0x660] sm:$0xff] %v578
                %v580 = vld [vmem:[%s168 + $0x1310] sm:$0xff]
                %581 = vst [vmem:[%s169 + $0x668] sm:$0xff] %v580
                %v582 = vld [vmem:[%s168 + $0x1318] sm:$0xff]
                %583 = vst [vmem:[%s169 + $0x670] sm:$0xff] %v582
                %v584 = vld [vmem:[%s168 + $0x1320] sm:$0xff]
                %585 = vst [vmem:[%s169 + $0x678] sm:$0xff] %v584
                %v586 = vld [vmem:[%s168 + $0x1328] sm:$0xff]
                %587 = vst [vmem:[%s169 + $0x680] sm:$0xff] %v586
                %v588 = vld [vmem:[%s168 + $0x1330] sm:$0xff]
                %589 = vst [vmem:[%s169 + $0x688] sm:$0xff] %v588
                %v590 = vld [vmem:[%s168 + $0x1338] sm:$0xff]
                %591 = vst [vmem:[%s169 + $0x690] sm:$0xff] %v590
                %v592 = vld [vmem:[%s168 + $0x1340] sm:$0xff]
                %593 = vst [vmem:[%s169 + $0x698] sm:$0xff] %v592
                %v594 = vld [vmem:[%s168 + $0x1348] sm:$0xff]
                %595 = vst [vmem:[%s169 + $0x6a0] sm:$0xff] %v594
                %v596 = vld [vmem:[%s168 + $0x1350] sm:$0xff]
                %597 = vst [vmem:[%s169 + $0x6a8] sm:$0xff] %v596
                %v598 = vld [vmem:[%s168 + $0x1358] sm:$0xff]
                %599 = vst [vmem:[%s169 + $0x6b0] sm:$0xff] %v598
                %v600 = vld [vmem:[%s168 + $0x1360] sm:$0xff]
                %601 = vst [vmem:[%s169 + $0x6b8] sm:$0xff] %v600
                %v602 = vld [vmem:[%s168 + $0x1368] sm:$0xff]
                %603 = vst [vmem:[%s169 + $0x6c0] sm:$0xff] %v602
                %v604 = vld [vmem:[%s168 + $0x1370] sm:$0xff]
                %605 = vst [vmem:[%s169 + $0x6c8] sm:$0xff] %v604
                %v606 = vld [vmem:[%s168 + $0x1378] sm:$0xff]
                %607 = vst [vmem:[%s169 + $0x6d0] sm:$0xff] %v606
                %v608 = vld [vmem:[%s168 + $0x1380] sm:$0xff]
                %609 = vst [vmem:[%s169 + $0x6d8] sm:$0xff] %v608
                %v610 = vld [vmem:[%s168 + $0x1388] sm:$0xff]
                %611 = vst [vmem:[%s169 + $0x6e0] sm:$0xff] %v610
                %v612 = vld [vmem:[%s168 + $0x1390] sm:$0xff]
                %613 = vst [vmem:[%s169 + $0x6e8] sm:$0xff] %v612
                %v614 = vld [vmem:[%s168 + $0x1398] sm:$0xff]
                %615 = vst [vmem:[%s169 + $0x6f0] sm:$0xff] %v614
                %v616 = vld [vmem:[%s168 + $0x13a0] sm:$0xff]
                %617 = vst [vmem:[%s169 + $0x6f8] sm:$0xff] %v616
                %v618 = vld [vmem:[%s168 + $0x13a8] sm:$0xff]
                %619 = vst [vmem:[%s169 + $0x700] sm:$0xff] %v618
                %v620 = vld [vmem:[%s168 + $0x13b0] sm:$0xff]
                %621 = vst [vmem:[%s169 + $0x708] sm:$0xff] %v620
                %v622 = vld [vmem:[%s168 + $0x13b8] sm:$0xff]
                %623 = vst [vmem:[%s169 + $0x710] sm:$0xff] %v622
                %v624 = vld [vmem:[%s168 + $0x13c0] sm:$0xff]
                %625 = vst [vmem:[%s169 + $0x718] sm:$0xff] %v624
                %v626 = vld [vmem:[%s168 + $0x13c8] sm:$0xff]
                %627 = vst [vmem:[%s169 + $0x720] sm:$0xff] %v626
                %v628 = vld [vmem:[%s168 + $0x13d0] sm:$0xff]
                %629 = vst [vmem:[%s169 + $0x728] sm:$0xff] %v628
                %v630 = vld [vmem:[%s168 + $0x13d8] sm:$0xff]
                %631 = vst [vmem:[%s169 + $0x730] sm:$0xff] %v630
                %v632 = vld [vmem:[%s168 + $0x13e0] sm:$0xff]
                %633 = vst [vmem:[%s169 + $0x738] sm:$0xff] %v632
                %v634 = vld [vmem:[%s168 + $0x13e8] sm:$0xff]
                %635 = vst [vmem:[%s169 + $0x740] sm:$0xff] %v634
                %v636 = vld [vmem:[%s168 + $0x13f0] sm:$0xff]
                %637 = vst [vmem:[%s169 + $0x748] sm:$0xff] %v636
                %v638 = vld [vmem:[%s168 + $0x13f8] sm:$0xff]
                %639 = vst [vmem:[%s169 + $0x750] sm:$0xff] %v638
                %v640 = vld [vmem:[%s168 + $0x1400] sm:$0xff]
                %641 = vst [vmem:[%s169 + $0x758] sm:$0xff] %v640
                %v642 = vld [vmem:[%s168 + $0x1408] sm:$0xff]
                %643 = vst [vmem:[%s169 + $0x760] sm:$0xff] %v642
                %v644 = vld [vmem:[%s168 + $0x1410] sm:$0xff]
                %645 = vst [vmem:[%s169 + $0x768] sm:$0xff] %v644
                %v646 = vld [vmem:[%s168 + $0x1418] sm:$0xff]
                %647 = vst [vmem:[%s169 + $0x770] sm:$0xff] %v646
                %v648 = vld [vmem:[%s168 + $0x1420] sm:$0xff]
                %649 = vst [vmem:[%s169 + $0x778] sm:$0xff] %v648
                %v650 = vld [vmem:[%s168 + $0x1428] sm:$0xff]
                %651 = vst [vmem:[%s169 + $0x780] sm:$0xff] %v650
                %v652 = vld [vmem:[%s168 + $0x1430] sm:$0xff]
                %653 = vst [vmem:[%s169 + $0x788] sm:$0xff] %v652
                %v654 = vld [vmem:[%s168 + $0x1438] sm:$0xff]
                %655 = vst [vmem:[%s169 + $0x790] sm:$0xff] %v654
                %v656 = vld [vmem:[%s168 + $0x1440] sm:$0xff]
                %657 = vst [vmem:[%s169 + $0x798] sm:$0xff] %v656
                %v658 = vld [vmem:[%s168 + $0x1448] sm:$0xff]
                %659 = vst [vmem:[%s169 + $0x7a0] sm:$0xff] %v658
                %v660 = vld [vmem:[%s168 + $0x1450] sm:$0xff]
                %661 = vst [vmem:[%s169 + $0x7a8] sm:$0xff] %v660
                %v662 = vld [vmem:[%s168 + $0x1458] sm:$0xff]
                %663 = vst [vmem:[%s169 + $0x7b0] sm:$0xff] %v662
                %v664 = vld [vmem:[%s168 + $0x1460] sm:$0xff]
                %665 = vst [vmem:[%s169 + $0x7b8] sm:$0xff] %v664
                %v666 = vld [vmem:[%s168 + $0x1468] sm:$0xff]
                %667 = vst [vmem:[%s169 + $0x7c0] sm:$0xff] %v666
                %v668 = vld [vmem:[%s168 + $0x1470] sm:$0xff]
                %669 = vst [vmem:[%s169 + $0x7c8] sm:$0xff] %v668
                %v670 = vld [vmem:[%s168 + $0x1478] sm:$0xff]
                %671 = vst [vmem:[%s169 + $0x7d0] sm:$0xff] %v670
                %v672 = vld [vmem:[%s168 + $0x1480] sm:$0xff]
                %673 = vst [vmem:[%s169 + $0x7d8] sm:$0xff] %v672
                %v674 = vld [vmem:[%s168 + $0x1488] sm:$0xff]
                %675 = vst [vmem:[%s169 + $0x7e0] sm:$0xff] %v674
                %v676 = vld [vmem:[%s168 + $0x1490] sm:$0xff]
                %677 = vst [vmem:[%s169 + $0x7e8] sm:$0xff] %v676
                %v678 = vld [vmem:[%s168 + $0x1498] sm:$0xff]
                %679 = vst [vmem:[%s169 + $0x7f0] sm:$0xff] %v678
                %v680 = vld [vmem:[%s168 + $0x14a0] sm:$0xff]
                %681 = vst [vmem:[%s169 + $0x7f8] sm:$0xff] %v680
                %v682 = vld [vmem:[%s168 + $0x14a8] sm:$0xff]
                %683 = vst [vmem:[%s169 + $0x800] sm:$0xff] %v682
                %v684 = vld [vmem:[%s168 + $0x14b0] sm:$0xff]
                %685 = vst [vmem:[%s169 + $0x808] sm:$0xff] %v684
                %v686 = vld [vmem:[%s168 + $0x14b8] sm:$0xff]
                %687 = vst [vmem:[%s169 + $0x810] sm:$0xff] %v686
                %v688 = vld [vmem:[%s168 + $0x14c0] sm:$0xff]
                %689 = vst [vmem:[%s169 + $0x818] sm:$0xff] %v688
                %v690 = vld [vmem:[%s168 + $0x14c8] sm:$0xff]
                %691 = vst [vmem:[%s169 + $0x820] sm:$0xff] %v690
                %v692 = vld [vmem:[%s168 + $0x14d0] sm:$0xff]
                %693 = vst [vmem:[%s169 + $0x828] sm:$0xff] %v692
                %v694 = vld [vmem:[%s168 + $0x14d8] sm:$0xff]
                %695 = vst [vmem:[%s169 + $0x830] sm:$0xff] %v694
                %v696 = vld [vmem:[%s168 + $0x14e0] sm:$0xff]
                %697 = vst [vmem:[%s169 + $0x838] sm:$0xff] %v696
                %v698 = vld [vmem:[%s168 + $0x14e8] sm:$0xff]
                %699 = vst [vmem:[%s169 + $0x840] sm:$0xff] %v698
                %v700 = vld [vmem:[%s168 + $0x14f0] sm:$0xff]
                %701 = vst [vmem:[%s169 + $0x848] sm:$0xff] %v700
                %v702 = vld [vmem:[%s168 + $0x14f8] sm:$0xff]
                %703 = vst [vmem:[%s169 + $0x850] sm:$0xff] %v702
                %v704 = vld [vmem:[%s168 + $0x1500] sm:$0xff]
                %705 = vst [vmem:[%s169 + $0x858] sm:$0xff] %v704
                %v706 = vld [vmem:[%s168 + $0x1508] sm:$0xff]
                %707 = vst [vmem:[%s169 + $0x860] sm:$0xff] %v706
                %v708 = vld [vmem:[%s168 + $0x1510] sm:$0xff]
                %709 = vst [vmem:[%s169 + $0x868] sm:$0xff] %v708
              $region45: #{tpu_custom_call.1} parent=39 // loop_footer
                %s167 = sadd.s32 1, %s163
              $region46: #{tpu_custom_call.1} parent=39 // loop_footer_branch
                %162 = sbr.rel target = $region42
              $region47: #{tpu_custom_call.1} parent=39 // loop_exit
                _
            $region40: #{tpu_custom_call.1} parent=31 // pred_fallthru
              _
          $region32: #{tpu_custom_call.1} parent=27 // pred_fallthru
            _
          %1262 = vnop
        $region28: #{tpu_custom_call.1} parent=23 // pred_fallthru
          _
      $region24: #{tpu_custom_call.1} parent=5 // pred_fallthru
        _
      %p1263 = scmp.le.s32.totalorder 1, %s10
      %p1264 = scmp.lt.s32.totalorder %s10, 5
      %p1265 = pnand %p1263, %p1264
      %p1266 = pneg %p1265
      // Predicated region
      $region63: #{tpu_custom_call.1} parent=5 // pred_check
        _
      $region64: #{tpu_custom_call.1} parent=5 // pred_check_branch
        %1268 = sbr.rel (%p1265) target = $region66
      $region65: #{tpu_custom_call.1} parent=5 // pred_region
        %s1269 = ssub.s32 %s10, 1
        %s1270 = sand.u32 %s37, 1
        %s1271 = sand.u32 %s37, 1
        %s1272 = smul.addr %s1271, 2160
        %s1273 = scalar_lea.vmem [#allocation3], %s1272
        // Predicated region
        $region67: #{tpu_custom_call.1} parent=65 // pred_check
          %p1274 = pneg %p50
        $region68: #{tpu_custom_call.1} parent=65 // pred_check_branch
          %1276 = sbr.rel (%p1274) target = $region70
        $region69: #{tpu_custom_call.1} parent=65 // pred_region
          _
        $region70: #{tpu_custom_call.1} parent=65 // pred_fallthru
          _
        %s1277 = sand.u32 %s37, 1
        %s1278 = sand.u32 %s37, 1
        %s1279 = smul.addr %s1278, 2160
        %s1280 = scalar_lea.vmem [#allocation3], %s1279
        %p1281 = pneg %p50
        %p1282 = pneg %p47
        %p1283 = pneg %p71
        %p1284 = pneg %p68
        %p1285 = pneg %p92
        %p1286 = pneg %p89
        %p1287 = pneg %p118
        %p1288 = pneg %p115
        %s1289 = smul.u32 135, %s20
        %p1290 = scmp.eq.s32.totalorder %s20, 0
        // Predicated region
        $region71: #{tpu_custom_call.1} parent=65 // pred_check
          %p1291 = pneg %p1290
        $region72: #{tpu_custom_call.1} parent=65 // pred_check_branch
          %1293 = sbr.rel (%p1291) target = $region74
        $region73: #{tpu_custom_call.1} parent=65 // pred_region
          %1294 = vst [vmem:[#allocation2] sm:$0x3] 0.0
        $region74: #{tpu_custom_call.1} parent=65 // pred_fallthru
          _
        %v1295 = vld [vmem:[%s1273] sm:$0xff]
        %v1296 = vld [vmem:[%s1273 + $0x8] sm:$0xff]
        %v1297 = vld [vmem:[%s1273 + $0x10] sm:$0xff]
        %v1298 = vld [vmem:[%s1273 + $0x18] sm:$0xff]
        %v1299 = vld [vmem:[%s1273 + $0x20] sm:$0xff]
        %v1300 = vld [vmem:[%s1273 + $0x28] sm:$0xff]
        %v1301 = vld [vmem:[%s1273 + $0x30] sm:$0xff]
        %v1302 = vld [vmem:[%s1273 + $0x38] sm:$0xff]
        %v1303 = vld [vmem:[%s1273 + $0x40] sm:$0xff]
        %v1304 = vld [vmem:[%s1273 + $0x48] sm:$0xff]
        %v1305 = vld [vmem:[%s1273 + $0x50] sm:$0xff]
        %v1306 = vld [vmem:[%s1273 + $0x58] sm:$0xff]
        %v1307 = vld [vmem:[%s1273 + $0x60] sm:$0xff]
        %v1308 = vld [vmem:[%s1273 + $0x68] sm:$0xff]
        %v1309 = vld [vmem:[%s1273 + $0x70] sm:$0xff]
        %v1310 = vld [vmem:[%s1273 + $0x78] sm:$0xff]
        %v1311 = vld [vmem:[%s1273 + $0x80] sm:$0xff]
        %v1312 = vld [vmem:[%s1273 + $0x88] sm:$0xff]
        %v1313 = vld [vmem:[%s1273 + $0x90] sm:$0xff]
        %v1314 = vld [vmem:[%s1273 + $0x98] sm:$0xff]
        %v1315 = vld [vmem:[%s1273 + $0xa0] sm:$0xff]
        %v1316 = vld [vmem:[%s1273 + $0xa8] sm:$0xff]
        %v1317 = vld [vmem:[%s1273 + $0xb0] sm:$0xff]
        %v1318 = vld [vmem:[%s1273 + $0xb8] sm:$0xff]
        %v1319 = vld [vmem:[%s1273 + $0xc0] sm:$0xff]
        %v1320 = vld [vmem:[%s1273 + $0xc8] sm:$0xff]
        %v1321 = vld [vmem:[%s1273 + $0xd0] sm:$0xff]
        %v1322 = vld [vmem:[%s1273 + $0xd8] sm:$0xff]
        %v1323 = vld [vmem:[%s1273 + $0xe0] sm:$0xff]
        %v1324 = vld [vmem:[%s1273 + $0xe8] sm:$0xff]
        %v1325 = vld [vmem:[%s1273 + $0xf0] sm:$0xff]
        %v1326 = vld [vmem:[%s1273 + $0xf8] sm:$0xff]
        %v1327 = vld [vmem:[%s1273 + $0x100] sm:$0xff]
        %v1328 = vld [vmem:[%s1273 + $0x108] sm:$0xff]
        %v1329 = vld [vmem:[%s1273 + $0x110] sm:$0xff]
        %v1330 = vld [vmem:[%s1273 + $0x118] sm:$0xff]
        %v1331 = vld [vmem:[%s1273 + $0x120] sm:$0xff]
        %v1332 = vld [vmem:[%s1273 + $0x128] sm:$0xff]
        %v1333 = vld [vmem:[%s1273 + $0x130] sm:$0xff]
        %v1334 = vld [vmem:[%s1273 + $0x138] sm:$0xff]
        %v1335 = vld [vmem:[%s1273 + $0x140] sm:$0xff]
        %v1336 = vld [vmem:[%s1273 + $0x148] sm:$0xff]
        %v1337 = vld [vmem:[%s1273 + $0x150] sm:$0xff]
        %v1338 = vld [vmem:[%s1273 + $0x158] sm:$0xff]
        %v1339 = vld [vmem:[%s1273 + $0x160] sm:$0xff]
        %v1340 = vld [vmem:[%s1273 + $0x168] sm:$0xff]
        %v1341 = vld [vmem:[%s1273 + $0x170] sm:$0xff]
        %v1342 = vld [vmem:[%s1273 + $0x178] sm:$0xff]
        %v1343 = vld [vmem:[%s1273 + $0x180] sm:$0xff]
        %v1344 = vld [vmem:[%s1273 + $0x188] sm:$0xff]
        %v1345 = vld [vmem:[%s1273 + $0x190] sm:$0xff]
        %v1346 = vld [vmem:[%s1273 + $0x198] sm:$0xff]
        %v1347 = vld [vmem:[%s1273 + $0x1a0] sm:$0xff]
        %v1348 = vld [vmem:[%s1273 + $0x1a8] sm:$0xff]
        %v1349 = vld [vmem:[%s1273 + $0x1b0] sm:$0xff]
        %v1350 = vld [vmem:[%s1273 + $0x1b8] sm:$0xff]
        %v1351 = vld [vmem:[%s1273 + $0x1c0] sm:$0xff]
        %v1352 = vld [vmem:[%s1273 + $0x1c8] sm:$0xff]
        %v1353 = vld [vmem:[%s1273 + $0x1d0] sm:$0xff]
        %v1354 = vld [vmem:[%s1273 + $0x1d8] sm:$0xff]
        %v1355 = vld [vmem:[%s1273 + $0x1e0] sm:$0xff]
        %v1356 = vld [vmem:[%s1273 + $0x1e8] sm:$0xff]
        %v1357 = vld [vmem:[%s1273 + $0x1f0] sm:$0xff]
        %v1358 = vld [vmem:[%s1273 + $0x1f8] sm:$0xff]
        %v1359 = vld [vmem:[%s1273 + $0x200] sm:$0xff]
        %v1360 = vld [vmem:[%s1273 + $0x208] sm:$0xff]
        %v1361 = vld [vmem:[%s1273 + $0x210] sm:$0xff]
        %v1362 = vld [vmem:[%s1273 + $0x218] sm:$0xff]
        %v1363 = vld [vmem:[%s1273 + $0x220] sm:$0xff]
        %v1364 = vld [vmem:[%s1273 + $0x228] sm:$0xff]
        %v1365 = vld [vmem:[%s1273 + $0x230] sm:$0xff]
        %v1366 = vld [vmem:[%s1273 + $0x238] sm:$0xff]
        %v1367 = vld [vmem:[%s1273 + $0x240] sm:$0xff]
        %v1368 = vld [vmem:[%s1273 + $0x248] sm:$0xff]
        %v1369 = vld [vmem:[%s1273 + $0x250] sm:$0xff]
        %v1370 = vld [vmem:[%s1273 + $0x258] sm:$0xff]
        %v1371 = vld [vmem:[%s1273 + $0x260] sm:$0xff]
        %v1372 = vld [vmem:[%s1273 + $0x268] sm:$0xff]
        %v1373 = vld [vmem:[%s1273 + $0x270] sm:$0xff]
        %v1374 = vld [vmem:[%s1273 + $0x278] sm:$0xff]
        %v1375 = vld [vmem:[%s1273 + $0x280] sm:$0xff]
        %v1376 = vld [vmem:[%s1273 + $0x288] sm:$0xff]
        %v1377 = vld [vmem:[%s1273 + $0x290] sm:$0xff]
        %v1378 = vld [vmem:[%s1273 + $0x298] sm:$0xff]
        %v1379 = vld [vmem:[%s1273 + $0x2a0] sm:$0xff]
        %v1380 = vld [vmem:[%s1273 + $0x2a8] sm:$0xff]
        %v1381 = vld [vmem:[%s1273 + $0x2b0] sm:$0xff]
        %v1382 = vld [vmem:[%s1273 + $0x2b8] sm:$0xff]
        %v1383 = vld [vmem:[%s1273 + $0x2c0] sm:$0xff]
        %v1384 = vld [vmem:[%s1273 + $0x2c8] sm:$0xff]
        %v1385 = vld [vmem:[%s1273 + $0x2d0] sm:$0xff]
        %v1386 = vld [vmem:[%s1273 + $0x2d8] sm:$0xff]
        %v1387 = vld [vmem:[%s1273 + $0x2e0] sm:$0xff]
        %v1388 = vld [vmem:[%s1273 + $0x2e8] sm:$0xff]
        %v1389 = vld [vmem:[%s1273 + $0x2f0] sm:$0xff]
        %v1390 = vld [vmem:[%s1273 + $0x2f8] sm:$0xff]
        %v1391 = vld [vmem:[%s1273 + $0x300] sm:$0xff]
        %v1392 = vld [vmem:[%s1273 + $0x308] sm:$0xff]
        %v1393 = vld [vmem:[%s1273 + $0x310] sm:$0xff]
        %v1394 = vld [vmem:[%s1273 + $0x318] sm:$0xff]
        %v1395 = vld [vmem:[%s1273 + $0x320] sm:$0xff]
        %v1396 = vld [vmem:[%s1273 + $0x328] sm:$0xff]
        %v1397 = vld [vmem:[%s1273 + $0x330] sm:$0xff]
        %v1398 = vld [vmem:[%s1273 + $0x338] sm:$0xff]
        %v1399 = vld [vmem:[%s1273 + $0x340] sm:$0xff]
        %v1400 = vld [vmem:[%s1273 + $0x348] sm:$0xff]
        %v1401 = vld [vmem:[%s1273 + $0x350] sm:$0xff]
        %v1402 = vld [vmem:[%s1273 + $0x358] sm:$0xff]
        %v1403 = vld [vmem:[%s1273 + $0x360] sm:$0xff]
        %v1404 = vld [vmem:[%s1273 + $0x368] sm:$0xff]
        %v1405 = vld [vmem:[%s1273 + $0x370] sm:$0xff]
        %v1406 = vld [vmem:[%s1273 + $0x378] sm:$0xff]
        %v1407 = vld [vmem:[%s1273 + $0x380] sm:$0xff]
        %v1408 = vld [vmem:[%s1273 + $0x388] sm:$0xff]
        %v1409 = vld [vmem:[%s1273 + $0x390] sm:$0xff]
        %v1410 = vld [vmem:[%s1273 + $0x398] sm:$0xff]
        %v1411 = vld [vmem:[%s1273 + $0x3a0] sm:$0xff]
        %v1412 = vld [vmem:[%s1273 + $0x3a8] sm:$0xff]
        %v1413 = vld [vmem:[%s1273 + $0x3b0] sm:$0xff]
        %v1414 = vld [vmem:[%s1273 + $0x3b8] sm:$0xff]
        %v1415 = vld [vmem:[%s1273 + $0x3c0] sm:$0xff]
        %v1416 = vld [vmem:[%s1273 + $0x3c8] sm:$0xff]
        %v1417 = vld [vmem:[%s1273 + $0x3d0] sm:$0xff]
        %v1418 = vld [vmem:[%s1273 + $0x3d8] sm:$0xff]
        %v1419 = vld [vmem:[%s1273 + $0x3e0] sm:$0xff]
        %v1420 = vld [vmem:[%s1273 + $0x3e8] sm:$0xff]
        %v1421 = vld [vmem:[%s1273 + $0x3f0] sm:$0xff]
        %v1422 = vld [vmem:[%s1273 + $0x3f8] sm:$0xff]
        %v1423 = vld [vmem:[%s1273 + $0x400] sm:$0xff]
        %v1424 = vld [vmem:[%s1273 + $0x408] sm:$0xff]
        %v1425 = vld [vmem:[%s1273 + $0x410] sm:$0xff]
        %v1426 = vld [vmem:[%s1273 + $0x418] sm:$0xff]
        %v1427 = vld [vmem:[%s1273 + $0x420] sm:$0xff]
        %v1428 = vld [vmem:[%s1273 + $0x428] sm:$0xff]
        %v1429 = vld [vmem:[%s1273 + $0x430] sm:$0xff]
        %v1430 = vld [vmem:[%s1273 + $0x438] sm:$0xff]
        %v1431 = vld [vmem:[%s1273 + $0x440] sm:$0xff]
        %v1432 = vld [vmem:[%s1273 + $0x448] sm:$0xff]
        %v1433 = vld [vmem:[%s1273 + $0x450] sm:$0xff]
        %v1434 = vld [vmem:[%s1273 + $0x458] sm:$0xff]
        %v1435 = vld [vmem:[%s1273 + $0x460] sm:$0xff]
        %v1436 = vld [vmem:[%s1273 + $0x468] sm:$0xff]
        %v1437 = vld [vmem:[%s1273 + $0x470] sm:$0xff]
        %v1438 = vld [vmem:[%s1273 + $0x478] sm:$0xff]
        %v1439 = vld [vmem:[%s1273 + $0x480] sm:$0xff]
        %v1440 = vld [vmem:[%s1273 + $0x488] sm:$0xff]
        %v1441 = vld [vmem:[%s1273 + $0x490] sm:$0xff]
        %v1442 = vld [vmem:[%s1273 + $0x498] sm:$0xff]
        %v1443 = vld [vmem:[%s1273 + $0x4a0] sm:$0xff]
        %v1444 = vld [vmem:[%s1273 + $0x4a8] sm:$0xff]
        %v1445 = vld [vmem:[%s1273 + $0x4b0] sm:$0xff]
        %v1446 = vld [vmem:[%s1273 + $0x4b8] sm:$0xff]
        %v1447 = vld [vmem:[%s1273 + $0x4c0] sm:$0xff]
        %v1448 = vld [vmem:[%s1273 + $0x4c8] sm:$0xff]
        %v1449 = vld [vmem:[%s1273 + $0x4d0] sm:$0xff]
        %v1450 = vld [vmem:[%s1273 + $0x4d8] sm:$0xff]
        %v1451 = vld [vmem:[%s1273 + $0x4e0] sm:$0xff]
        %v1452 = vld [vmem:[%s1273 + $0x4e8] sm:$0xff]
        %v1453 = vld [vmem:[%s1273 + $0x4f0] sm:$0xff]
        %v1454 = vld [vmem:[%s1273 + $0x4f8] sm:$0xff]
        %v1455 = vld [vmem:[%s1273 + $0x500] sm:$0xff]
        %v1456 = vld [vmem:[%s1273 + $0x508] sm:$0xff]
        %v1457 = vld [vmem:[%s1273 + $0x510] sm:$0xff]
        %v1458 = vld [vmem:[%s1273 + $0x518] sm:$0xff]
        %v1459 = vld [vmem:[%s1273 + $0x520] sm:$0xff]
        %v1460 = vld [vmem:[%s1273 + $0x528] sm:$0xff]
        %v1461 = vld [vmem:[%s1273 + $0x530] sm:$0xff]
        %v1462 = vld [vmem:[%s1273 + $0x538] sm:$0xff]
        %v1463 = vld [vmem:[%s1273 + $0x540] sm:$0xff]
        %v1464 = vld [vmem:[%s1273 + $0x548] sm:$0xff]
        %v1465 = vld [vmem:[%s1273 + $0x550] sm:$0xff]
        %v1466 = vld [vmem:[%s1273 + $0x558] sm:$0xff]
        %v1467 = vld [vmem:[%s1273 + $0x560] sm:$0xff]
        %v1468 = vld [vmem:[%s1273 + $0x568] sm:$0xff]
        %v1469 = vld [vmem:[%s1273 + $0x570] sm:$0xff]
        %v1470 = vld [vmem:[%s1273 + $0x578] sm:$0xff]
        %v1471 = vld [vmem:[%s1273 + $0x580] sm:$0xff]
        %v1472 = vld [vmem:[%s1273 + $0x588] sm:$0xff]
        %v1473 = vld [vmem:[%s1273 + $0x590] sm:$0xff]
        %v1474 = vld [vmem:[%s1273 + $0x598] sm:$0xff]
        %v1475 = vld [vmem:[%s1273 + $0x5a0] sm:$0xff]
        %v1476 = vld [vmem:[%s1273 + $0x5a8] sm:$0xff]
        %v1477 = vld [vmem:[%s1273 + $0x5b0] sm:$0xff]
        %v1478 = vld [vmem:[%s1273 + $0x5b8] sm:$0xff]
        %v1479 = vld [vmem:[%s1273 + $0x5c0] sm:$0xff]
        %v1480 = vld [vmem:[%s1273 + $0x5c8] sm:$0xff]
        %v1481 = vld [vmem:[%s1273 + $0x5d0] sm:$0xff]
        %v1482 = vld [vmem:[%s1273 + $0x5d8] sm:$0xff]
        %v1483 = vld [vmem:[%s1273 + $0x5e0] sm:$0xff]
        %v1484 = vld [vmem:[%s1273 + $0x5e8] sm:$0xff]
        %v1485 = vld [vmem:[%s1273 + $0x5f0] sm:$0xff]
        %v1486 = vld [vmem:[%s1273 + $0x5f8] sm:$0xff]
        %v1487 = vld [vmem:[%s1273 + $0x600] sm:$0xff]
        %v1488 = vld [vmem:[%s1273 + $0x608] sm:$0xff]
        %v1489 = vld [vmem:[%s1273 + $0x610] sm:$0xff]
        %v1490 = vld [vmem:[%s1273 + $0x618] sm:$0xff]
        %v1491 = vld [vmem:[%s1273 + $0x620] sm:$0xff]
        %v1492 = vld [vmem:[%s1273 + $0x628] sm:$0xff]
        %v1493 = vld [vmem:[%s1273 + $0x630] sm:$0xff]
        %v1494 = vld [vmem:[%s1273 + $0x638] sm:$0xff]
        %v1495 = vld [vmem:[%s1273 + $0x640] sm:$0xff]
        %v1496 = vld [vmem:[%s1273 + $0x648] sm:$0xff]
        %v1497 = vld [vmem:[%s1273 + $0x650] sm:$0xff]
        %v1498 = vld [vmem:[%s1273 + $0x658] sm:$0xff]
        %v1499 = vld [vmem:[%s1273 + $0x660] sm:$0xff]
        %v1500 = vld [vmem:[%s1273 + $0x668] sm:$0xff]
        %v1501 = vld [vmem:[%s1273 + $0x670] sm:$0xff]
        %v1502 = vld [vmem:[%s1273 + $0x678] sm:$0xff]
        %v1503 = vld [vmem:[%s1273 + $0x680] sm:$0xff]
        %v1504 = vld [vmem:[%s1273 + $0x688] sm:$0xff]
        %v1505 = vld [vmem:[%s1273 + $0x690] sm:$0xff]
        %v1506 = vld [vmem:[%s1273 + $0x698] sm:$0xff]
        %v1507 = vld [vmem:[%s1273 + $0x6a0] sm:$0xff]
        %v1508 = vld [vmem:[%s1273 + $0x6a8] sm:$0xff]
        %v1509 = vld [vmem:[%s1273 + $0x6b0] sm:$0xff]
        %v1510 = vld [vmem:[%s1273 + $0x6b8] sm:$0xff]
        %v1511 = vld [vmem:[%s1273 + $0x6c0] sm:$0xff]
        %v1512 = vld [vmem:[%s1273 + $0x6c8] sm:$0xff]
        %v1513 = vld [vmem:[%s1273 + $0x6d0] sm:$0xff]
        %v1514 = vld [vmem:[%s1273 + $0x6d8] sm:$0xff]
        %v1515 = vld [vmem:[%s1273 + $0x6e0] sm:$0xff]
        %v1516 = vld [vmem:[%s1273 + $0x6e8] sm:$0xff]
        %v1517 = vld [vmem:[%s1273 + $0x6f0] sm:$0xff]
        %v1518 = vld [vmem:[%s1273 + $0x6f8] sm:$0xff]
        %v1519 = vld [vmem:[%s1273 + $0x700] sm:$0xff]
        %v1520 = vld [vmem:[%s1273 + $0x708] sm:$0xff]
        %v1521 = vld [vmem:[%s1273 + $0x710] sm:$0xff]
        %v1522 = vld [vmem:[%s1273 + $0x718] sm:$0xff]
        %v1523 = vld [vmem:[%s1273 + $0x720] sm:$0xff]
        %v1524 = vld [vmem:[%s1273 + $0x728] sm:$0xff]
        %v1525 = vld [vmem:[%s1273 + $0x730] sm:$0xff]
        %v1526 = vld [vmem:[%s1273 + $0x738] sm:$0xff]
        %v1527 = vld [vmem:[%s1273 + $0x740] sm:$0xff]
        %v1528 = vld [vmem:[%s1273 + $0x748] sm:$0xff]
        %v1529 = vld [vmem:[%s1273 + $0x750] sm:$0xff]
        %v1530 = vld [vmem:[%s1273 + $0x758] sm:$0xff]
        %v1531 = vld [vmem:[%s1273 + $0x760] sm:$0xff]
        %v1532 = vld [vmem:[%s1273 + $0x768] sm:$0xff]
        %v1533 = vld [vmem:[%s1273 + $0x770] sm:$0xff]
        %v1534 = vld [vmem:[%s1273 + $0x778] sm:$0xff]
        %v1535 = vld [vmem:[%s1273 + $0x780] sm:$0xff]
        %v1536 = vld [vmem:[%s1273 + $0x788] sm:$0xff]
        %v1537 = vld [vmem:[%s1273 + $0x790] sm:$0xff]
        %v1538 = vld [vmem:[%s1273 + $0x798] sm:$0xff]
        %v1539 = vld [vmem:[%s1273 + $0x7a0] sm:$0xff]
        %v1540 = vld [vmem:[%s1273 + $0x7a8] sm:$0xff]
        %v1541 = vld [vmem:[%s1273 + $0x7b0] sm:$0xff]
        %v1542 = vld [vmem:[%s1273 + $0x7b8] sm:$0xff]
        %v1543 = vld [vmem:[%s1273 + $0x7c0] sm:$0xff]
        %v1544 = vld [vmem:[%s1273 + $0x7c8] sm:$0xff]
        %v1545 = vld [vmem:[%s1273 + $0x7d0] sm:$0xff]
        %v1546 = vld [vmem:[%s1273 + $0x7d8] sm:$0xff]
        %v1547 = vld [vmem:[%s1273 + $0x7e0] sm:$0xff]
        %v1548 = vld [vmem:[%s1273 + $0x7e8] sm:$0xff]
        %v1549 = vld [vmem:[%s1273 + $0x7f0] sm:$0xff]
        %v1550 = vld [vmem:[%s1273 + $0x7f8] sm:$0xff]
        %v1551 = vld [vmem:[%s1273 + $0x800] sm:$0xff]
        %v1552 = vld [vmem:[%s1273 + $0x808] sm:$0xff]
        %v1553 = vld [vmem:[%s1273 + $0x810] sm:$0xff]
        %v1554 = vld [vmem:[%s1273 + $0x818] sm:$0xff]
        %v1555 = vld [vmem:[%s1273 + $0x820] sm:$0xff]
        %v1556 = vld [vmem:[%s1273 + $0x828] sm:$0xff]
        %v1557 = vld [vmem:[%s1273 + $0x830] sm:$0xff]
        %v1558 = vld [vmem:[%s1273 + $0x838] sm:$0xff]
        %v1559 = vld [vmem:[%s1273 + $0x840] sm:$0xff]
        %v1560 = vld [vmem:[%s1273 + $0x848] sm:$0xff]
        %v1561 = vld [vmem:[%s1273 + $0x850] sm:$0xff]
        %v1562 = vld [vmem:[%s1273 + $0x858] sm:$0xff]
        %v1563 = vld [vmem:[%s1273 + $0x860] sm:$0xff]
        %v1564 = vld [vmem:[%s1273 + $0x868] sm:$0xff]
        %vm1565 = vcmask 130048
        %v1566 = vsel %vm1565, %v1295, 0.0
        %1567 = vadd.xlane.f32.xlu0 %v1566
        %v1568 = vpop.xlane.xlu0 %1567
        %v1569 = vsel %vm1565, %v1296, 0.0
        %1570 = vadd.xlane.f32.xlu0 %v1569
        %v1571 = vpop.xlane.xlu0 %1570
        %v1572 = vsel %vm1565, %v1297, 0.0
        %1573 = vadd.xlane.f32.xlu0 %v1572
        %v1574 = vpop.xlane.xlu0 %1573
        %v1575 = vsel %vm1565, %v1298, 0.0
        %1576 = vadd.xlane.f32.xlu0 %v1575
        %v1577 = vpop.xlane.xlu0 %1576
        %v1578 = vsel %vm1565, %v1299, 0.0
        %1579 = vadd.xlane.f32.xlu0 %v1578
        %v1580 = vpop.xlane.xlu0 %1579
        %v1581 = vsel %vm1565, %v1300, 0.0
        %1582 = vadd.xlane.f32.xlu0 %v1581
        %v1583 = vpop.xlane.xlu0 %1582
        %v1584 = vsel %vm1565, %v1301, 0.0
        %1585 = vadd.xlane.f32.xlu0 %v1584
        %v1586 = vpop.xlane.xlu0 %1585
        %v1587 = vsel %vm1565, %v1302, 0.0
        %1588 = vadd.xlane.f32.xlu0 %v1587
        %v1589 = vpop.xlane.xlu0 %1588
        %v1590 = vsel %vm1565, %v1303, 0.0
        %1591 = vadd.xlane.f32.xlu0 %v1590
        %v1592 = vpop.xlane.xlu0 %1591
        %v1593 = vsel %vm1565, %v1304, 0.0
        %1594 = vadd.xlane.f32.xlu0 %v1593
        %v1595 = vpop.xlane.xlu0 %1594
        %v1596 = vsel %vm1565, %v1305, 0.0
        %1597 = vadd.xlane.f32.xlu0 %v1596
        %v1598 = vpop.xlane.xlu0 %1597
        %v1599 = vsel %vm1565, %v1306, 0.0
        %1600 = vadd.xlane.f32.xlu0 %v1599
        %v1601 = vpop.xlane.xlu0 %1600
        %v1602 = vsel %vm1565, %v1307, 0.0
        %1603 = vadd.xlane.f32.xlu0 %v1602
        %v1604 = vpop.xlane.xlu0 %1603
        %v1605 = vsel %vm1565, %v1308, 0.0
        %1606 = vadd.xlane.f32.xlu0 %v1605
        %v1607 = vpop.xlane.xlu0 %1606
        %v1608 = vsel %vm1565, %v1309, 0.0
        %1609 = vadd.xlane.f32.xlu0 %v1608
        %v1610 = vpop.xlane.xlu0 %1609
        %v1611 = vsel %vm1565, %v1310, 0.0
        %1612 = vadd.xlane.f32.xlu0 %v1611
        %v1613 = vpop.xlane.xlu0 %1612
        %v1614 = vsel %vm1565, %v1311, 0.0
        %1615 = vadd.xlane.f32.xlu0 %v1614
        %v1616 = vpop.xlane.xlu0 %1615
        %v1617 = vsel %vm1565, %v1312, 0.0
        %1618 = vadd.xlane.f32.xlu0 %v1617
        %v1619 = vpop.xlane.xlu0 %1618
        %v1620 = vsel %vm1565, %v1313, 0.0
        %1621 = vadd.xlane.f32.xlu0 %v1620
        %v1622 = vpop.xlane.xlu0 %1621
        %v1623 = vsel %vm1565, %v1314, 0.0
        %1624 = vadd.xlane.f32.xlu0 %v1623
        %v1625 = vpop.xlane.xlu0 %1624
        %v1626 = vsel %vm1565, %v1315, 0.0
        %1627 = vadd.xlane.f32.xlu0 %v1626
        %v1628 = vpop.xlane.xlu0 %1627
        %v1629 = vsel %vm1565, %v1316, 0.0
        %1630 = vadd.xlane.f32.xlu0 %v1629
        %v1631 = vpop.xlane.xlu0 %1630
        %v1632 = vsel %vm1565, %v1317, 0.0
        %1633 = vadd.xlane.f32.xlu0 %v1632
        %v1634 = vpop.xlane.xlu0 %1633
        %v1635 = vsel %vm1565, %v1318, 0.0
        %1636 = vadd.xlane.f32.xlu0 %v1635
        %v1637 = vpop.xlane.xlu0 %1636
        %v1638 = vsel %vm1565, %v1319, 0.0
        %1639 = vadd.xlane.f32.xlu0 %v1638
        %v1640 = vpop.xlane.xlu0 %1639
        %v1641 = vsel %vm1565, %v1320, 0.0
        %1642 = vadd.xlane.f32.xlu0 %v1641
        %v1643 = vpop.xlane.xlu0 %1642
        %v1644 = vsel %vm1565, %v1321, 0.0
        %1645 = vadd.xlane.f32.xlu0 %v1644
        %v1646 = vpop.xlane.xlu0 %1645
        %v1647 = vsel %vm1565, %v1322, 0.0
        %1648 = vadd.xlane.f32.xlu0 %v1647
        %v1649 = vpop.xlane.xlu0 %1648
        %v1650 = vsel %vm1565, %v1323, 0.0
        %1651 = vadd.xlane.f32.xlu0 %v1650
        %v1652 = vpop.xlane.xlu0 %1651
        %v1653 = vsel %vm1565, %v1324, 0.0
        %1654 = vadd.xlane.f32.xlu0 %v1653
        %v1655 = vpop.xlane.xlu0 %1654
        %v1656 = vsel %vm1565, %v1325, 0.0
        %1657 = vadd.xlane.f32.xlu0 %v1656
        %v1658 = vpop.xlane.xlu0 %1657
        %v1659 = vsel %vm1565, %v1326, 0.0
        %1660 = vadd.xlane.f32.xlu0 %v1659
        %v1661 = vpop.xlane.xlu0 %1660
        %v1662 = vsel %vm1565, %v1327, 0.0
        %1663 = vadd.xlane.f32.xlu0 %v1662
        %v1664 = vpop.xlane.xlu0 %1663
        %v1665 = vsel %vm1565, %v1328, 0.0
        %1666 = vadd.xlane.f32.xlu0 %v1665
        %v1667 = vpop.xlane.xlu0 %1666
        %v1668 = vsel %vm1565, %v1329, 0.0
        %1669 = vadd.xlane.f32.xlu0 %v1668
        %v1670 = vpop.xlane.xlu0 %1669
        %v1671 = vsel %vm1565, %v1330, 0.0
        %1672 = vadd.xlane.f32.xlu0 %v1671
        %v1673 = vpop.xlane.xlu0 %1672
        %v1674 = vsel %vm1565, %v1331, 0.0
        %1675 = vadd.xlane.f32.xlu0 %v1674
        %v1676 = vpop.xlane.xlu0 %1675
        %v1677 = vsel %vm1565, %v1332, 0.0
        %1678 = vadd.xlane.f32.xlu0 %v1677
        %v1679 = vpop.xlane.xlu0 %1678
        %v1680 = vsel %vm1565, %v1333, 0.0
        %1681 = vadd.xlane.f32.xlu0 %v1680
        %v1682 = vpop.xlane.xlu0 %1681
        %v1683 = vsel %vm1565, %v1334, 0.0
        %1684 = vadd.xlane.f32.xlu0 %v1683
        %v1685 = vpop.xlane.xlu0 %1684
        %v1686 = vsel %vm1565, %v1335, 0.0
        %1687 = vadd.xlane.f32.xlu0 %v1686
        %v1688 = vpop.xlane.xlu0 %1687
        %v1689 = vsel %vm1565, %v1336, 0.0
        %1690 = vadd.xlane.f32.xlu0 %v1689
        %v1691 = vpop.xlane.xlu0 %1690
        %v1692 = vsel %vm1565, %v1337, 0.0
        %1693 = vadd.xlane.f32.xlu0 %v1692
        %v1694 = vpop.xlane.xlu0 %1693
        %v1695 = vsel %vm1565, %v1338, 0.0
        %1696 = vadd.xlane.f32.xlu0 %v1695
        %v1697 = vpop.xlane.xlu0 %1696
        %v1698 = vsel %vm1565, %v1339, 0.0
        %1699 = vadd.xlane.f32.xlu0 %v1698
        %v1700 = vpop.xlane.xlu0 %1699
        %v1701 = vsel %vm1565, %v1340, 0.0
        %1702 = vadd.xlane.f32.xlu0 %v1701
        %v1703 = vpop.xlane.xlu0 %1702
        %v1704 = vsel %vm1565, %v1341, 0.0
        %1705 = vadd.xlane.f32.xlu0 %v1704
        %v1706 = vpop.xlane.xlu0 %1705
        %v1707 = vsel %vm1565, %v1342, 0.0
        %1708 = vadd.xlane.f32.xlu0 %v1707
        %v1709 = vpop.xlane.xlu0 %1708
        %v1710 = vsel %vm1565, %v1343, 0.0
        %1711 = vadd.xlane.f32.xlu0 %v1710
        %v1712 = vpop.xlane.xlu0 %1711
        %v1713 = vsel %vm1565, %v1344, 0.0
        %1714 = vadd.xlane.f32.xlu0 %v1713
        %v1715 = vpop.xlane.xlu0 %1714
        %v1716 = vsel %vm1565, %v1345, 0.0
        %1717 = vadd.xlane.f32.xlu0 %v1716
        %v1718 = vpop.xlane.xlu0 %1717
        %v1719 = vsel %vm1565, %v1346, 0.0
        %1720 = vadd.xlane.f32.xlu0 %v1719
        %v1721 = vpop.xlane.xlu0 %1720
        %v1722 = vsel %vm1565, %v1347, 0.0
        %1723 = vadd.xlane.f32.xlu0 %v1722
        %v1724 = vpop.xlane.xlu0 %1723
        %v1725 = vsel %vm1565, %v1348, 0.0
        %1726 = vadd.xlane.f32.xlu0 %v1725
        %v1727 = vpop.xlane.xlu0 %1726
        %v1728 = vsel %vm1565, %v1349, 0.0
        %1729 = vadd.xlane.f32.xlu0 %v1728
        %v1730 = vpop.xlane.xlu0 %1729
        %v1731 = vsel %vm1565, %v1350, 0.0
        %1732 = vadd.xlane.f32.xlu0 %v1731
        %v1733 = vpop.xlane.xlu0 %1732
        %v1734 = vsel %vm1565, %v1351, 0.0
        %1735 = vadd.xlane.f32.xlu0 %v1734
        %v1736 = vpop.xlane.xlu0 %1735
        %v1737 = vsel %vm1565, %v1352, 0.0
        %1738 = vadd.xlane.f32.xlu0 %v1737
        %v1739 = vpop.xlane.xlu0 %1738
        %v1740 = vsel %vm1565, %v1353, 0.0
        %1741 = vadd.xlane.f32.xlu0 %v1740
        %v1742 = vpop.xlane.xlu0 %1741
        %v1743 = vsel %vm1565, %v1354, 0.0
        %1744 = vadd.xlane.f32.xlu0 %v1743
        %v1745 = vpop.xlane.xlu0 %1744
        %v1746 = vsel %vm1565, %v1355, 0.0
        %1747 = vadd.xlane.f32.xlu0 %v1746
        %v1748 = vpop.xlane.xlu0 %1747
        %v1749 = vsel %vm1565, %v1356, 0.0
        %1750 = vadd.xlane.f32.xlu0 %v1749
        %v1751 = vpop.xlane.xlu0 %1750
        %v1752 = vsel %vm1565, %v1357, 0.0
        %1753 = vadd.xlane.f32.xlu0 %v1752
        %v1754 = vpop.xlane.xlu0 %1753
        %v1755 = vsel %vm1565, %v1358, 0.0
        %1756 = vadd.xlane.f32.xlu0 %v1755
        %v1757 = vpop.xlane.xlu0 %1756
        %v1758 = vsel %vm1565, %v1359, 0.0
        %1759 = vadd.xlane.f32.xlu0 %v1758
        %v1760 = vpop.xlane.xlu0 %1759
        %v1761 = vsel %vm1565, %v1360, 0.0
        %1762 = vadd.xlane.f32.xlu0 %v1761
        %v1763 = vpop.xlane.xlu0 %1762
        %v1764 = vsel %vm1565, %v1361, 0.0
        %1765 = vadd.xlane.f32.xlu0 %v1764
        %v1766 = vpop.xlane.xlu0 %1765
        %v1767 = vsel %vm1565, %v1362, 0.0
        %1768 = vadd.xlane.f32.xlu0 %v1767
        %v1769 = vpop.xlane.xlu0 %1768
        %v1770 = vsel %vm1565, %v1363, 0.0
        %1771 = vadd.xlane.f32.xlu0 %v1770
        %v1772 = vpop.xlane.xlu0 %1771
        %v1773 = vsel %vm1565, %v1364, 0.0
        %1774 = vadd.xlane.f32.xlu0 %v1773
        %v1775 = vpop.xlane.xlu0 %1774
        %v1776 = vsel %vm1565, %v1365, 0.0
        %1777 = vadd.xlane.f32.xlu0 %v1776
        %v1778 = vpop.xlane.xlu0 %1777
        %v1779 = vsel %vm1565, %v1366, 0.0
        %1780 = vadd.xlane.f32.xlu0 %v1779
        %v1781 = vpop.xlane.xlu0 %1780
        %v1782 = vsel %vm1565, %v1367, 0.0
        %1783 = vadd.xlane.f32.xlu0 %v1782
        %v1784 = vpop.xlane.xlu0 %1783
        %v1785 = vsel %vm1565, %v1368, 0.0
        %1786 = vadd.xlane.f32.xlu0 %v1785
        %v1787 = vpop.xlane.xlu0 %1786
        %v1788 = vsel %vm1565, %v1369, 0.0
        %1789 = vadd.xlane.f32.xlu0 %v1788
        %v1790 = vpop.xlane.xlu0 %1789
        %v1791 = vsel %vm1565, %v1370, 0.0
        %1792 = vadd.xlane.f32.xlu0 %v1791
        %v1793 = vpop.xlane.xlu0 %1792
        %v1794 = vsel %vm1565, %v1371, 0.0
        %1795 = vadd.xlane.f32.xlu0 %v1794
        %v1796 = vpop.xlane.xlu0 %1795
        %v1797 = vsel %vm1565, %v1372, 0.0
        %1798 = vadd.xlane.f32.xlu0 %v1797
        %v1799 = vpop.xlane.xlu0 %1798
        %v1800 = vsel %vm1565, %v1373, 0.0
        %1801 = vadd.xlane.f32.xlu0 %v1800
        %v1802 = vpop.xlane.xlu0 %1801
        %v1803 = vsel %vm1565, %v1374, 0.0
        %1804 = vadd.xlane.f32.xlu0 %v1803
        %v1805 = vpop.xlane.xlu0 %1804
        %v1806 = vsel %vm1565, %v1375, 0.0
        %1807 = vadd.xlane.f32.xlu0 %v1806
        %v1808 = vpop.xlane.xlu0 %1807
        %v1809 = vsel %vm1565, %v1376, 0.0
        %1810 = vadd.xlane.f32.xlu0 %v1809
        %v1811 = vpop.xlane.xlu0 %1810
        %v1812 = vsel %vm1565, %v1377, 0.0
        %1813 = vadd.xlane.f32.xlu0 %v1812
        %v1814 = vpop.xlane.xlu0 %1813
        %v1815 = vsel %vm1565, %v1378, 0.0
        %1816 = vadd.xlane.f32.xlu0 %v1815
        %v1817 = vpop.xlane.xlu0 %1816
        %v1818 = vsel %vm1565, %v1379, 0.0
        %1819 = vadd.xlane.f32.xlu0 %v1818
        %v1820 = vpop.xlane.xlu0 %1819
        %v1821 = vsel %vm1565, %v1380, 0.0
        %1822 = vadd.xlane.f32.xlu0 %v1821
        %v1823 = vpop.xlane.xlu0 %1822
        %v1824 = vsel %vm1565, %v1381, 0.0
        %1825 = vadd.xlane.f32.xlu0 %v1824
        %v1826 = vpop.xlane.xlu0 %1825
        %v1827 = vsel %vm1565, %v1382, 0.0
        %1828 = vadd.xlane.f32.xlu0 %v1827
        %v1829 = vpop.xlane.xlu0 %1828
        %v1830 = vsel %vm1565, %v1383, 0.0
        %1831 = vadd.xlane.f32.xlu0 %v1830
        %v1832 = vpop.xlane.xlu0 %1831
        %v1833 = vsel %vm1565, %v1384, 0.0
        %1834 = vadd.xlane.f32.xlu0 %v1833
        %v1835 = vpop.xlane.xlu0 %1834
        %v1836 = vsel %vm1565, %v1385, 0.0
        %1837 = vadd.xlane.f32.xlu0 %v1836
        %v1838 = vpop.xlane.xlu0 %1837
        %v1839 = vsel %vm1565, %v1386, 0.0
        %1840 = vadd.xlane.f32.xlu0 %v1839
        %v1841 = vpop.xlane.xlu0 %1840
        %v1842 = vsel %vm1565, %v1387, 0.0
        %1843 = vadd.xlane.f32.xlu0 %v1842
        %v1844 = vpop.xlane.xlu0 %1843
        %v1845 = vsel %vm1565, %v1388, 0.0
        %1846 = vadd.xlane.f32.xlu0 %v1845
        %v1847 = vpop.xlane.xlu0 %1846
        %v1848 = vsel %vm1565, %v1389, 0.0
        %1849 = vadd.xlane.f32.xlu0 %v1848
        %v1850 = vpop.xlane.xlu0 %1849
        %v1851 = vsel %vm1565, %v1390, 0.0
        %1852 = vadd.xlane.f32.xlu0 %v1851
        %v1853 = vpop.xlane.xlu0 %1852
        %v1854 = vsel %vm1565, %v1391, 0.0
        %1855 = vadd.xlane.f32.xlu0 %v1854
        %v1856 = vpop.xlane.xlu0 %1855
        %v1857 = vsel %vm1565, %v1392, 0.0
        %1858 = vadd.xlane.f32.xlu0 %v1857
        %v1859 = vpop.xlane.xlu0 %1858
        %v1860 = vsel %vm1565, %v1393, 0.0
        %1861 = vadd.xlane.f32.xlu0 %v1860
        %v1862 = vpop.xlane.xlu0 %1861
        %v1863 = vsel %vm1565, %v1394, 0.0
        %1864 = vadd.xlane.f32.xlu0 %v1863
        %v1865 = vpop.xlane.xlu0 %1864
        %v1866 = vsel %vm1565, %v1395, 0.0
        %1867 = vadd.xlane.f32.xlu0 %v1866
        %v1868 = vpop.xlane.xlu0 %1867
        %v1869 = vsel %vm1565, %v1396, 0.0
        %1870 = vadd.xlane.f32.xlu0 %v1869
        %v1871 = vpop.xlane.xlu0 %1870
        %v1872 = vsel %vm1565, %v1397, 0.0
        %1873 = vadd.xlane.f32.xlu0 %v1872
        %v1874 = vpop.xlane.xlu0 %1873
        %v1875 = vsel %vm1565, %v1398, 0.0
        %1876 = vadd.xlane.f32.xlu0 %v1875
        %v1877 = vpop.xlane.xlu0 %1876
        %v1878 = vsel %vm1565, %v1399, 0.0
        %1879 = vadd.xlane.f32.xlu0 %v1878
        %v1880 = vpop.xlane.xlu0 %1879
        %v1881 = vsel %vm1565, %v1400, 0.0
        %1882 = vadd.xlane.f32.xlu0 %v1881
        %v1883 = vpop.xlane.xlu0 %1882
        %v1884 = vsel %vm1565, %v1401, 0.0
        %1885 = vadd.xlane.f32.xlu0 %v1884
        %v1886 = vpop.xlane.xlu0 %1885
        %v1887 = vsel %vm1565, %v1402, 0.0
        %1888 = vadd.xlane.f32.xlu0 %v1887
        %v1889 = vpop.xlane.xlu0 %1888
        %v1890 = vsel %vm1565, %v1403, 0.0
        %1891 = vadd.xlane.f32.xlu0 %v1890
        %v1892 = vpop.xlane.xlu0 %1891
        %v1893 = vsel %vm1565, %v1404, 0.0
        %1894 = vadd.xlane.f32.xlu0 %v1893
        %v1895 = vpop.xlane.xlu0 %1894
        %v1896 = vsel %vm1565, %v1405, 0.0
        %1897 = vadd.xlane.f32.xlu0 %v1896
        %v1898 = vpop.xlane.xlu0 %1897
        %v1899 = vsel %vm1565, %v1406, 0.0
        %1900 = vadd.xlane.f32.xlu0 %v1899
        %v1901 = vpop.xlane.xlu0 %1900
        %v1902 = vsel %vm1565, %v1407, 0.0
        %1903 = vadd.xlane.f32.xlu0 %v1902
        %v1904 = vpop.xlane.xlu0 %1903
        %v1905 = vsel %vm1565, %v1408, 0.0
        %1906 = vadd.xlane.f32.xlu0 %v1905
        %v1907 = vpop.xlane.xlu0 %1906
        %v1908 = vsel %vm1565, %v1409, 0.0
        %1909 = vadd.xlane.f32.xlu0 %v1908
        %v1910 = vpop.xlane.xlu0 %1909
        %v1911 = vsel %vm1565, %v1410, 0.0
        %1912 = vadd.xlane.f32.xlu0 %v1911
        %v1913 = vpop.xlane.xlu0 %1912
        %v1914 = vsel %vm1565, %v1411, 0.0
        %1915 = vadd.xlane.f32.xlu0 %v1914
        %v1916 = vpop.xlane.xlu0 %1915
        %v1917 = vsel %vm1565, %v1412, 0.0
        %1918 = vadd.xlane.f32.xlu0 %v1917
        %v1919 = vpop.xlane.xlu0 %1918
        %v1920 = vsel %vm1565, %v1413, 0.0
        %1921 = vadd.xlane.f32.xlu0 %v1920
        %v1922 = vpop.xlane.xlu0 %1921
        %v1923 = vsel %vm1565, %v1414, 0.0
        %1924 = vadd.xlane.f32.xlu0 %v1923
        %v1925 = vpop.xlane.xlu0 %1924
        %v1926 = vsel %vm1565, %v1415, 0.0
        %1927 = vadd.xlane.f32.xlu0 %v1926
        %v1928 = vpop.xlane.xlu0 %1927
        %v1929 = vsel %vm1565, %v1416, 0.0
        %1930 = vadd.xlane.f32.xlu0 %v1929
        %v1931 = vpop.xlane.xlu0 %1930
        %v1932 = vsel %vm1565, %v1417, 0.0
        %1933 = vadd.xlane.f32.xlu0 %v1932
        %v1934 = vpop.xlane.xlu0 %1933
        %v1935 = vsel %vm1565, %v1418, 0.0
        %1936 = vadd.xlane.f32.xlu0 %v1935
        %v1937 = vpop.xlane.xlu0 %1936
        %v1938 = vsel %vm1565, %v1419, 0.0
        %1939 = vadd.xlane.f32.xlu0 %v1938
        %v1940 = vpop.xlane.xlu0 %1939
        %v1941 = vsel %vm1565, %v1420, 0.0
        %1942 = vadd.xlane.f32.xlu0 %v1941
        %v1943 = vpop.xlane.xlu0 %1942
        %v1944 = vsel %vm1565, %v1421, 0.0
        %1945 = vadd.xlane.f32.xlu0 %v1944
        %v1946 = vpop.xlane.xlu0 %1945
        %v1947 = vsel %vm1565, %v1422, 0.0
        %1948 = vadd.xlane.f32.xlu0 %v1947
        %v1949 = vpop.xlane.xlu0 %1948
        %v1950 = vsel %vm1565, %v1423, 0.0
        %1951 = vadd.xlane.f32.xlu0 %v1950
        %v1952 = vpop.xlane.xlu0 %1951
        %v1953 = vsel %vm1565, %v1424, 0.0
        %1954 = vadd.xlane.f32.xlu0 %v1953
        %v1955 = vpop.xlane.xlu0 %1954
        %v1956 = vsel %vm1565, %v1425, 0.0
        %1957 = vadd.xlane.f32.xlu0 %v1956
        %v1958 = vpop.xlane.xlu0 %1957
        %v1959 = vsel %vm1565, %v1426, 0.0
        %1960 = vadd.xlane.f32.xlu0 %v1959
        %v1961 = vpop.xlane.xlu0 %1960
        %v1962 = vsel %vm1565, %v1427, 0.0
        %1963 = vadd.xlane.f32.xlu0 %v1962
        %v1964 = vpop.xlane.xlu0 %1963
        %v1965 = vsel %vm1565, %v1428, 0.0
        %1966 = vadd.xlane.f32.xlu0 %v1965
        %v1967 = vpop.xlane.xlu0 %1966
        %v1968 = vsel %vm1565, %v1429, 0.0
        %1969 = vadd.xlane.f32.xlu0 %v1968
        %v1970 = vpop.xlane.xlu0 %1969
        %v1971 = vsel %vm1565, %v1430, 0.0
        %1972 = vadd.xlane.f32.xlu0 %v1971
        %v1973 = vpop.xlane.xlu0 %1972
        %v1974 = vsel %vm1565, %v1431, 0.0
        %1975 = vadd.xlane.f32.xlu0 %v1974
        %v1976 = vpop.xlane.xlu0 %1975
        %v1977 = vsel %vm1565, %v1432, 0.0
        %1978 = vadd.xlane.f32.xlu0 %v1977
        %v1979 = vpop.xlane.xlu0 %1978
        %v1980 = vsel %vm1565, %v1433, 0.0
        %1981 = vadd.xlane.f32.xlu0 %v1980
        %v1982 = vpop.xlane.xlu0 %1981
        %v1983 = vsel %vm1565, %v1434, 0.0
        %1984 = vadd.xlane.f32.xlu0 %v1983
        %v1985 = vpop.xlane.xlu0 %1984
        %v1986 = vsel %vm1565, %v1435, 0.0
        %1987 = vadd.xlane.f32.xlu0 %v1986
        %v1988 = vpop.xlane.xlu0 %1987
        %v1989 = vsel %vm1565, %v1436, 0.0
        %1990 = vadd.xlane.f32.xlu0 %v1989
        %v1991 = vpop.xlane.xlu0 %1990
        %v1992 = vsel %vm1565, %v1437, 0.0
        %1993 = vadd.xlane.f32.xlu0 %v1992
        %v1994 = vpop.xlane.xlu0 %1993
        %v1995 = vsel %vm1565, %v1438, 0.0
        %1996 = vadd.xlane.f32.xlu0 %v1995
        %v1997 = vpop.xlane.xlu0 %1996
        %v1998 = vsel %vm1565, %v1439, 0.0
        %1999 = vadd.xlane.f32.xlu0 %v1998
        %v2000 = vpop.xlane.xlu0 %1999
        %v2001 = vsel %vm1565, %v1440, 0.0
        %2002 = vadd.xlane.f32.xlu0 %v2001
        %v2003 = vpop.xlane.xlu0 %2002
        %v2004 = vsel %vm1565, %v1441, 0.0
        %2005 = vadd.xlane.f32.xlu0 %v2004
        %v2006 = vpop.xlane.xlu0 %2005
        %v2007 = vsel %vm1565, %v1442, 0.0
        %2008 = vadd.xlane.f32.xlu0 %v2007
        %v2009 = vpop.xlane.xlu0 %2008
        %v2010 = vsel %vm1565, %v1443, 0.0
        %2011 = vadd.xlane.f32.xlu0 %v2010
        %v2012 = vpop.xlane.xlu0 %2011
        %v2013 = vsel %vm1565, %v1444, 0.0
        %2014 = vadd.xlane.f32.xlu0 %v2013
        %v2015 = vpop.xlane.xlu0 %2014
        %v2016 = vsel %vm1565, %v1445, 0.0
        %2017 = vadd.xlane.f32.xlu0 %v2016
        %v2018 = vpop.xlane.xlu0 %2017
        %v2019 = vsel %vm1565, %v1446, 0.0
        %2020 = vadd.xlane.f32.xlu0 %v2019
        %v2021 = vpop.xlane.xlu0 %2020
        %v2022 = vsel %vm1565, %v1447, 0.0
        %2023 = vadd.xlane.f32.xlu0 %v2022
        %v2024 = vpop.xlane.xlu0 %2023
        %v2025 = vsel %vm1565, %v1448, 0.0
        %2026 = vadd.xlane.f32.xlu0 %v2025
        %v2027 = vpop.xlane.xlu0 %2026
        %v2028 = vsel %vm1565, %v1449, 0.0
        %2029 = vadd.xlane.f32.xlu0 %v2028
        %v2030 = vpop.xlane.xlu0 %2029
        %v2031 = vsel %vm1565, %v1450, 0.0
        %2032 = vadd.xlane.f32.xlu0 %v2031
        %v2033 = vpop.xlane.xlu0 %2032
        %v2034 = vsel %vm1565, %v1451, 0.0
        %2035 = vadd.xlane.f32.xlu0 %v2034
        %v2036 = vpop.xlane.xlu0 %2035
        %v2037 = vsel %vm1565, %v1452, 0.0
        %2038 = vadd.xlane.f32.xlu0 %v2037
        %v2039 = vpop.xlane.xlu0 %2038
        %v2040 = vsel %vm1565, %v1453, 0.0
        %2041 = vadd.xlane.f32.xlu0 %v2040
        %v2042 = vpop.xlane.xlu0 %2041
        %v2043 = vsel %vm1565, %v1454, 0.0
        %2044 = vadd.xlane.f32.xlu0 %v2043
        %v2045 = vpop.xlane.xlu0 %2044
        %v2046 = vsel %vm1565, %v1455, 0.0
        %2047 = vadd.xlane.f32.xlu0 %v2046
        %v2048 = vpop.xlane.xlu0 %2047
        %v2049 = vsel %vm1565, %v1456, 0.0
        %2050 = vadd.xlane.f32.xlu0 %v2049
        %v2051 = vpop.xlane.xlu0 %2050
        %v2052 = vsel %vm1565, %v1457, 0.0
        %2053 = vadd.xlane.f32.xlu0 %v2052
        %v2054 = vpop.xlane.xlu0 %2053
        %v2055 = vsel %vm1565, %v1458, 0.0
        %2056 = vadd.xlane.f32.xlu0 %v2055
        %v2057 = vpop.xlane.xlu0 %2056
        %v2058 = vsel %vm1565, %v1459, 0.0
        %2059 = vadd.xlane.f32.xlu0 %v2058
        %v2060 = vpop.xlane.xlu0 %2059
        %v2061 = vsel %vm1565, %v1460, 0.0
        %2062 = vadd.xlane.f32.xlu0 %v2061
        %v2063 = vpop.xlane.xlu0 %2062
        %v2064 = vsel %vm1565, %v1461, 0.0
        %2065 = vadd.xlane.f32.xlu0 %v2064
        %v2066 = vpop.xlane.xlu0 %2065
        %v2067 = vsel %vm1565, %v1462, 0.0
        %2068 = vadd.xlane.f32.xlu0 %v2067
        %v2069 = vpop.xlane.xlu0 %2068
        %v2070 = vsel %vm1565, %v1463, 0.0
        %2071 = vadd.xlane.f32.xlu0 %v2070
        %v2072 = vpop.xlane.xlu0 %2071
        %v2073 = vsel %vm1565, %v1464, 0.0
        %2074 = vadd.xlane.f32.xlu0 %v2073
        %v2075 = vpop.xlane.xlu0 %2074
        %v2076 = vsel %vm1565, %v1465, 0.0
        %2077 = vadd.xlane.f32.xlu0 %v2076
        %v2078 = vpop.xlane.xlu0 %2077
        %v2079 = vsel %vm1565, %v1466, 0.0
        %2080 = vadd.xlane.f32.xlu0 %v2079
        %v2081 = vpop.xlane.xlu0 %2080
        %v2082 = vsel %vm1565, %v1467, 0.0
        %2083 = vadd.xlane.f32.xlu0 %v2082
        %v2084 = vpop.xlane.xlu0 %2083
        %v2085 = vsel %vm1565, %v1468, 0.0
        %2086 = vadd.xlane.f32.xlu0 %v2085
        %v2087 = vpop.xlane.xlu0 %2086
        %v2088 = vsel %vm1565, %v1469, 0.0
        %2089 = vadd.xlane.f32.xlu0 %v2088
        %v2090 = vpop.xlane.xlu0 %2089
        %v2091 = vsel %vm1565, %v1470, 0.0
        %2092 = vadd.xlane.f32.xlu0 %v2091
        %v2093 = vpop.xlane.xlu0 %2092
        %v2094 = vsel %vm1565, %v1471, 0.0
        %2095 = vadd.xlane.f32.xlu0 %v2094
        %v2096 = vpop.xlane.xlu0 %2095
        %v2097 = vsel %vm1565, %v1472, 0.0
        %2098 = vadd.xlane.f32.xlu0 %v2097
        %v2099 = vpop.xlane.xlu0 %2098
        %v2100 = vsel %vm1565, %v1473, 0.0
        %2101 = vadd.xlane.f32.xlu0 %v2100
        %v2102 = vpop.xlane.xlu0 %2101
        %v2103 = vsel %vm1565, %v1474, 0.0
        %2104 = vadd.xlane.f32.xlu0 %v2103
        %v2105 = vpop.xlane.xlu0 %2104
        %v2106 = vsel %vm1565, %v1475, 0.0
        %2107 = vadd.xlane.f32.xlu0 %v2106
        %v2108 = vpop.xlane.xlu0 %2107
        %v2109 = vsel %vm1565, %v1476, 0.0
        %2110 = vadd.xlane.f32.xlu0 %v2109
        %v2111 = vpop.xlane.xlu0 %2110
        %v2112 = vsel %vm1565, %v1477, 0.0
        %2113 = vadd.xlane.f32.xlu0 %v2112
        %v2114 = vpop.xlane.xlu0 %2113
        %v2115 = vsel %vm1565, %v1478, 0.0
        %2116 = vadd.xlane.f32.xlu0 %v2115
        %v2117 = vpop.xlane.xlu0 %2116
        %v2118 = vsel %vm1565, %v1479, 0.0
        %2119 = vadd.xlane.f32.xlu0 %v2118
        %v2120 = vpop.xlane.xlu0 %2119
        %v2121 = vsel %vm1565, %v1480, 0.0
        %2122 = vadd.xlane.f32.xlu0 %v2121
        %v2123 = vpop.xlane.xlu0 %2122
        %v2124 = vsel %vm1565, %v1481, 0.0
        %2125 = vadd.xlane.f32.xlu0 %v2124
        %v2126 = vpop.xlane.xlu0 %2125
        %v2127 = vsel %vm1565, %v1482, 0.0
        %2128 = vadd.xlane.f32.xlu0 %v2127
        %v2129 = vpop.xlane.xlu0 %2128
        %v2130 = vsel %vm1565, %v1483, 0.0
        %2131 = vadd.xlane.f32.xlu0 %v2130
        %v2132 = vpop.xlane.xlu0 %2131
        %v2133 = vsel %vm1565, %v1484, 0.0
        %2134 = vadd.xlane.f32.xlu0 %v2133
        %v2135 = vpop.xlane.xlu0 %2134
        %v2136 = vsel %vm1565, %v1485, 0.0
        %2137 = vadd.xlane.f32.xlu0 %v2136
        %v2138 = vpop.xlane.xlu0 %2137
        %v2139 = vsel %vm1565, %v1486, 0.0
        %2140 = vadd.xlane.f32.xlu0 %v2139
        %v2141 = vpop.xlane.xlu0 %2140
        %v2142 = vsel %vm1565, %v1487, 0.0
        %2143 = vadd.xlane.f32.xlu0 %v2142
        %v2144 = vpop.xlane.xlu0 %2143
        %v2145 = vsel %vm1565, %v1488, 0.0
        %2146 = vadd.xlane.f32.xlu0 %v2145
        %v2147 = vpop.xlane.xlu0 %2146
        %v2148 = vsel %vm1565, %v1489, 0.0
        %2149 = vadd.xlane.f32.xlu0 %v2148
        %v2150 = vpop.xlane.xlu0 %2149
        %v2151 = vsel %vm1565, %v1490, 0.0
        %2152 = vadd.xlane.f32.xlu0 %v2151
        %v2153 = vpop.xlane.xlu0 %2152
        %v2154 = vsel %vm1565, %v1491, 0.0
        %2155 = vadd.xlane.f32.xlu0 %v2154
        %v2156 = vpop.xlane.xlu0 %2155
        %v2157 = vsel %vm1565, %v1492, 0.0
        %2158 = vadd.xlane.f32.xlu0 %v2157
        %v2159 = vpop.xlane.xlu0 %2158
        %v2160 = vsel %vm1565, %v1493, 0.0
        %2161 = vadd.xlane.f32.xlu0 %v2160
        %v2162 = vpop.xlane.xlu0 %2161
        %v2163 = vsel %vm1565, %v1494, 0.0
        %2164 = vadd.xlane.f32.xlu0 %v2163
        %v2165 = vpop.xlane.xlu0 %2164
        %v2166 = vsel %vm1565, %v1495, 0.0
        %2167 = vadd.xlane.f32.xlu0 %v2166
        %v2168 = vpop.xlane.xlu0 %2167
        %v2169 = vsel %vm1565, %v1496, 0.0
        %2170 = vadd.xlane.f32.xlu0 %v2169
        %v2171 = vpop.xlane.xlu0 %2170
        %v2172 = vsel %vm1565, %v1497, 0.0
        %2173 = vadd.xlane.f32.xlu0 %v2172
        %v2174 = vpop.xlane.xlu0 %2173
        %v2175 = vsel %vm1565, %v1498, 0.0
        %2176 = vadd.xlane.f32.xlu0 %v2175
        %v2177 = vpop.xlane.xlu0 %2176
        %v2178 = vsel %vm1565, %v1499, 0.0
        %2179 = vadd.xlane.f32.xlu0 %v2178
        %v2180 = vpop.xlane.xlu0 %2179
        %v2181 = vsel %vm1565, %v1500, 0.0
        %2182 = vadd.xlane.f32.xlu0 %v2181
        %v2183 = vpop.xlane.xlu0 %2182
        %v2184 = vsel %vm1565, %v1501, 0.0
        %2185 = vadd.xlane.f32.xlu0 %v2184
        %v2186 = vpop.xlane.xlu0 %2185
        %v2187 = vsel %vm1565, %v1502, 0.0
        %2188 = vadd.xlane.f32.xlu0 %v2187
        %v2189 = vpop.xlane.xlu0 %2188
        %v2190 = vsel %vm1565, %v1503, 0.0
        %2191 = vadd.xlane.f32.xlu0 %v2190
        %v2192 = vpop.xlane.xlu0 %2191
        %v2193 = vsel %vm1565, %v1504, 0.0
        %2194 = vadd.xlane.f32.xlu0 %v2193
        %v2195 = vpop.xlane.xlu0 %2194
        %v2196 = vsel %vm1565, %v1505, 0.0
        %2197 = vadd.xlane.f32.xlu0 %v2196
        %v2198 = vpop.xlane.xlu0 %2197
        %v2199 = vsel %vm1565, %v1506, 0.0
        %2200 = vadd.xlane.f32.xlu0 %v2199
        %v2201 = vpop.xlane.xlu0 %2200
        %v2202 = vsel %vm1565, %v1507, 0.0
        %2203 = vadd.xlane.f32.xlu0 %v2202
        %v2204 = vpop.xlane.xlu0 %2203
        %v2205 = vsel %vm1565, %v1508, 0.0
        %2206 = vadd.xlane.f32.xlu0 %v2205
        %v2207 = vpop.xlane.xlu0 %2206
        %v2208 = vsel %vm1565, %v1509, 0.0
        %2209 = vadd.xlane.f32.xlu0 %v2208
        %v2210 = vpop.xlane.xlu0 %2209
        %v2211 = vsel %vm1565, %v1510, 0.0
        %2212 = vadd.xlane.f32.xlu0 %v2211
        %v2213 = vpop.xlane.xlu0 %2212
        %v2214 = vsel %vm1565, %v1511, 0.0
        %2215 = vadd.xlane.f32.xlu0 %v2214
        %v2216 = vpop.xlane.xlu0 %2215
        %v2217 = vsel %vm1565, %v1512, 0.0
        %2218 = vadd.xlane.f32.xlu0 %v2217
        %v2219 = vpop.xlane.xlu0 %2218
        %v2220 = vsel %vm1565, %v1513, 0.0
        %2221 = vadd.xlane.f32.xlu0 %v2220
        %v2222 = vpop.xlane.xlu0 %2221
        %v2223 = vsel %vm1565, %v1514, 0.0
        %2224 = vadd.xlane.f32.xlu0 %v2223
        %v2225 = vpop.xlane.xlu0 %2224
        %v2226 = vsel %vm1565, %v1515, 0.0
        %2227 = vadd.xlane.f32.xlu0 %v2226
        %v2228 = vpop.xlane.xlu0 %2227
        %v2229 = vsel %vm1565, %v1516, 0.0
        %2230 = vadd.xlane.f32.xlu0 %v2229
        %v2231 = vpop.xlane.xlu0 %2230
        %v2232 = vsel %vm1565, %v1517, 0.0
        %2233 = vadd.xlane.f32.xlu0 %v2232
        %v2234 = vpop.xlane.xlu0 %2233
        %v2235 = vsel %vm1565, %v1518, 0.0
        %2236 = vadd.xlane.f32.xlu0 %v2235
        %v2237 = vpop.xlane.xlu0 %2236
        %v2238 = vsel %vm1565, %v1519, 0.0
        %2239 = vadd.xlane.f32.xlu0 %v2238
        %v2240 = vpop.xlane.xlu0 %2239
        %v2241 = vsel %vm1565, %v1520, 0.0
        %2242 = vadd.xlane.f32.xlu0 %v2241
        %v2243 = vpop.xlane.xlu0 %2242
        %v2244 = vsel %vm1565, %v1521, 0.0
        %2245 = vadd.xlane.f32.xlu0 %v2244
        %v2246 = vpop.xlane.xlu0 %2245
        %v2247 = vsel %vm1565, %v1522, 0.0
        %2248 = vadd.xlane.f32.xlu0 %v2247
        %v2249 = vpop.xlane.xlu0 %2248
        %v2250 = vsel %vm1565, %v1523, 0.0
        %2251 = vadd.xlane.f32.xlu0 %v2250
        %v2252 = vpop.xlane.xlu0 %2251
        %v2253 = vsel %vm1565, %v1524, 0.0
        %2254 = vadd.xlane.f32.xlu0 %v2253
        %v2255 = vpop.xlane.xlu0 %2254
        %v2256 = vsel %vm1565, %v1525, 0.0
        %2257 = vadd.xlane.f32.xlu0 %v2256
        %v2258 = vpop.xlane.xlu0 %2257
        %v2259 = vsel %vm1565, %v1526, 0.0
        %2260 = vadd.xlane.f32.xlu0 %v2259
        %v2261 = vpop.xlane.xlu0 %2260
        %v2262 = vsel %vm1565, %v1527, 0.0
        %2263 = vadd.xlane.f32.xlu0 %v2262
        %v2264 = vpop.xlane.xlu0 %2263
        %v2265 = vsel %vm1565, %v1528, 0.0
        %2266 = vadd.xlane.f32.xlu0 %v2265
        %v2267 = vpop.xlane.xlu0 %2266
        %v2268 = vsel %vm1565, %v1529, 0.0
        %2269 = vadd.xlane.f32.xlu0 %v2268
        %v2270 = vpop.xlane.xlu0 %2269
        %v2271 = vsel %vm1565, %v1530, 0.0
        %2272 = vadd.xlane.f32.xlu0 %v2271
        %v2273 = vpop.xlane.xlu0 %2272
        %v2274 = vsel %vm1565, %v1531, 0.0
        %2275 = vadd.xlane.f32.xlu0 %v2274
        %v2276 = vpop.xlane.xlu0 %2275
        %v2277 = vsel %vm1565, %v1532, 0.0
        %2278 = vadd.xlane.f32.xlu0 %v2277
        %v2279 = vpop.xlane.xlu0 %2278
        %v2280 = vsel %vm1565, %v1533, 0.0
        %2281 = vadd.xlane.f32.xlu0 %v2280
        %v2282 = vpop.xlane.xlu0 %2281
        %v2283 = vsel %vm1565, %v1534, 0.0
        %2284 = vadd.xlane.f32.xlu0 %v2283
        %v2285 = vpop.xlane.xlu0 %2284
        %v2286 = vsel %vm1565, %v1535, 0.0
        %2287 = vadd.xlane.f32.xlu0 %v2286
        %v2288 = vpop.xlane.xlu0 %2287
        %v2289 = vsel %vm1565, %v1536, 0.0
        %2290 = vadd.xlane.f32.xlu0 %v2289
        %v2291 = vpop.xlane.xlu0 %2290
        %v2292 = vsel %vm1565, %v1537, 0.0
        %2293 = vadd.xlane.f32.xlu0 %v2292
        %v2294 = vpop.xlane.xlu0 %2293
        %v2295 = vsel %vm1565, %v1538, 0.0
        %2296 = vadd.xlane.f32.xlu0 %v2295
        %v2297 = vpop.xlane.xlu0 %2296
        %v2298 = vsel %vm1565, %v1539, 0.0
        %2299 = vadd.xlane.f32.xlu0 %v2298
        %v2300 = vpop.xlane.xlu0 %2299
        %v2301 = vsel %vm1565, %v1540, 0.0
        %2302 = vadd.xlane.f32.xlu0 %v2301
        %v2303 = vpop.xlane.xlu0 %2302
        %v2304 = vsel %vm1565, %v1541, 0.0
        %2305 = vadd.xlane.f32.xlu0 %v2304
        %v2306 = vpop.xlane.xlu0 %2305
        %v2307 = vsel %vm1565, %v1542, 0.0
        %2308 = vadd.xlane.f32.xlu0 %v2307
        %v2309 = vpop.xlane.xlu0 %2308
        %v2310 = vsel %vm1565, %v1543, 0.0
        %2311 = vadd.xlane.f32.xlu0 %v2310
        %v2312 = vpop.xlane.xlu0 %2311
        %v2313 = vsel %vm1565, %v1544, 0.0
        %2314 = vadd.xlane.f32.xlu0 %v2313
        %v2315 = vpop.xlane.xlu0 %2314
        %v2316 = vsel %vm1565, %v1545, 0.0
        %2317 = vadd.xlane.f32.xlu0 %v2316
        %v2318 = vpop.xlane.xlu0 %2317
        %v2319 = vsel %vm1565, %v1546, 0.0
        %2320 = vadd.xlane.f32.xlu0 %v2319
        %v2321 = vpop.xlane.xlu0 %2320
        %v2322 = vsel %vm1565, %v1547, 0.0
        %2323 = vadd.xlane.f32.xlu0 %v2322
        %v2324 = vpop.xlane.xlu0 %2323
        %v2325 = vsel %vm1565, %v1548, 0.0
        %2326 = vadd.xlane.f32.xlu0 %v2325
        %v2327 = vpop.xlane.xlu0 %2326
        %v2328 = vsel %vm1565, %v1549, 0.0
        %2329 = vadd.xlane.f32.xlu0 %v2328
        %v2330 = vpop.xlane.xlu0 %2329
        %v2331 = vsel %vm1565, %v1550, 0.0
        %2332 = vadd.xlane.f32.xlu0 %v2331
        %v2333 = vpop.xlane.xlu0 %2332
        %v2334 = vsel %vm1565, %v1551, 0.0
        %2335 = vadd.xlane.f32.xlu0 %v2334
        %v2336 = vpop.xlane.xlu0 %2335
        %v2337 = vsel %vm1565, %v1552, 0.0
        %2338 = vadd.xlane.f32.xlu0 %v2337
        %v2339 = vpop.xlane.xlu0 %2338
        %v2340 = vsel %vm1565, %v1553, 0.0
        %2341 = vadd.xlane.f32.xlu0 %v2340
        %v2342 = vpop.xlane.xlu0 %2341
        %v2343 = vsel %vm1565, %v1554, 0.0
        %2344 = vadd.xlane.f32.xlu0 %v2343
        %v2345 = vpop.xlane.xlu0 %2344
        %v2346 = vsel %vm1565, %v1555, 0.0
        %2347 = vadd.xlane.f32.xlu0 %v2346
        %v2348 = vpop.xlane.xlu0 %2347
        %v2349 = vsel %vm1565, %v1556, 0.0
        %2350 = vadd.xlane.f32.xlu0 %v2349
        %v2351 = vpop.xlane.xlu0 %2350
        %v2352 = vsel %vm1565, %v1557, 0.0
        %2353 = vadd.xlane.f32.xlu0 %v2352
        %v2354 = vpop.xlane.xlu0 %2353
        %v2355 = vsel %vm1565, %v1558, 0.0
        %2356 = vadd.xlane.f32.xlu0 %v2355
        %v2357 = vpop.xlane.xlu0 %2356
        %v2358 = vsel %vm1565, %v1559, 0.0
        %2359 = vadd.xlane.f32.xlu0 %v2358
        %v2360 = vpop.xlane.xlu0 %2359
        %v2361 = vsel %vm1565, %v1560, 0.0
        %2362 = vadd.xlane.f32.xlu0 %v2361
        %v2363 = vpop.xlane.xlu0 %2362
        %v2364 = vsel %vm1565, %v1561, 0.0
        %2365 = vadd.xlane.f32.xlu0 %v2364
        %v2366 = vpop.xlane.xlu0 %2365
        %v2367 = vsel %vm1565, %v1562, 0.0
        %2368 = vadd.xlane.f32.xlu0 %v2367
        %v2369 = vpop.xlane.xlu0 %2368
        %v2370 = vsel %vm1565, %v1563, 0.0
        %2371 = vadd.xlane.f32.xlu0 %v2370
        %v2372 = vpop.xlane.xlu0 %2371
        %v2373 = vsel %vm1565, %v1564, 0.0
        %2374 = vadd.xlane.f32.xlu0 %v2373
        %v2375 = vpop.xlane.xlu0 %2374
        %s2376 = smul.u32 %s20, 1080
        %s2377 = scalar_lea.vmem %s1, %s2376
        %v2378 = vld [vmem:[%s2377] sm:$0xff]
        %v2379 = vld [vmem:[%s2377 + $0x8] sm:$0xff]
        %v2380 = vld [vmem:[%s2377 + $0x10] sm:$0xff]
        %v2381 = vld [vmem:[%s2377 + $0x18] sm:$0xff]
        %v2382 = vld [vmem:[%s2377 + $0x20] sm:$0xff]
        %v2383 = vld [vmem:[%s2377 + $0x28] sm:$0xff]
        %v2384 = vld [vmem:[%s2377 + $0x30] sm:$0xff]
        %v2385 = vld [vmem:[%s2377 + $0x38] sm:$0xff]
        %v2386 = vld [vmem:[%s2377 + $0x40] sm:$0xff]
        %v2387 = vld [vmem:[%s2377 + $0x48] sm:$0xff]
        %v2388 = vld [vmem:[%s2377 + $0x50] sm:$0xff]
        %v2389 = vld [vmem:[%s2377 + $0x58] sm:$0xff]
        %v2390 = vld [vmem:[%s2377 + $0x60] sm:$0xff]
        %v2391 = vld [vmem:[%s2377 + $0x68] sm:$0xff]
        %v2392 = vld [vmem:[%s2377 + $0x70] sm:$0xff]
        %v2393 = vld [vmem:[%s2377 + $0x78] sm:$0xff]
        %v2394 = vld [vmem:[%s2377 + $0x80] sm:$0xff]
        %v2395 = vld [vmem:[%s2377 + $0x88] sm:$0xff]
        %v2396 = vld [vmem:[%s2377 + $0x90] sm:$0xff]
        %v2397 = vld [vmem:[%s2377 + $0x98] sm:$0xff]
        %v2398 = vld [vmem:[%s2377 + $0xa0] sm:$0xff]
        %v2399 = vld [vmem:[%s2377 + $0xa8] sm:$0xff]
        %v2400 = vld [vmem:[%s2377 + $0xb0] sm:$0xff]
        %v2401 = vld [vmem:[%s2377 + $0xb8] sm:$0xff]
        %v2402 = vld [vmem:[%s2377 + $0xc0] sm:$0xff]
        %v2403 = vld [vmem:[%s2377 + $0xc8] sm:$0xff]
        %v2404 = vld [vmem:[%s2377 + $0xd0] sm:$0xff]
        %v2405 = vld [vmem:[%s2377 + $0xd8] sm:$0xff]
        %v2406 = vld [vmem:[%s2377 + $0xe0] sm:$0xff]
        %v2407 = vld [vmem:[%s2377 + $0xe8] sm:$0xff]
        %v2408 = vld [vmem:[%s2377 + $0xf0] sm:$0xff]
        %v2409 = vld [vmem:[%s2377 + $0xf8] sm:$0xff]
        %v2410 = vld [vmem:[%s2377 + $0x100] sm:$0xff]
        %v2411 = vld [vmem:[%s2377 + $0x108] sm:$0xff]
        %v2412 = vld [vmem:[%s2377 + $0x110] sm:$0xff]
        %v2413 = vld [vmem:[%s2377 + $0x118] sm:$0xff]
        %v2414 = vld [vmem:[%s2377 + $0x120] sm:$0xff]
        %v2415 = vld [vmem:[%s2377 + $0x128] sm:$0xff]
        %v2416 = vld [vmem:[%s2377 + $0x130] sm:$0xff]
        %v2417 = vld [vmem:[%s2377 + $0x138] sm:$0xff]
        %v2418 = vld [vmem:[%s2377 + $0x140] sm:$0xff]
        %v2419 = vld [vmem:[%s2377 + $0x148] sm:$0xff]
        %v2420 = vld [vmem:[%s2377 + $0x150] sm:$0xff]
        %v2421 = vld [vmem:[%s2377 + $0x158] sm:$0xff]
        %v2422 = vld [vmem:[%s2377 + $0x160] sm:$0xff]
        %v2423 = vld [vmem:[%s2377 + $0x168] sm:$0xff]
        %v2424 = vld [vmem:[%s2377 + $0x170] sm:$0xff]
        %v2425 = vld [vmem:[%s2377 + $0x178] sm:$0xff]
        %v2426 = vld [vmem:[%s2377 + $0x180] sm:$0xff]
        %v2427 = vld [vmem:[%s2377 + $0x188] sm:$0xff]
        %v2428 = vld [vmem:[%s2377 + $0x190] sm:$0xff]
        %v2429 = vld [vmem:[%s2377 + $0x198] sm:$0xff]
        %v2430 = vld [vmem:[%s2377 + $0x1a0] sm:$0xff]
        %v2431 = vld [vmem:[%s2377 + $0x1a8] sm:$0xff]
        %v2432 = vld [vmem:[%s2377 + $0x1b0] sm:$0xff]
        %v2433 = vld [vmem:[%s2377 + $0x1b8] sm:$0xff]
        %v2434 = vld [vmem:[%s2377 + $0x1c0] sm:$0xff]
        %v2435 = vld [vmem:[%s2377 + $0x1c8] sm:$0xff]
        %v2436 = vld [vmem:[%s2377 + $0x1d0] sm:$0xff]
        %v2437 = vld [vmem:[%s2377 + $0x1d8] sm:$0xff]
        %v2438 = vld [vmem:[%s2377 + $0x1e0] sm:$0xff]
        %v2439 = vld [vmem:[%s2377 + $0x1e8] sm:$0xff]
        %v2440 = vld [vmem:[%s2377 + $0x1f0] sm:$0xff]
        %v2441 = vld [vmem:[%s2377 + $0x1f8] sm:$0xff]
        %v2442 = vld [vmem:[%s2377 + $0x200] sm:$0xff]
        %v2443 = vld [vmem:[%s2377 + $0x208] sm:$0xff]
        %v2444 = vld [vmem:[%s2377 + $0x210] sm:$0xff]
        %v2445 = vld [vmem:[%s2377 + $0x218] sm:$0xff]
        %v2446 = vld [vmem:[%s2377 + $0x220] sm:$0xff]
        %v2447 = vld [vmem:[%s2377 + $0x228] sm:$0xff]
        %v2448 = vld [vmem:[%s2377 + $0x230] sm:$0xff]
        %v2449 = vld [vmem:[%s2377 + $0x238] sm:$0xff]
        %v2450 = vld [vmem:[%s2377 + $0x240] sm:$0xff]
        %v2451 = vld [vmem:[%s2377 + $0x248] sm:$0xff]
        %v2452 = vld [vmem:[%s2377 + $0x250] sm:$0xff]
        %v2453 = vld [vmem:[%s2377 + $0x258] sm:$0xff]
        %v2454 = vld [vmem:[%s2377 + $0x260] sm:$0xff]
        %v2455 = vld [vmem:[%s2377 + $0x268] sm:$0xff]
        %v2456 = vld [vmem:[%s2377 + $0x270] sm:$0xff]
        %v2457 = vld [vmem:[%s2377 + $0x278] sm:$0xff]
        %v2458 = vld [vmem:[%s2377 + $0x280] sm:$0xff]
        %v2459 = vld [vmem:[%s2377 + $0x288] sm:$0xff]
        %v2460 = vld [vmem:[%s2377 + $0x290] sm:$0xff]
        %v2461 = vld [vmem:[%s2377 + $0x298] sm:$0xff]
        %v2462 = vld [vmem:[%s2377 + $0x2a0] sm:$0xff]
        %v2463 = vld [vmem:[%s2377 + $0x2a8] sm:$0xff]
        %v2464 = vld [vmem:[%s2377 + $0x2b0] sm:$0xff]
        %v2465 = vld [vmem:[%s2377 + $0x2b8] sm:$0xff]
        %v2466 = vld [vmem:[%s2377 + $0x2c0] sm:$0xff]
        %v2467 = vld [vmem:[%s2377 + $0x2c8] sm:$0xff]
        %v2468 = vld [vmem:[%s2377 + $0x2d0] sm:$0xff]
        %v2469 = vld [vmem:[%s2377 + $0x2d8] sm:$0xff]
        %v2470 = vld [vmem:[%s2377 + $0x2e0] sm:$0xff]
        %v2471 = vld [vmem:[%s2377 + $0x2e8] sm:$0xff]
        %v2472 = vld [vmem:[%s2377 + $0x2f0] sm:$0xff]
        %v2473 = vld [vmem:[%s2377 + $0x2f8] sm:$0xff]
        %v2474 = vld [vmem:[%s2377 + $0x300] sm:$0xff]
        %v2475 = vld [vmem:[%s2377 + $0x308] sm:$0xff]
        %v2476 = vld [vmem:[%s2377 + $0x310] sm:$0xff]
        %v2477 = vld [vmem:[%s2377 + $0x318] sm:$0xff]
        %v2478 = vld [vmem:[%s2377 + $0x320] sm:$0xff]
        %v2479 = vld [vmem:[%s2377 + $0x328] sm:$0xff]
        %v2480 = vld [vmem:[%s2377 + $0x330] sm:$0xff]
        %v2481 = vld [vmem:[%s2377 + $0x338] sm:$0xff]
        %v2482 = vld [vmem:[%s2377 + $0x340] sm:$0xff]
        %v2483 = vld [vmem:[%s2377 + $0x348] sm:$0xff]
        %v2484 = vld [vmem:[%s2377 + $0x350] sm:$0xff]
        %v2485 = vld [vmem:[%s2377 + $0x358] sm:$0xff]
        %v2486 = vld [vmem:[%s2377 + $0x360] sm:$0xff]
        %v2487 = vld [vmem:[%s2377 + $0x368] sm:$0xff]
        %v2488 = vld [vmem:[%s2377 + $0x370] sm:$0xff]
        %v2489 = vld [vmem:[%s2377 + $0x378] sm:$0xff]
        %v2490 = vld [vmem:[%s2377 + $0x380] sm:$0xff]
        %v2491 = vld [vmem:[%s2377 + $0x388] sm:$0xff]
        %v2492 = vld [vmem:[%s2377 + $0x390] sm:$0xff]
        %v2493 = vld [vmem:[%s2377 + $0x398] sm:$0xff]
        %v2494 = vld [vmem:[%s2377 + $0x3a0] sm:$0xff]
        %v2495 = vld [vmem:[%s2377 + $0x3a8] sm:$0xff]
        %v2496 = vld [vmem:[%s2377 + $0x3b0] sm:$0xff]
        %v2497 = vld [vmem:[%s2377 + $0x3b8] sm:$0xff]
        %v2498 = vld [vmem:[%s2377 + $0x3c0] sm:$0xff]
        %v2499 = vld [vmem:[%s2377 + $0x3c8] sm:$0xff]
        %v2500 = vld [vmem:[%s2377 + $0x3d0] sm:$0xff]
        %v2501 = vld [vmem:[%s2377 + $0x3d8] sm:$0xff]
        %v2502 = vld [vmem:[%s2377 + $0x3e0] sm:$0xff]
        %v2503 = vld [vmem:[%s2377 + $0x3e8] sm:$0xff]
        %v2504 = vld [vmem:[%s2377 + $0x3f0] sm:$0xff]
        %v2505 = vld [vmem:[%s2377 + $0x3f8] sm:$0xff]
        %v2506 = vld [vmem:[%s2377 + $0x400] sm:$0xff]
        %v2507 = vld [vmem:[%s2377 + $0x408] sm:$0xff]
        %v2508 = vld [vmem:[%s2377 + $0x410] sm:$0xff]
        %v2509 = vld [vmem:[%s2377 + $0x418] sm:$0xff]
        %v2510 = vld [vmem:[%s2377 + $0x420] sm:$0xff]
        %v2511 = vld [vmem:[%s2377 + $0x428] sm:$0xff]
        %v2512 = vld [vmem:[%s2377 + $0x430] sm:$0xff]
        %v2513 = vld [vmem:[#allocation2] sm:$0x3]
        %v2784 = vlaneseq
        %v2785 = vand.u32 %v2784, 127
        %v2786 = vlaneseq
        %v2787 = vshrl.u32 %v2786, 7
        %v2788 = vsub.s32 %v2785, %v2787
        %v2789 = vrot.slane %v1568, %v2788
        %v2790 = vadd.s32 %v2785, 4294967288
        %v2791 = vlaneseq
        %v2792 = vshrl.u32 %v2791, 7
        %v2793 = vsub.s32 %v2790, %v2792
        %v2794 = vrot.slane %v1571, %v2793
        %vm2795 = vcmask 130112
        %v2796 = vsel %vm2795, %v2794, %v2789
        %v2797 = vadd.s32 %v2785, 4294967280
        %v2798 = vlaneseq
        %v2799 = vshrl.u32 %v2798, 7
        %v2800 = vsub.s32 %v2797, %v2799
        %v2801 = vrot.slane %v1574, %v2800
        %vm2802 = vcmask 195712
        %v2803 = vsel %vm2802, %v2801, %v2796
        %v2804 = vadd.s32 %v2785, 4294967272
        %v2805 = vlaneseq
        %v2806 = vshrl.u32 %v2805, 7
        %v2807 = vsub.s32 %v2804, %v2806
        %v2808 = vrot.slane %v1577, %v2807
        %vm2809 = vcmask 261312
        %v2810 = vsel %vm2809, %v2808, %v2803
        %v2811 = vadd.s32 %v2785, 4294967264
        %v2812 = vlaneseq
        %v2813 = vshrl.u32 %v2812, 7
        %v2814 = vsub.s32 %v2811, %v2813
        %v2815 = vrot.slane %v1580, %v2814
        %vm2816 = vcmask 326912
        %v2817 = vsel %vm2816, %v2815, %v2810
        %v2818 = vadd.s32 %v2785, 4294967256
        %v2819 = vlaneseq
        %v2820 = vshrl.u32 %v2819, 7
        %v2821 = vsub.s32 %v2818, %v2820
        %v2822 = vrot.slane %v1583, %v2821
        %vm2823 = vcmask 392512
        %v2824 = vsel %vm2823, %v2822, %v2817
        %v2825 = vadd.s32 %v2785, 4294967248
        %v2826 = vlaneseq
        %v2827 = vshrl.u32 %v2826, 7
        %v2828 = vsub.s32 %v2825, %v2827
        %v2829 = vrot.slane %v1586, %v2828
        %vm2830 = vcmask 458112
        %v2831 = vsel %vm2830, %v2829, %v2824
        %v2832 = vadd.s32 %v2785, 4294967240
        %v2833 = vlaneseq
        %v2834 = vshrl.u32 %v2833, 7
        %v2835 = vsub.s32 %v2832, %v2834
        %v2836 = vrot.slane %v1589, %v2835
        %vm2837 = vcmask 523712
        %v2838 = vsel %vm2837, %v2836, %v2831
        %v2839 = vadd.s32 %v2785, 4294967232
        %v2840 = vlaneseq
        %v2841 = vshrl.u32 %v2840, 7
        %v2842 = vsub.s32 %v2839, %v2841
        %v2843 = vrot.slane %v1592, %v2842
        %vm2844 = vcmask 589312
        %v2845 = vsel %vm2844, %v2843, %v2838
        %v2846 = vadd.s32 %v2785, 4294967224
        %v2847 = vlaneseq
        %v2848 = vshrl.u32 %v2847, 7
        %v2849 = vsub.s32 %v2846, %v2848
        %v2850 = vrot.slane %v1595, %v2849
        %vm2851 = vcmask 654912
        %v2852 = vsel %vm2851, %v2850, %v2845
        %v2853 = vadd.s32 %v2785, 4294967216
        %v2854 = vlaneseq
        %v2855 = vshrl.u32 %v2854, 7
        %v2856 = vsub.s32 %v2853, %v2855
        %v2857 = vrot.slane %v1598, %v2856
        %vm2858 = vcmask 720512
        %v2859 = vsel %vm2858, %v2857, %v2852
        %v2860 = vadd.s32 %v2785, 4294967208
        %v2861 = vlaneseq
        %v2862 = vshrl.u32 %v2861, 7
        %v2863 = vsub.s32 %v2860, %v2862
        %v2864 = vrot.slane %v1601, %v2863
        %vm2865 = vcmask 786112
        %v2866 = vsel %vm2865, %v2864, %v2859
        %v2867 = vadd.s32 %v2785, 4294967200
        %v2868 = vlaneseq
        %v2869 = vshrl.u32 %v2868, 7
        %v2870 = vsub.s32 %v2867, %v2869
        %v2871 = vrot.slane %v1604, %v2870
        %vm2872 = vcmask 851712
        %v2873 = vsel %vm2872, %v2871, %v2866
        %v2874 = vadd.s32 %v2785, 4294967192
        %v2875 = vlaneseq
        %v2876 = vshrl.u32 %v2875, 7
        %v2877 = vsub.s32 %v2874, %v2876
        %v2878 = vrot.slane %v1607, %v2877
        %vm2879 = vcmask 917312
        %v2880 = vsel %vm2879, %v2878, %v2873
        %v2881 = vadd.s32 %v2785, 4294967184
        %v2882 = vlaneseq
        %v2883 = vshrl.u32 %v2882, 7
        %v2884 = vsub.s32 %v2881, %v2883
        %v2885 = vrot.slane %v1610, %v2884
        %vm2886 = vcmask 982912
        %v2887 = vsel %vm2886, %v2885, %v2880
        %v2888 = vadd.s32 %v2785, 4294967176
        %v2889 = vlaneseq
        %v2890 = vshrl.u32 %v2889, 7
        %v2891 = vsub.s32 %v2888, %v2890
        %v2892 = vrot.slane %v1613, %v2891
        %vm2893 = vcmask 1048512
        %v2894 = vsel %vm2893, %v2892, %v2887
        %v2895 = vlaneseq
        %v2896 = vshrl.u32 %v2895, 7
        %v2897 = vsub.s32 %v2785, %v2896
        %v2898 = vrot.slane %v1616, %v2897
        %v2899 = vlaneseq
        %v2900 = vshrl.u32 %v2899, 7
        %v2901 = vsub.s32 %v2790, %v2900
        %v2902 = vrot.slane %v1619, %v2901
        %v2903 = vsel %vm2795, %v2902, %v2898
        %v2904 = vlaneseq
        %v2905 = vshrl.u32 %v2904, 7
        %v2906 = vsub.s32 %v2797, %v2905
        %v2907 = vrot.slane %v1622, %v2906
        %v2908 = vsel %vm2802, %v2907, %v2903
        %v2909 = vlaneseq
        %v2910 = vshrl.u32 %v2909, 7
        %v2911 = vsub.s32 %v2804, %v2910
        %v2912 = vrot.slane %v1625, %v2911
        %v2913 = vsel %vm2809, %v2912, %v2908
        %v2914 = vlaneseq
        %v2915 = vshrl.u32 %v2914, 7
        %v2916 = vsub.s32 %v2811, %v2915
        %v2917 = vrot.slane %v1628, %v2916
        %v2918 = vsel %vm2816, %v2917, %v2913
        %v2919 = vlaneseq
        %v2920 = vshrl.u32 %v2919, 7
        %v2921 = vsub.s32 %v2818, %v2920
        %v2922 = vrot.slane %v1631, %v2921
        %v2923 = vsel %vm2823, %v2922, %v2918
        %v2924 = vlaneseq
        %v2925 = vshrl.u32 %v2924, 7
        %v2926 = vsub.s32 %v2825, %v2925
        %v2927 = vrot.slane %v1634, %v2926
        %v2928 = vsel %vm2830, %v2927, %v2923
        %v2929 = vlaneseq
        %v2930 = vshrl.u32 %v2929, 7
        %v2931 = vsub.s32 %v2832, %v2930
        %v2932 = vrot.slane %v1637, %v2931
        %v2933 = vsel %vm2837, %v2932, %v2928
        %v2934 = vlaneseq
        %v2935 = vshrl.u32 %v2934, 7
        %v2936 = vsub.s32 %v2839, %v2935
        %v2937 = vrot.slane %v1640, %v2936
        %v2938 = vsel %vm2844, %v2937, %v2933
        %v2939 = vlaneseq
        %v2940 = vshrl.u32 %v2939, 7
        %v2941 = vsub.s32 %v2846, %v2940
        %v2942 = vrot.slane %v1643, %v2941
        %v2943 = vsel %vm2851, %v2942, %v2938
        %v2944 = vlaneseq
        %v2945 = vshrl.u32 %v2944, 7
        %v2946 = vsub.s32 %v2853, %v2945
        %v2947 = vrot.slane %v1646, %v2946
        %v2948 = vsel %vm2858, %v2947, %v2943
        %v2949 = vlaneseq
        %v2950 = vshrl.u32 %v2949, 7
        %v2951 = vsub.s32 %v2860, %v2950
        %v2952 = vrot.slane %v1649, %v2951
        %v2953 = vsel %vm2865, %v2952, %v2948
        %v2954 = vlaneseq
        %v2955 = vshrl.u32 %v2954, 7
        %v2956 = vsub.s32 %v2867, %v2955
        %v2957 = vrot.slane %v1652, %v2956
        %v2958 = vsel %vm2872, %v2957, %v2953
        %v2959 = vlaneseq
        %v2960 = vshrl.u32 %v2959, 7
        %v2961 = vsub.s32 %v2874, %v2960
        %v2962 = vrot.slane %v1655, %v2961
        %v2963 = vsel %vm2879, %v2962, %v2958
        %v2964 = vlaneseq
        %v2965 = vshrl.u32 %v2964, 7
        %v2966 = vsub.s32 %v2881, %v2965
        %v2967 = vrot.slane %v1658, %v2966
        %v2968 = vsel %vm2886, %v2967, %v2963
        %v2969 = vlaneseq
        %v2970 = vshrl.u32 %v2969, 7
        %v2971 = vsub.s32 %v2888, %v2970
        %v2972 = vrot.slane %v1661, %v2971
        %v2973 = vsel %vm2893, %v2972, %v2968
        %v2974 = vlaneseq
        %v2975 = vshrl.u32 %v2974, 7
        %v2976 = vsub.s32 %v2785, %v2975
        %v2977 = vrot.slane %v1664, %v2976
        %v2978 = vlaneseq
        %v2979 = vshrl.u32 %v2978, 7
        %v2980 = vsub.s32 %v2790, %v2979
        %v2981 = vrot.slane %v1667, %v2980
        %v2982 = vsel %vm2795, %v2981, %v2977
        %v2983 = vlaneseq
        %v2984 = vshrl.u32 %v2983, 7
        %v2985 = vsub.s32 %v2797, %v2984
        %v2986 = vrot.slane %v1670, %v2985
        %v2987 = vsel %vm2802, %v2986, %v2982
        %v2988 = vlaneseq
        %v2989 = vshrl.u32 %v2988, 7
        %v2990 = vsub.s32 %v2804, %v2989
        %v2991 = vrot.slane %v1673, %v2990
        %v2992 = vsel %vm2809, %v2991, %v2987
        %v2993 = vlaneseq
        %v2994 = vshrl.u32 %v2993, 7
        %v2995 = vsub.s32 %v2811, %v2994
        %v2996 = vrot.slane %v1676, %v2995
        %v2997 = vsel %vm2816, %v2996, %v2992
        %v2998 = vlaneseq
        %v2999 = vshrl.u32 %v2998, 7
        %v3000 = vsub.s32 %v2818, %v2999
        %v3001 = vrot.slane %v1679, %v3000
        %v3002 = vsel %vm2823, %v3001, %v2997
        %v3003 = vlaneseq
        %v3004 = vshrl.u32 %v3003, 7
        %v3005 = vsub.s32 %v2825, %v3004
        %v3006 = vrot.slane %v1682, %v3005
        %v3007 = vsel %vm2830, %v3006, %v3002
        %v3008 = vlaneseq
        %v3009 = vshrl.u32 %v3008, 7
        %v3010 = vsub.s32 %v2832, %v3009
        %v3011 = vrot.slane %v1685, %v3010
        %v3012 = vsel %vm2837, %v3011, %v3007
        %v3013 = vlaneseq
        %v3014 = vshrl.u32 %v3013, 7
        %v3015 = vsub.s32 %v2839, %v3014
        %v3016 = vrot.slane %v1688, %v3015
        %v3017 = vsel %vm2844, %v3016, %v3012
        %v3018 = vlaneseq
        %v3019 = vshrl.u32 %v3018, 7
        %v3020 = vsub.s32 %v2846, %v3019
        %v3021 = vrot.slane %v1691, %v3020
        %v3022 = vsel %vm2851, %v3021, %v3017
        %v3023 = vlaneseq
        %v3024 = vshrl.u32 %v3023, 7
        %v3025 = vsub.s32 %v2853, %v3024
        %v3026 = vrot.slane %v1694, %v3025
        %v3027 = vsel %vm2858, %v3026, %v3022
        %v3028 = vlaneseq
        %v3029 = vshrl.u32 %v3028, 7
        %v3030 = vsub.s32 %v2860, %v3029
        %v3031 = vrot.slane %v1697, %v3030
        %v3032 = vsel %vm2865, %v3031, %v3027
        %v3033 = vlaneseq
        %v3034 = vshrl.u32 %v3033, 7
        %v3035 = vsub.s32 %v2867, %v3034
        %v3036 = vrot.slane %v1700, %v3035
        %v3037 = vsel %vm2872, %v3036, %v3032
        %v3038 = vlaneseq
        %v3039 = vshrl.u32 %v3038, 7
        %v3040 = vsub.s32 %v2874, %v3039
        %v3041 = vrot.slane %v1703, %v3040
        %v3042 = vsel %vm2879, %v3041, %v3037
        %v3043 = vlaneseq
        %v3044 = vshrl.u32 %v3043, 7
        %v3045 = vsub.s32 %v2881, %v3044
        %v3046 = vrot.slane %v1706, %v3045
        %v3047 = vsel %vm2886, %v3046, %v3042
        %v3048 = vlaneseq
        %v3049 = vshrl.u32 %v3048, 7
        %v3050 = vsub.s32 %v2888, %v3049
        %v3051 = vrot.slane %v1709, %v3050
        %v3052 = vsel %vm2893, %v3051, %v3047
        %v3053 = vlaneseq
        %v3054 = vshrl.u32 %v3053, 7
        %v3055 = vsub.s32 %v2785, %v3054
        %v3056 = vrot.slane %v1712, %v3055
        %v3057 = vlaneseq
        %v3058 = vshrl.u32 %v3057, 7
        %v3059 = vsub.s32 %v2790, %v3058
        %v3060 = vrot.slane %v1715, %v3059
        %v3061 = vsel %vm2795, %v3060, %v3056
        %v3062 = vlaneseq
        %v3063 = vshrl.u32 %v3062, 7
        %v3064 = vsub.s32 %v2797, %v3063
        %v3065 = vrot.slane %v1718, %v3064
        %v3066 = vsel %vm2802, %v3065, %v3061
        %v3067 = vlaneseq
        %v3068 = vshrl.u32 %v3067, 7
        %v3069 = vsub.s32 %v2804, %v3068
        %v3070 = vrot.slane %v1721, %v3069
        %v3071 = vsel %vm2809, %v3070, %v3066
        %v3072 = vlaneseq
        %v3073 = vshrl.u32 %v3072, 7
        %v3074 = vsub.s32 %v2811, %v3073
        %v3075 = vrot.slane %v1724, %v3074
        %v3076 = vsel %vm2816, %v3075, %v3071
        %v3077 = vlaneseq
        %v3078 = vshrl.u32 %v3077, 7
        %v3079 = vsub.s32 %v2818, %v3078
        %v3080 = vrot.slane %v1727, %v3079
        %v3081 = vsel %vm2823, %v3080, %v3076
        %v3082 = vlaneseq
        %v3083 = vshrl.u32 %v3082, 7
        %v3084 = vsub.s32 %v2825, %v3083
        %v3085 = vrot.slane %v1730, %v3084
        %v3086 = vsel %vm2830, %v3085, %v3081
        %v3087 = vlaneseq
        %v3088 = vshrl.u32 %v3087, 7
        %v3089 = vsub.s32 %v2832, %v3088
        %v3090 = vrot.slane %v1733, %v3089
        %v3091 = vsel %vm2837, %v3090, %v3086
        %v3092 = vlaneseq
        %v3093 = vshrl.u32 %v3092, 7
        %v3094 = vsub.s32 %v2839, %v3093
        %v3095 = vrot.slane %v1736, %v3094
        %v3096 = vsel %vm2844, %v3095, %v3091
        %v3097 = vlaneseq
        %v3098 = vshrl.u32 %v3097, 7
        %v3099 = vsub.s32 %v2846, %v3098
        %v3100 = vrot.slane %v1739, %v3099
        %v3101 = vsel %vm2851, %v3100, %v3096
        %v3102 = vlaneseq
        %v3103 = vshrl.u32 %v3102, 7
        %v3104 = vsub.s32 %v2853, %v3103
        %v3105 = vrot.slane %v1742, %v3104
        %v3106 = vsel %vm2858, %v3105, %v3101
        %v3107 = vlaneseq
        %v3108 = vshrl.u32 %v3107, 7
        %v3109 = vsub.s32 %v2860, %v3108
        %v3110 = vrot.slane %v1745, %v3109
        %v3111 = vsel %vm2865, %v3110, %v3106
        %v3112 = vlaneseq
        %v3113 = vshrl.u32 %v3112, 7
        %v3114 = vsub.s32 %v2867, %v3113
        %v3115 = vrot.slane %v1748, %v3114
        %v3116 = vsel %vm2872, %v3115, %v3111
        %v3117 = vlaneseq
        %v3118 = vshrl.u32 %v3117, 7
        %v3119 = vsub.s32 %v2874, %v3118
        %v3120 = vrot.slane %v1751, %v3119
        %v3121 = vsel %vm2879, %v3120, %v3116
        %v3122 = vlaneseq
        %v3123 = vshrl.u32 %v3122, 7
        %v3124 = vsub.s32 %v2881, %v3123
        %v3125 = vrot.slane %v1754, %v3124
        %v3126 = vsel %vm2886, %v3125, %v3121
        %v3127 = vlaneseq
        %v3128 = vshrl.u32 %v3127, 7
        %v3129 = vsub.s32 %v2888, %v3128
        %v3130 = vrot.slane %v1757, %v3129
        %v3131 = vsel %vm2893, %v3130, %v3126
        %v3132 = vlaneseq
        %v3133 = vshrl.u32 %v3132, 7
        %v3134 = vsub.s32 %v2785, %v3133
        %v3135 = vrot.slane %v1760, %v3134
        %v3136 = vlaneseq
        %v3137 = vshrl.u32 %v3136, 7
        %v3138 = vsub.s32 %v2790, %v3137
        %v3139 = vrot.slane %v1763, %v3138
        %v3140 = vsel %vm2795, %v3139, %v3135
        %v3141 = vlaneseq
        %v3142 = vshrl.u32 %v3141, 7
        %v3143 = vsub.s32 %v2797, %v3142
        %v3144 = vrot.slane %v1766, %v3143
        %v3145 = vsel %vm2802, %v3144, %v3140
        %v3146 = vlaneseq
        %v3147 = vshrl.u32 %v3146, 7
        %v3148 = vsub.s32 %v2804, %v3147
        %v3149 = vrot.slane %v1769, %v3148
        %v3150 = vsel %vm2809, %v3149, %v3145
        %v3151 = vlaneseq
        %v3152 = vshrl.u32 %v3151, 7
        %v3153 = vsub.s32 %v2811, %v3152
        %v3154 = vrot.slane %v1772, %v3153
        %v3155 = vsel %vm2816, %v3154, %v3150
        %v3156 = vlaneseq
        %v3157 = vshrl.u32 %v3156, 7
        %v3158 = vsub.s32 %v2818, %v3157
        %v3159 = vrot.slane %v1775, %v3158
        %v3160 = vsel %vm2823, %v3159, %v3155
        %v3161 = vlaneseq
        %v3162 = vshrl.u32 %v3161, 7
        %v3163 = vsub.s32 %v2825, %v3162
        %v3164 = vrot.slane %v1778, %v3163
        %v3165 = vsel %vm2830, %v3164, %v3160
        %v3166 = vlaneseq
        %v3167 = vshrl.u32 %v3166, 7
        %v3168 = vsub.s32 %v2832, %v3167
        %v3169 = vrot.slane %v1781, %v3168
        %v3170 = vsel %vm2837, %v3169, %v3165
        %v3171 = vlaneseq
        %v3172 = vshrl.u32 %v3171, 7
        %v3173 = vsub.s32 %v2839, %v3172
        %v3174 = vrot.slane %v1784, %v3173
        %v3175 = vsel %vm2844, %v3174, %v3170
        %v3176 = vlaneseq
        %v3177 = vshrl.u32 %v3176, 7
        %v3178 = vsub.s32 %v2846, %v3177
        %v3179 = vrot.slane %v1787, %v3178
        %v3180 = vsel %vm2851, %v3179, %v3175
        %v3181 = vlaneseq
        %v3182 = vshrl.u32 %v3181, 7
        %v3183 = vsub.s32 %v2853, %v3182
        %v3184 = vrot.slane %v1790, %v3183
        %v3185 = vsel %vm2858, %v3184, %v3180
        %v3186 = vlaneseq
        %v3187 = vshrl.u32 %v3186, 7
        %v3188 = vsub.s32 %v2860, %v3187
        %v3189 = vrot.slane %v1793, %v3188
        %v3190 = vsel %vm2865, %v3189, %v3185
        %v3191 = vlaneseq
        %v3192 = vshrl.u32 %v3191, 7
        %v3193 = vsub.s32 %v2867, %v3192
        %v3194 = vrot.slane %v1796, %v3193
        %v3195 = vsel %vm2872, %v3194, %v3190
        %v3196 = vlaneseq
        %v3197 = vshrl.u32 %v3196, 7
        %v3198 = vsub.s32 %v2874, %v3197
        %v3199 = vrot.slane %v1799, %v3198
        %v3200 = vsel %vm2879, %v3199, %v3195
        %v3201 = vlaneseq
        %v3202 = vshrl.u32 %v3201, 7
        %v3203 = vsub.s32 %v2881, %v3202
        %v3204 = vrot.slane %v1802, %v3203
        %v3205 = vsel %vm2886, %v3204, %v3200
        %v3206 = vlaneseq
        %v3207 = vshrl.u32 %v3206, 7
        %v3208 = vsub.s32 %v2888, %v3207
        %v3209 = vrot.slane %v1805, %v3208
        %v3210 = vsel %vm2893, %v3209, %v3205
        %v3211 = vlaneseq
        %v3212 = vshrl.u32 %v3211, 7
        %v3213 = vsub.s32 %v2785, %v3212
        %v3214 = vrot.slane %v1808, %v3213
        %v3215 = vlaneseq
        %v3216 = vshrl.u32 %v3215, 7
        %v3217 = vsub.s32 %v2790, %v3216
        %v3218 = vrot.slane %v1811, %v3217
        %v3219 = vsel %vm2795, %v3218, %v3214
        %v3220 = vlaneseq
        %v3221 = vshrl.u32 %v3220, 7
        %v3222 = vsub.s32 %v2797, %v3221
        %v3223 = vrot.slane %v1814, %v3222
        %v3224 = vsel %vm2802, %v3223, %v3219
        %v3225 = vlaneseq
        %v3226 = vshrl.u32 %v3225, 7
        %v3227 = vsub.s32 %v2804, %v3226
        %v3228 = vrot.slane %v1817, %v3227
        %v3229 = vsel %vm2809, %v3228, %v3224
        %v3230 = vlaneseq
        %v3231 = vshrl.u32 %v3230, 7
        %v3232 = vsub.s32 %v2811, %v3231
        %v3233 = vrot.slane %v1820, %v3232
        %v3234 = vsel %vm2816, %v3233, %v3229
        %v3235 = vlaneseq
        %v3236 = vshrl.u32 %v3235, 7
        %v3237 = vsub.s32 %v2818, %v3236
        %v3238 = vrot.slane %v1823, %v3237
        %v3239 = vsel %vm2823, %v3238, %v3234
        %v3240 = vlaneseq
        %v3241 = vshrl.u32 %v3240, 7
        %v3242 = vsub.s32 %v2825, %v3241
        %v3243 = vrot.slane %v1826, %v3242
        %v3244 = vsel %vm2830, %v3243, %v3239
        %v3245 = vlaneseq
        %v3246 = vshrl.u32 %v3245, 7
        %v3247 = vsub.s32 %v2832, %v3246
        %v3248 = vrot.slane %v1829, %v3247
        %v3249 = vsel %vm2837, %v3248, %v3244
        %v3250 = vlaneseq
        %v3251 = vshrl.u32 %v3250, 7
        %v3252 = vsub.s32 %v2839, %v3251
        %v3253 = vrot.slane %v1832, %v3252
        %v3254 = vsel %vm2844, %v3253, %v3249
        %v3255 = vlaneseq
        %v3256 = vshrl.u32 %v3255, 7
        %v3257 = vsub.s32 %v2846, %v3256
        %v3258 = vrot.slane %v1835, %v3257
        %v3259 = vsel %vm2851, %v3258, %v3254
        %v3260 = vlaneseq
        %v3261 = vshrl.u32 %v3260, 7
        %v3262 = vsub.s32 %v2853, %v3261
        %v3263 = vrot.slane %v1838, %v3262
        %v3264 = vsel %vm2858, %v3263, %v3259
        %v3265 = vlaneseq
        %v3266 = vshrl.u32 %v3265, 7
        %v3267 = vsub.s32 %v2860, %v3266
        %v3268 = vrot.slane %v1841, %v3267
        %v3269 = vsel %vm2865, %v3268, %v3264
        %v3270 = vlaneseq
        %v3271 = vshrl.u32 %v3270, 7
        %v3272 = vsub.s32 %v2867, %v3271
        %v3273 = vrot.slane %v1844, %v3272
        %v3274 = vsel %vm2872, %v3273, %v3269
        %v3275 = vlaneseq
        %v3276 = vshrl.u32 %v3275, 7
        %v3277 = vsub.s32 %v2874, %v3276
        %v3278 = vrot.slane %v1847, %v3277
        %v3279 = vsel %vm2879, %v3278, %v3274
        %v3280 = vlaneseq
        %v3281 = vshrl.u32 %v3280, 7
        %v3282 = vsub.s32 %v2881, %v3281
        %v3283 = vrot.slane %v1850, %v3282
        %v3284 = vsel %vm2886, %v3283, %v3279
        %v3285 = vlaneseq
        %v3286 = vshrl.u32 %v3285, 7
        %v3287 = vsub.s32 %v2888, %v3286
        %v3288 = vrot.slane %v1853, %v3287
        %v3289 = vsel %vm2893, %v3288, %v3284
        %v3290 = vlaneseq
        %v3291 = vshrl.u32 %v3290, 7
        %v3292 = vsub.s32 %v2785, %v3291
        %v3293 = vrot.slane %v1856, %v3292
        %v3294 = vlaneseq
        %v3295 = vshrl.u32 %v3294, 7
        %v3296 = vsub.s32 %v2790, %v3295
        %v3297 = vrot.slane %v1859, %v3296
        %v3298 = vsel %vm2795, %v3297, %v3293
        %v3299 = vlaneseq
        %v3300 = vshrl.u32 %v3299, 7
        %v3301 = vsub.s32 %v2797, %v3300
        %v3302 = vrot.slane %v1862, %v3301
        %v3303 = vsel %vm2802, %v3302, %v3298
        %v3304 = vlaneseq
        %v3305 = vshrl.u32 %v3304, 7
        %v3306 = vsub.s32 %v2804, %v3305
        %v3307 = vrot.slane %v1865, %v3306
        %v3308 = vsel %vm2809, %v3307, %v3303
        %v3309 = vlaneseq
        %v3310 = vshrl.u32 %v3309, 7
        %v3311 = vsub.s32 %v2811, %v3310
        %v3312 = vrot.slane %v1868, %v3311
        %v3313 = vsel %vm2816, %v3312, %v3308
        %v3314 = vlaneseq
        %v3315 = vshrl.u32 %v3314, 7
        %v3316 = vsub.s32 %v2818, %v3315
        %v3317 = vrot.slane %v1871, %v3316
        %v3318 = vsel %vm2823, %v3317, %v3313
        %v3319 = vlaneseq
        %v3320 = vshrl.u32 %v3319, 7
        %v3321 = vsub.s32 %v2825, %v3320
        %v3322 = vrot.slane %v1874, %v3321
        %v3323 = vsel %vm2830, %v3322, %v3318
        %v3324 = vlaneseq
        %v3325 = vshrl.u32 %v3324, 7
        %v3326 = vsub.s32 %v2832, %v3325
        %v3327 = vrot.slane %v1877, %v3326
        %v3328 = vsel %vm2837, %v3327, %v3323
        %v3329 = vlaneseq
        %v3330 = vshrl.u32 %v3329, 7
        %v3331 = vsub.s32 %v2839, %v3330
        %v3332 = vrot.slane %v1880, %v3331
        %v3333 = vsel %vm2844, %v3332, %v3328
        %v3334 = vlaneseq
        %v3335 = vshrl.u32 %v3334, 7
        %v3336 = vsub.s32 %v2846, %v3335
        %v3337 = vrot.slane %v1883, %v3336
        %v3338 = vsel %vm2851, %v3337, %v3333
        %v3339 = vlaneseq
        %v3340 = vshrl.u32 %v3339, 7
        %v3341 = vsub.s32 %v2853, %v3340
        %v3342 = vrot.slane %v1886, %v3341
        %v3343 = vsel %vm2858, %v3342, %v3338
        %v3344 = vlaneseq
        %v3345 = vshrl.u32 %v3344, 7
        %v3346 = vsub.s32 %v2860, %v3345
        %v3347 = vrot.slane %v1889, %v3346
        %v3348 = vsel %vm2865, %v3347, %v3343
        %v3349 = vlaneseq
        %v3350 = vshrl.u32 %v3349, 7
        %v3351 = vsub.s32 %v2867, %v3350
        %v3352 = vrot.slane %v1892, %v3351
        %v3353 = vsel %vm2872, %v3352, %v3348
        %v3354 = vlaneseq
        %v3355 = vshrl.u32 %v3354, 7
        %v3356 = vsub.s32 %v2874, %v3355
        %v3357 = vrot.slane %v1895, %v3356
        %v3358 = vsel %vm2879, %v3357, %v3353
        %v3359 = vlaneseq
        %v3360 = vshrl.u32 %v3359, 7
        %v3361 = vsub.s32 %v2881, %v3360
        %v3362 = vrot.slane %v1898, %v3361
        %v3363 = vsel %vm2886, %v3362, %v3358
        %v3364 = vlaneseq
        %v3365 = vshrl.u32 %v3364, 7
        %v3366 = vsub.s32 %v2888, %v3365
        %v3367 = vrot.slane %v1901, %v3366
        %v3368 = vsel %vm2893, %v3367, %v3363
        %v3369 = vlaneseq
        %v3370 = vshrl.u32 %v3369, 7
        %v3371 = vsub.s32 %v2785, %v3370
        %v3372 = vrot.slane %v1904, %v3371
        %v3373 = vlaneseq
        %v3374 = vshrl.u32 %v3373, 7
        %v3375 = vsub.s32 %v2790, %v3374
        %v3376 = vrot.slane %v1907, %v3375
        %v3377 = vsel %vm2795, %v3376, %v3372
        %v3378 = vlaneseq
        %v3379 = vshrl.u32 %v3378, 7
        %v3380 = vsub.s32 %v2797, %v3379
        %v3381 = vrot.slane %v1910, %v3380
        %v3382 = vsel %vm2802, %v3381, %v3377
        %v3383 = vlaneseq
        %v3384 = vshrl.u32 %v3383, 7
        %v3385 = vsub.s32 %v2804, %v3384
        %v3386 = vrot.slane %v1913, %v3385
        %v3387 = vsel %vm2809, %v3386, %v3382
        %v3388 = vlaneseq
        %v3389 = vshrl.u32 %v3388, 7
        %v3390 = vsub.s32 %v2811, %v3389
        %v3391 = vrot.slane %v1916, %v3390
        %v3392 = vsel %vm2816, %v3391, %v3387
        %v3393 = vlaneseq
        %v3394 = vshrl.u32 %v3393, 7
        %v3395 = vsub.s32 %v2818, %v3394
        %v3396 = vrot.slane %v1919, %v3395
        %v3397 = vsel %vm2823, %v3396, %v3392
        %v3398 = vlaneseq
        %v3399 = vshrl.u32 %v3398, 7
        %v3400 = vsub.s32 %v2825, %v3399
        %v3401 = vrot.slane %v1922, %v3400
        %v3402 = vsel %vm2830, %v3401, %v3397
        %v3403 = vlaneseq
        %v3404 = vshrl.u32 %v3403, 7
        %v3405 = vsub.s32 %v2832, %v3404
        %v3406 = vrot.slane %v1925, %v3405
        %v3407 = vsel %vm2837, %v3406, %v3402
        %v3408 = vlaneseq
        %v3409 = vshrl.u32 %v3408, 7
        %v3410 = vsub.s32 %v2839, %v3409
        %v3411 = vrot.slane %v1928, %v3410
        %v3412 = vsel %vm2844, %v3411, %v3407
        %v3413 = vlaneseq
        %v3414 = vshrl.u32 %v3413, 7
        %v3415 = vsub.s32 %v2846, %v3414
        %v3416 = vrot.slane %v1931, %v3415
        %v3417 = vsel %vm2851, %v3416, %v3412
        %v3418 = vlaneseq
        %v3419 = vshrl.u32 %v3418, 7
        %v3420 = vsub.s32 %v2853, %v3419
        %v3421 = vrot.slane %v1934, %v3420
        %v3422 = vsel %vm2858, %v3421, %v3417
        %v3423 = vlaneseq
        %v3424 = vshrl.u32 %v3423, 7
        %v3425 = vsub.s32 %v2860, %v3424
        %v3426 = vrot.slane %v1937, %v3425
        %v3427 = vsel %vm2865, %v3426, %v3422
        %v3428 = vlaneseq
        %v3429 = vshrl.u32 %v3428, 7
        %v3430 = vsub.s32 %v2867, %v3429
        %v3431 = vrot.slane %v1940, %v3430
        %v3432 = vsel %vm2872, %v3431, %v3427
        %v3433 = vlaneseq
        %v3434 = vshrl.u32 %v3433, 7
        %v3435 = vsub.s32 %v2874, %v3434
        %v3436 = vrot.slane %v1943, %v3435
        %v3437 = vsel %vm2879, %v3436, %v3432
        %v3438 = vlaneseq
        %v3439 = vshrl.u32 %v3438, 7
        %v3440 = vsub.s32 %v2881, %v3439
        %v3441 = vrot.slane %v1946, %v3440
        %v3442 = vsel %vm2886, %v3441, %v3437
        %v3443 = vlaneseq
        %v3444 = vshrl.u32 %v3443, 7
        %v3445 = vsub.s32 %v2888, %v3444
        %v3446 = vrot.slane %v1949, %v3445
        %v3447 = vsel %vm2893, %v3446, %v3442
        %v3448 = vlaneseq
        %v3449 = vshrl.u32 %v3448, 7
        %v3450 = vsub.s32 %v2785, %v3449
        %v3451 = vrot.slane %v1952, %v3450
        %v3452 = vlaneseq
        %v3453 = vshrl.u32 %v3452, 7
        %v3454 = vsub.s32 %v2790, %v3453
        %v3455 = vrot.slane %v1955, %v3454
        %v3456 = vsel %vm2795, %v3455, %v3451
        %v3457 = vlaneseq
        %v3458 = vshrl.u32 %v3457, 7
        %v3459 = vsub.s32 %v2797, %v3458
        %v3460 = vrot.slane %v1958, %v3459
        %v3461 = vsel %vm2802, %v3460, %v3456
        %v3462 = vlaneseq
        %v3463 = vshrl.u32 %v3462, 7
        %v3464 = vsub.s32 %v2804, %v3463
        %v3465 = vrot.slane %v1961, %v3464
        %v3466 = vsel %vm2809, %v3465, %v3461
        %v3467 = vlaneseq
        %v3468 = vshrl.u32 %v3467, 7
        %v3469 = vsub.s32 %v2811, %v3468
        %v3470 = vrot.slane %v1964, %v3469
        %v3471 = vsel %vm2816, %v3470, %v3466
        %v3472 = vlaneseq
        %v3473 = vshrl.u32 %v3472, 7
        %v3474 = vsub.s32 %v2818, %v3473
        %v3475 = vrot.slane %v1967, %v3474
        %v3476 = vsel %vm2823, %v3475, %v3471
        %v3477 = vlaneseq
        %v3478 = vshrl.u32 %v3477, 7
        %v3479 = vsub.s32 %v2825, %v3478
        %v3480 = vrot.slane %v1970, %v3479
        %v3481 = vsel %vm2830, %v3480, %v3476
        %v3482 = vlaneseq
        %v3483 = vshrl.u32 %v3482, 7
        %v3484 = vsub.s32 %v2785, %v3483
        %v3485 = vrot.slane %v1973, %v3484
        %v3486 = vlaneseq
        %v3487 = vshrl.u32 %v3486, 7
        %v3488 = vsub.s32 %v2790, %v3487
        %v3489 = vrot.slane %v1976, %v3488
        %v3490 = vsel %vm2795, %v3489, %v3485
        %v3491 = vlaneseq
        %v3492 = vshrl.u32 %v3491, 7
        %v3493 = vsub.s32 %v2797, %v3492
        %v3494 = vrot.slane %v1979, %v3493
        %v3495 = vsel %vm2802, %v3494, %v3490
        %v3496 = vlaneseq
        %v3497 = vshrl.u32 %v3496, 7
        %v3498 = vsub.s32 %v2804, %v3497
        %v3499 = vrot.slane %v1982, %v3498
        %v3500 = vsel %vm2809, %v3499, %v3495
        %v3501 = vlaneseq
        %v3502 = vshrl.u32 %v3501, 7
        %v3503 = vsub.s32 %v2811, %v3502
        %v3504 = vrot.slane %v1985, %v3503
        %v3505 = vsel %vm2816, %v3504, %v3500
        %v3506 = vlaneseq
        %v3507 = vshrl.u32 %v3506, 7
        %v3508 = vsub.s32 %v2818, %v3507
        %v3509 = vrot.slane %v1988, %v3508
        %v3510 = vsel %vm2823, %v3509, %v3505
        %v3511 = vlaneseq
        %v3512 = vshrl.u32 %v3511, 7
        %v3513 = vsub.s32 %v2825, %v3512
        %v3514 = vrot.slane %v1991, %v3513
        %v3515 = vsel %vm2830, %v3514, %v3510
        %v3516 = vlaneseq
        %v3517 = vshrl.u32 %v3516, 7
        %v3518 = vsub.s32 %v2832, %v3517
        %v3519 = vrot.slane %v1994, %v3518
        %v3520 = vsel %vm2837, %v3519, %v3515
        %v3521 = vlaneseq
        %v3522 = vshrl.u32 %v3521, 7
        %v3523 = vsub.s32 %v2839, %v3522
        %v3524 = vrot.slane %v1997, %v3523
        %v3525 = vsel %vm2844, %v3524, %v3520
        %v3526 = vlaneseq
        %v3527 = vshrl.u32 %v3526, 7
        %v3528 = vsub.s32 %v2846, %v3527
        %v3529 = vrot.slane %v2000, %v3528
        %v3530 = vsel %vm2851, %v3529, %v3525
        %v3531 = vlaneseq
        %v3532 = vshrl.u32 %v3531, 7
        %v3533 = vsub.s32 %v2853, %v3532
        %v3534 = vrot.slane %v2003, %v3533
        %v3535 = vsel %vm2858, %v3534, %v3530
        %v3536 = vlaneseq
        %v3537 = vshrl.u32 %v3536, 7
        %v3538 = vsub.s32 %v2860, %v3537
        %v3539 = vrot.slane %v2006, %v3538
        %v3540 = vsel %vm2865, %v3539, %v3535
        %v3541 = vlaneseq
        %v3542 = vshrl.u32 %v3541, 7
        %v3543 = vsub.s32 %v2867, %v3542
        %v3544 = vrot.slane %v2009, %v3543
        %v3545 = vsel %vm2872, %v3544, %v3540
        %v3546 = vlaneseq
        %v3547 = vshrl.u32 %v3546, 7
        %v3548 = vsub.s32 %v2874, %v3547
        %v3549 = vrot.slane %v2012, %v3548
        %v3550 = vsel %vm2879, %v3549, %v3545
        %v3551 = vlaneseq
        %v3552 = vshrl.u32 %v3551, 7
        %v3553 = vsub.s32 %v2881, %v3552
        %v3554 = vrot.slane %v2015, %v3553
        %v3555 = vsel %vm2886, %v3554, %v3550
        %v3556 = vlaneseq
        %v3557 = vshrl.u32 %v3556, 7
        %v3558 = vsub.s32 %v2888, %v3557
        %v3559 = vrot.slane %v2018, %v3558
        %v3560 = vsel %vm2893, %v3559, %v3555
        %v3561 = vlaneseq
        %v3562 = vshrl.u32 %v3561, 7
        %v3563 = vsub.s32 %v2785, %v3562
        %v3564 = vrot.slane %v2021, %v3563
        %v3565 = vlaneseq
        %v3566 = vshrl.u32 %v3565, 7
        %v3567 = vsub.s32 %v2790, %v3566
        %v3568 = vrot.slane %v2024, %v3567
        %v3569 = vsel %vm2795, %v3568, %v3564
        %v3570 = vlaneseq
        %v3571 = vshrl.u32 %v3570, 7
        %v3572 = vsub.s32 %v2797, %v3571
        %v3573 = vrot.slane %v2027, %v3572
        %v3574 = vsel %vm2802, %v3573, %v3569
        %v3575 = vlaneseq
        %v3576 = vshrl.u32 %v3575, 7
        %v3577 = vsub.s32 %v2804, %v3576
        %v3578 = vrot.slane %v2030, %v3577
        %v3579 = vsel %vm2809, %v3578, %v3574
        %v3580 = vlaneseq
        %v3581 = vshrl.u32 %v3580, 7
        %v3582 = vsub.s32 %v2811, %v3581
        %v3583 = vrot.slane %v2033, %v3582
        %v3584 = vsel %vm2816, %v3583, %v3579
        %v3585 = vlaneseq
        %v3586 = vshrl.u32 %v3585, 7
        %v3587 = vsub.s32 %v2818, %v3586
        %v3588 = vrot.slane %v2036, %v3587
        %v3589 = vsel %vm2823, %v3588, %v3584
        %v3590 = vlaneseq
        %v3591 = vshrl.u32 %v3590, 7
        %v3592 = vsub.s32 %v2825, %v3591
        %v3593 = vrot.slane %v2039, %v3592
        %v3594 = vsel %vm2830, %v3593, %v3589
        %v3595 = vlaneseq
        %v3596 = vshrl.u32 %v3595, 7
        %v3597 = vsub.s32 %v2832, %v3596
        %v3598 = vrot.slane %v2042, %v3597
        %v3599 = vsel %vm2837, %v3598, %v3594
        %v3600 = vlaneseq
        %v3601 = vshrl.u32 %v3600, 7
        %v3602 = vsub.s32 %v2839, %v3601
        %v3603 = vrot.slane %v2045, %v3602
        %v3604 = vsel %vm2844, %v3603, %v3599
        %v3605 = vlaneseq
        %v3606 = vshrl.u32 %v3605, 7
        %v3607 = vsub.s32 %v2846, %v3606
        %v3608 = vrot.slane %v2048, %v3607
        %v3609 = vsel %vm2851, %v3608, %v3604
        %v3610 = vlaneseq
        %v3611 = vshrl.u32 %v3610, 7
        %v3612 = vsub.s32 %v2853, %v3611
        %v3613 = vrot.slane %v2051, %v3612
        %v3614 = vsel %vm2858, %v3613, %v3609
        %v3615 = vlaneseq
        %v3616 = vshrl.u32 %v3615, 7
        %v3617 = vsub.s32 %v2860, %v3616
        %v3618 = vrot.slane %v2054, %v3617
        %v3619 = vsel %vm2865, %v3618, %v3614
        %v3620 = vlaneseq
        %v3621 = vshrl.u32 %v3620, 7
        %v3622 = vsub.s32 %v2867, %v3621
        %v3623 = vrot.slane %v2057, %v3622
        %v3624 = vsel %vm2872, %v3623, %v3619
        %v3625 = vlaneseq
        %v3626 = vshrl.u32 %v3625, 7
        %v3627 = vsub.s32 %v2874, %v3626
        %v3628 = vrot.slane %v2060, %v3627
        %v3629 = vsel %vm2879, %v3628, %v3624
        %v3630 = vlaneseq
        %v3631 = vshrl.u32 %v3630, 7
        %v3632 = vsub.s32 %v2881, %v3631
        %v3633 = vrot.slane %v2063, %v3632
        %v3634 = vsel %vm2886, %v3633, %v3629
        %v3635 = vlaneseq
        %v3636 = vshrl.u32 %v3635, 7
        %v3637 = vsub.s32 %v2888, %v3636
        %v3638 = vrot.slane %v2066, %v3637
        %v3639 = vsel %vm2893, %v3638, %v3634
        %v3640 = vlaneseq
        %v3641 = vshrl.u32 %v3640, 7
        %v3642 = vsub.s32 %v2785, %v3641
        %v3643 = vrot.slane %v2069, %v3642
        %v3644 = vlaneseq
        %v3645 = vshrl.u32 %v3644, 7
        %v3646 = vsub.s32 %v2790, %v3645
        %v3647 = vrot.slane %v2072, %v3646
        %v3648 = vsel %vm2795, %v3647, %v3643
        %v3649 = vlaneseq
        %v3650 = vshrl.u32 %v3649, 7
        %v3651 = vsub.s32 %v2797, %v3650
        %v3652 = vrot.slane %v2075, %v3651
        %v3653 = vsel %vm2802, %v3652, %v3648
        %v3654 = vlaneseq
        %v3655 = vshrl.u32 %v3654, 7
        %v3656 = vsub.s32 %v2804, %v3655
        %v3657 = vrot.slane %v2078, %v3656
        %v3658 = vsel %vm2809, %v3657, %v3653
        %v3659 = vlaneseq
        %v3660 = vshrl.u32 %v3659, 7
        %v3661 = vsub.s32 %v2811, %v3660
        %v3662 = vrot.slane %v2081, %v3661
        %v3663 = vsel %vm2816, %v3662, %v3658
        %v3664 = vlaneseq
        %v3665 = vshrl.u32 %v3664, 7
        %v3666 = vsub.s32 %v2818, %v3665
        %v3667 = vrot.slane %v2084, %v3666
        %v3668 = vsel %vm2823, %v3667, %v3663
        %v3669 = vlaneseq
        %v3670 = vshrl.u32 %v3669, 7
        %v3671 = vsub.s32 %v2825, %v3670
        %v3672 = vrot.slane %v2087, %v3671
        %v3673 = vsel %vm2830, %v3672, %v3668
        %v3674 = vlaneseq
        %v3675 = vshrl.u32 %v3674, 7
        %v3676 = vsub.s32 %v2832, %v3675
        %v3677 = vrot.slane %v2090, %v3676
        %v3678 = vsel %vm2837, %v3677, %v3673
        %v3679 = vlaneseq
        %v3680 = vshrl.u32 %v3679, 7
        %v3681 = vsub.s32 %v2839, %v3680
        %v3682 = vrot.slane %v2093, %v3681
        %v3683 = vsel %vm2844, %v3682, %v3678
        %v3684 = vlaneseq
        %v3685 = vshrl.u32 %v3684, 7
        %v3686 = vsub.s32 %v2846, %v3685
        %v3687 = vrot.slane %v2096, %v3686
        %v3688 = vsel %vm2851, %v3687, %v3683
        %v3689 = vlaneseq
        %v3690 = vshrl.u32 %v3689, 7
        %v3691 = vsub.s32 %v2853, %v3690
        %v3692 = vrot.slane %v2099, %v3691
        %v3693 = vsel %vm2858, %v3692, %v3688
        %v3694 = vlaneseq
        %v3695 = vshrl.u32 %v3694, 7
        %v3696 = vsub.s32 %v2860, %v3695
        %v3697 = vrot.slane %v2102, %v3696
        %v3698 = vsel %vm2865, %v3697, %v3693
        %v3699 = vlaneseq
        %v3700 = vshrl.u32 %v3699, 7
        %v3701 = vsub.s32 %v2867, %v3700
        %v3702 = vrot.slane %v2105, %v3701
        %v3703 = vsel %vm2872, %v3702, %v3698
        %v3704 = vlaneseq
        %v3705 = vshrl.u32 %v3704, 7
        %v3706 = vsub.s32 %v2874, %v3705
        %v3707 = vrot.slane %v2108, %v3706
        %v3708 = vsel %vm2879, %v3707, %v3703
        %v3709 = vlaneseq
        %v3710 = vshrl.u32 %v3709, 7
        %v3711 = vsub.s32 %v2881, %v3710
        %v3712 = vrot.slane %v2111, %v3711
        %v3713 = vsel %vm2886, %v3712, %v3708
        %v3714 = vlaneseq
        %v3715 = vshrl.u32 %v3714, 7
        %v3716 = vsub.s32 %v2888, %v3715
        %v3717 = vrot.slane %v2114, %v3716
        %v3718 = vsel %vm2893, %v3717, %v3713
        %v3719 = vlaneseq
        %v3720 = vshrl.u32 %v3719, 7
        %v3721 = vsub.s32 %v2785, %v3720
        %v3722 = vrot.slane %v2117, %v3721
        %v3723 = vlaneseq
        %v3724 = vshrl.u32 %v3723, 7
        %v3725 = vsub.s32 %v2790, %v3724
        %v3726 = vrot.slane %v2120, %v3725
        %v3727 = vsel %vm2795, %v3726, %v3722
        %v3728 = vlaneseq
        %v3729 = vshrl.u32 %v3728, 7
        %v3730 = vsub.s32 %v2797, %v3729
        %v3731 = vrot.slane %v2123, %v3730
        %v3732 = vsel %vm2802, %v3731, %v3727
        %v3733 = vlaneseq
        %v3734 = vshrl.u32 %v3733, 7
        %v3735 = vsub.s32 %v2804, %v3734
        %v3736 = vrot.slane %v2126, %v3735
        %v3737 = vsel %vm2809, %v3736, %v3732
        %v3738 = vlaneseq
        %v3739 = vshrl.u32 %v3738, 7
        %v3740 = vsub.s32 %v2811, %v3739
        %v3741 = vrot.slane %v2129, %v3740
        %v3742 = vsel %vm2816, %v3741, %v3737
        %v3743 = vlaneseq
        %v3744 = vshrl.u32 %v3743, 7
        %v3745 = vsub.s32 %v2818, %v3744
        %v3746 = vrot.slane %v2132, %v3745
        %v3747 = vsel %vm2823, %v3746, %v3742
        %v3748 = vlaneseq
        %v3749 = vshrl.u32 %v3748, 7
        %v3750 = vsub.s32 %v2825, %v3749
        %v3751 = vrot.slane %v2135, %v3750
        %v3752 = vsel %vm2830, %v3751, %v3747
        %v3753 = vlaneseq
        %v3754 = vshrl.u32 %v3753, 7
        %v3755 = vsub.s32 %v2832, %v3754
        %v3756 = vrot.slane %v2138, %v3755
        %v3757 = vsel %vm2837, %v3756, %v3752
        %v3758 = vlaneseq
        %v3759 = vshrl.u32 %v3758, 7
        %v3760 = vsub.s32 %v2839, %v3759
        %v3761 = vrot.slane %v2141, %v3760
        %v3762 = vsel %vm2844, %v3761, %v3757
        %v3763 = vlaneseq
        %v3764 = vshrl.u32 %v3763, 7
        %v3765 = vsub.s32 %v2846, %v3764
        %v3766 = vrot.slane %v2144, %v3765
        %v3767 = vsel %vm2851, %v3766, %v3762
        %v3768 = vlaneseq
        %v3769 = vshrl.u32 %v3768, 7
        %v3770 = vsub.s32 %v2853, %v3769
        %v3771 = vrot.slane %v2147, %v3770
        %v3772 = vsel %vm2858, %v3771, %v3767
        %v3773 = vlaneseq
        %v3774 = vshrl.u32 %v3773, 7
        %v3775 = vsub.s32 %v2860, %v3774
        %v3776 = vrot.slane %v2150, %v3775
        %v3777 = vsel %vm2865, %v3776, %v3772
        %v3778 = vlaneseq
        %v3779 = vshrl.u32 %v3778, 7
        %v3780 = vsub.s32 %v2867, %v3779
        %v3781 = vrot.slane %v2153, %v3780
        %v3782 = vsel %vm2872, %v3781, %v3777
        %v3783 = vlaneseq
        %v3784 = vshrl.u32 %v3783, 7
        %v3785 = vsub.s32 %v2874, %v3784
        %v3786 = vrot.slane %v2156, %v3785
        %v3787 = vsel %vm2879, %v3786, %v3782
        %v3788 = vlaneseq
        %v3789 = vshrl.u32 %v3788, 7
        %v3790 = vsub.s32 %v2881, %v3789
        %v3791 = vrot.slane %v2159, %v3790
        %v3792 = vsel %vm2886, %v3791, %v3787
        %v3793 = vlaneseq
        %v3794 = vshrl.u32 %v3793, 7
        %v3795 = vsub.s32 %v2888, %v3794
        %v3796 = vrot.slane %v2162, %v3795
        %v3797 = vsel %vm2893, %v3796, %v3792
        %v3798 = vlaneseq
        %v3799 = vshrl.u32 %v3798, 7
        %v3800 = vsub.s32 %v2785, %v3799
        %v3801 = vrot.slane %v2165, %v3800
        %v3802 = vlaneseq
        %v3803 = vshrl.u32 %v3802, 7
        %v3804 = vsub.s32 %v2790, %v3803
        %v3805 = vrot.slane %v2168, %v3804
        %v3806 = vsel %vm2795, %v3805, %v3801
        %v3807 = vlaneseq
        %v3808 = vshrl.u32 %v3807, 7
        %v3809 = vsub.s32 %v2797, %v3808
        %v3810 = vrot.slane %v2171, %v3809
        %v3811 = vsel %vm2802, %v3810, %v3806
        %v3812 = vlaneseq
        %v3813 = vshrl.u32 %v3812, 7
        %v3814 = vsub.s32 %v2804, %v3813
        %v3815 = vrot.slane %v2174, %v3814
        %v3816 = vsel %vm2809, %v3815, %v3811
        %v3817 = vlaneseq
        %v3818 = vshrl.u32 %v3817, 7
        %v3819 = vsub.s32 %v2811, %v3818
        %v3820 = vrot.slane %v2177, %v3819
        %v3821 = vsel %vm2816, %v3820, %v3816
        %v3822 = vlaneseq
        %v3823 = vshrl.u32 %v3822, 7
        %v3824 = vsub.s32 %v2818, %v3823
        %v3825 = vrot.slane %v2180, %v3824
        %v3826 = vsel %vm2823, %v3825, %v3821
        %v3827 = vlaneseq
        %v3828 = vshrl.u32 %v3827, 7
        %v3829 = vsub.s32 %v2825, %v3828
        %v3830 = vrot.slane %v2183, %v3829
        %v3831 = vsel %vm2830, %v3830, %v3826
        %v3832 = vlaneseq
        %v3833 = vshrl.u32 %v3832, 7
        %v3834 = vsub.s32 %v2832, %v3833
        %v3835 = vrot.slane %v2186, %v3834
        %v3836 = vsel %vm2837, %v3835, %v3831
        %v3837 = vlaneseq
        %v3838 = vshrl.u32 %v3837, 7
        %v3839 = vsub.s32 %v2839, %v3838
        %v3840 = vrot.slane %v2189, %v3839
        %v3841 = vsel %vm2844, %v3840, %v3836
        %v3842 = vlaneseq
        %v3843 = vshrl.u32 %v3842, 7
        %v3844 = vsub.s32 %v2846, %v3843
        %v3845 = vrot.slane %v2192, %v3844
        %v3846 = vsel %vm2851, %v3845, %v3841
        %v3847 = vlaneseq
        %v3848 = vshrl.u32 %v3847, 7
        %v3849 = vsub.s32 %v2853, %v3848
        %v3850 = vrot.slane %v2195, %v3849
        %v3851 = vsel %vm2858, %v3850, %v3846
        %v3852 = vlaneseq
        %v3853 = vshrl.u32 %v3852, 7
        %v3854 = vsub.s32 %v2860, %v3853
        %v3855 = vrot.slane %v2198, %v3854
        %v3856 = vsel %vm2865, %v3855, %v3851
        %v3857 = vlaneseq
        %v3858 = vshrl.u32 %v3857, 7
        %v3859 = vsub.s32 %v2867, %v3858
        %v3860 = vrot.slane %v2201, %v3859
        %v3861 = vsel %vm2872, %v3860, %v3856
        %v3862 = vlaneseq
        %v3863 = vshrl.u32 %v3862, 7
        %v3864 = vsub.s32 %v2874, %v3863
        %v3865 = vrot.slane %v2204, %v3864
        %v3866 = vsel %vm2879, %v3865, %v3861
        %v3867 = vlaneseq
        %v3868 = vshrl.u32 %v3867, 7
        %v3869 = vsub.s32 %v2881, %v3868
        %v3870 = vrot.slane %v2207, %v3869
        %v3871 = vsel %vm2886, %v3870, %v3866
        %v3872 = vlaneseq
        %v3873 = vshrl.u32 %v3872, 7
        %v3874 = vsub.s32 %v2888, %v3873
        %v3875 = vrot.slane %v2210, %v3874
        %v3876 = vsel %vm2893, %v3875, %v3871
        %v3877 = vlaneseq
        %v3878 = vshrl.u32 %v3877, 7
        %v3879 = vsub.s32 %v2785, %v3878
        %v3880 = vrot.slane %v2213, %v3879
        %v3881 = vlaneseq
        %v3882 = vshrl.u32 %v3881, 7
        %v3883 = vsub.s32 %v2790, %v3882
        %v3884 = vrot.slane %v2216, %v3883
        %v3885 = vsel %vm2795, %v3884, %v3880
        %v3886 = vlaneseq
        %v3887 = vshrl.u32 %v3886, 7
        %v3888 = vsub.s32 %v2797, %v3887
        %v3889 = vrot.slane %v2219, %v3888
        %v3890 = vsel %vm2802, %v3889, %v3885
        %v3891 = vlaneseq
        %v3892 = vshrl.u32 %v3891, 7
        %v3893 = vsub.s32 %v2804, %v3892
        %v3894 = vrot.slane %v2222, %v3893
        %v3895 = vsel %vm2809, %v3894, %v3890
        %v3896 = vlaneseq
        %v3897 = vshrl.u32 %v3896, 7
        %v3898 = vsub.s32 %v2811, %v3897
        %v3899 = vrot.slane %v2225, %v3898
        %v3900 = vsel %vm2816, %v3899, %v3895
        %v3901 = vlaneseq
        %v3902 = vshrl.u32 %v3901, 7
        %v3903 = vsub.s32 %v2818, %v3902
        %v3904 = vrot.slane %v2228, %v3903
        %v3905 = vsel %vm2823, %v3904, %v3900
        %v3906 = vlaneseq
        %v3907 = vshrl.u32 %v3906, 7
        %v3908 = vsub.s32 %v2825, %v3907
        %v3909 = vrot.slane %v2231, %v3908
        %v3910 = vsel %vm2830, %v3909, %v3905
        %v3911 = vlaneseq
        %v3912 = vshrl.u32 %v3911, 7
        %v3913 = vsub.s32 %v2832, %v3912
        %v3914 = vrot.slane %v2234, %v3913
        %v3915 = vsel %vm2837, %v3914, %v3910
        %v3916 = vlaneseq
        %v3917 = vshrl.u32 %v3916, 7
        %v3918 = vsub.s32 %v2839, %v3917
        %v3919 = vrot.slane %v2237, %v3918
        %v3920 = vsel %vm2844, %v3919, %v3915
        %v3921 = vlaneseq
        %v3922 = vshrl.u32 %v3921, 7
        %v3923 = vsub.s32 %v2846, %v3922
        %v3924 = vrot.slane %v2240, %v3923
        %v3925 = vsel %vm2851, %v3924, %v3920
        %v3926 = vlaneseq
        %v3927 = vshrl.u32 %v3926, 7
        %v3928 = vsub.s32 %v2853, %v3927
        %v3929 = vrot.slane %v2243, %v3928
        %v3930 = vsel %vm2858, %v3929, %v3925
        %v3931 = vlaneseq
        %v3932 = vshrl.u32 %v3931, 7
        %v3933 = vsub.s32 %v2860, %v3932
        %v3934 = vrot.slane %v2246, %v3933
        %v3935 = vsel %vm2865, %v3934, %v3930
        %v3936 = vlaneseq
        %v3937 = vshrl.u32 %v3936, 7
        %v3938 = vsub.s32 %v2867, %v3937
        %v3939 = vrot.slane %v2249, %v3938
        %v3940 = vsel %vm2872, %v3939, %v3935
        %v3941 = vlaneseq
        %v3942 = vshrl.u32 %v3941, 7
        %v3943 = vsub.s32 %v2874, %v3942
        %v3944 = vrot.slane %v2252, %v3943
        %v3945 = vsel %vm2879, %v3944, %v3940
        %v3946 = vlaneseq
        %v3947 = vshrl.u32 %v3946, 7
        %v3948 = vsub.s32 %v2881, %v3947
        %v3949 = vrot.slane %v2255, %v3948
        %v3950 = vsel %vm2886, %v3949, %v3945
        %v3951 = vlaneseq
        %v3952 = vshrl.u32 %v3951, 7
        %v3953 = vsub.s32 %v2888, %v3952
        %v3954 = vrot.slane %v2258, %v3953
        %v3955 = vsel %vm2893, %v3954, %v3950
        %v3956 = vlaneseq
        %v3957 = vshrl.u32 %v3956, 7
        %v3958 = vsub.s32 %v2785, %v3957
        %v3959 = vrot.slane %v2261, %v3958
        %v3960 = vlaneseq
        %v3961 = vshrl.u32 %v3960, 7
        %v3962 = vsub.s32 %v2790, %v3961
        %v3963 = vrot.slane %v2264, %v3962
        %v3964 = vsel %vm2795, %v3963, %v3959
        %v3965 = vlaneseq
        %v3966 = vshrl.u32 %v3965, 7
        %v3967 = vsub.s32 %v2797, %v3966
        %v3968 = vrot.slane %v2267, %v3967
        %v3969 = vsel %vm2802, %v3968, %v3964
        %v3970 = vlaneseq
        %v3971 = vshrl.u32 %v3970, 7
        %v3972 = vsub.s32 %v2804, %v3971
        %v3973 = vrot.slane %v2270, %v3972
        %v3974 = vsel %vm2809, %v3973, %v3969
        %v3975 = vlaneseq
        %v3976 = vshrl.u32 %v3975, 7
        %v3977 = vsub.s32 %v2811, %v3976
        %v3978 = vrot.slane %v2273, %v3977
        %v3979 = vsel %vm2816, %v3978, %v3974
        %v3980 = vlaneseq
        %v3981 = vshrl.u32 %v3980, 7
        %v3982 = vsub.s32 %v2818, %v3981
        %v3983 = vrot.slane %v2276, %v3982
        %v3984 = vsel %vm2823, %v3983, %v3979
        %v3985 = vlaneseq
        %v3986 = vshrl.u32 %v3985, 7
        %v3987 = vsub.s32 %v2825, %v3986
        %v3988 = vrot.slane %v2279, %v3987
        %v3989 = vsel %vm2830, %v3988, %v3984
        %v3990 = vlaneseq
        %v3991 = vshrl.u32 %v3990, 7
        %v3992 = vsub.s32 %v2832, %v3991
        %v3993 = vrot.slane %v2282, %v3992
        %v3994 = vsel %vm2837, %v3993, %v3989
        %v3995 = vlaneseq
        %v3996 = vshrl.u32 %v3995, 7
        %v3997 = vsub.s32 %v2839, %v3996
        %v3998 = vrot.slane %v2285, %v3997
        %v3999 = vsel %vm2844, %v3998, %v3994
        %v4000 = vlaneseq
        %v4001 = vshrl.u32 %v4000, 7
        %v4002 = vsub.s32 %v2846, %v4001
        %v4003 = vrot.slane %v2288, %v4002
        %v4004 = vsel %vm2851, %v4003, %v3999
        %v4005 = vlaneseq
        %v4006 = vshrl.u32 %v4005, 7
        %v4007 = vsub.s32 %v2853, %v4006
        %v4008 = vrot.slane %v2291, %v4007
        %v4009 = vsel %vm2858, %v4008, %v4004
        %v4010 = vlaneseq
        %v4011 = vshrl.u32 %v4010, 7
        %v4012 = vsub.s32 %v2860, %v4011
        %v4013 = vrot.slane %v2294, %v4012
        %v4014 = vsel %vm2865, %v4013, %v4009
        %v4015 = vlaneseq
        %v4016 = vshrl.u32 %v4015, 7
        %v4017 = vsub.s32 %v2867, %v4016
        %v4018 = vrot.slane %v2297, %v4017
        %v4019 = vsel %vm2872, %v4018, %v4014
        %v4020 = vlaneseq
        %v4021 = vshrl.u32 %v4020, 7
        %v4022 = vsub.s32 %v2874, %v4021
        %v4023 = vrot.slane %v2300, %v4022
        %v4024 = vsel %vm2879, %v4023, %v4019
        %v4025 = vlaneseq
        %v4026 = vshrl.u32 %v4025, 7
        %v4027 = vsub.s32 %v2881, %v4026
        %v4028 = vrot.slane %v2303, %v4027
        %v4029 = vsel %vm2886, %v4028, %v4024
        %v4030 = vlaneseq
        %v4031 = vshrl.u32 %v4030, 7
        %v4032 = vsub.s32 %v2888, %v4031
        %v4033 = vrot.slane %v2306, %v4032
        %v4034 = vsel %vm2893, %v4033, %v4029
        %v4035 = vlaneseq
        %v4036 = vshrl.u32 %v4035, 7
        %v4037 = vsub.s32 %v2785, %v4036
        %v4038 = vrot.slane %v2309, %v4037
        %v4039 = vlaneseq
        %v4040 = vshrl.u32 %v4039, 7
        %v4041 = vsub.s32 %v2790, %v4040
        %v4042 = vrot.slane %v2312, %v4041
        %v4043 = vsel %vm2795, %v4042, %v4038
        %v4044 = vlaneseq
        %v4045 = vshrl.u32 %v4044, 7
        %v4046 = vsub.s32 %v2797, %v4045
        %v4047 = vrot.slane %v2315, %v4046
        %v4048 = vsel %vm2802, %v4047, %v4043
        %v4049 = vlaneseq
        %v4050 = vshrl.u32 %v4049, 7
        %v4051 = vsub.s32 %v2804, %v4050
        %v4052 = vrot.slane %v2318, %v4051
        %v4053 = vsel %vm2809, %v4052, %v4048
        %v4054 = vlaneseq
        %v4055 = vshrl.u32 %v4054, 7
        %v4056 = vsub.s32 %v2811, %v4055
        %v4057 = vrot.slane %v2321, %v4056
        %v4058 = vsel %vm2816, %v4057, %v4053
        %v4059 = vlaneseq
        %v4060 = vshrl.u32 %v4059, 7
        %v4061 = vsub.s32 %v2818, %v4060
        %v4062 = vrot.slane %v2324, %v4061
        %v4063 = vsel %vm2823, %v4062, %v4058
        %v4064 = vlaneseq
        %v4065 = vshrl.u32 %v4064, 7
        %v4066 = vsub.s32 %v2825, %v4065
        %v4067 = vrot.slane %v2327, %v4066
        %v4068 = vsel %vm2830, %v4067, %v4063
        %v4069 = vlaneseq
        %v4070 = vshrl.u32 %v4069, 7
        %v4071 = vsub.s32 %v2832, %v4070
        %v4072 = vrot.slane %v2330, %v4071
        %v4073 = vsel %vm2837, %v4072, %v4068
        %v4074 = vlaneseq
        %v4075 = vshrl.u32 %v4074, 7
        %v4076 = vsub.s32 %v2839, %v4075
        %v4077 = vrot.slane %v2333, %v4076
        %v4078 = vsel %vm2844, %v4077, %v4073
        %v4079 = vlaneseq
        %v4080 = vshrl.u32 %v4079, 7
        %v4081 = vsub.s32 %v2846, %v4080
        %v4082 = vrot.slane %v2336, %v4081
        %v4083 = vsel %vm2851, %v4082, %v4078
        %v4084 = vlaneseq
        %v4085 = vshrl.u32 %v4084, 7
        %v4086 = vsub.s32 %v2853, %v4085
        %v4087 = vrot.slane %v2339, %v4086
        %v4088 = vsel %vm2858, %v4087, %v4083
        %v4089 = vlaneseq
        %v4090 = vshrl.u32 %v4089, 7
        %v4091 = vsub.s32 %v2860, %v4090
        %v4092 = vrot.slane %v2342, %v4091
        %v4093 = vsel %vm2865, %v4092, %v4088
        %v4094 = vlaneseq
        %v4095 = vshrl.u32 %v4094, 7
        %v4096 = vsub.s32 %v2867, %v4095
        %v4097 = vrot.slane %v2345, %v4096
        %v4098 = vsel %vm2872, %v4097, %v4093
        %v4099 = vlaneseq
        %v4100 = vshrl.u32 %v4099, 7
        %v4101 = vsub.s32 %v2874, %v4100
        %v4102 = vrot.slane %v2348, %v4101
        %v4103 = vsel %vm2879, %v4102, %v4098
        %v4104 = vlaneseq
        %v4105 = vshrl.u32 %v4104, 7
        %v4106 = vsub.s32 %v2881, %v4105
        %v4107 = vrot.slane %v2351, %v4106
        %v4108 = vsel %vm2886, %v4107, %v4103
        %v4109 = vlaneseq
        %v4110 = vshrl.u32 %v4109, 7
        %v4111 = vsub.s32 %v2888, %v4110
        %v4112 = vrot.slane %v2354, %v4111
        %v4113 = vsel %vm2893, %v4112, %v4108
        %v4114 = vlaneseq
        %v4115 = vshrl.u32 %v4114, 7
        %v4116 = vsub.s32 %v2785, %v4115
        %v4117 = vrot.slane %v2357, %v4116
        %v4118 = vlaneseq
        %v4119 = vshrl.u32 %v4118, 7
        %v4120 = vsub.s32 %v2790, %v4119
        %v4121 = vrot.slane %v2360, %v4120
        %v4122 = vsel %vm2795, %v4121, %v4117
        %v4123 = vlaneseq
        %v4124 = vshrl.u32 %v4123, 7
        %v4125 = vsub.s32 %v2797, %v4124
        %v4126 = vrot.slane %v2363, %v4125
        %v4127 = vsel %vm2802, %v4126, %v4122
        %v4128 = vlaneseq
        %v4129 = vshrl.u32 %v4128, 7
        %v4130 = vsub.s32 %v2804, %v4129
        %v4131 = vrot.slane %v2366, %v4130
        %v4132 = vsel %vm2809, %v4131, %v4127
        %v4133 = vlaneseq
        %v4134 = vshrl.u32 %v4133, 7
        %v4135 = vsub.s32 %v2811, %v4134
        %v4136 = vrot.slane %v2369, %v4135
        %v4137 = vsel %vm2816, %v4136, %v4132
        %v4138 = vlaneseq
        %v4139 = vshrl.u32 %v4138, 7
        %v4140 = vsub.s32 %v2818, %v4139
        %v4141 = vrot.slane %v2372, %v4140
        %v4142 = vsel %vm2823, %v4141, %v4137
        %v4143 = vlaneseq
        %v4144 = vshrl.u32 %v4143, 7
        %v4145 = vsub.s32 %v2825, %v4144
        %v4146 = vrot.slane %v2375, %v4145
        %v4147 = vsel %vm2830, %v4146, %v4142
        %vm4148 = vcmask 1041409
        %v4149 = vsel %vm4148, %v3560, %v2894
        %v4150 = vsel %vm4148, %v3639, %v2973
        %v4151 = vsel %vm4148, %v3718, %v3052
        %v4152 = vsel %vm4148, %v3797, %v3131
        %v4153 = vsel %vm4148, %v3876, %v3210
        %v4154 = vsel %vm4148, %v3955, %v3289
        %v4155 = vsel %vm4148, %v4034, %v3368
        %v4156 = vsel %vm4148, %v4113, %v3447
        %v4157 = vsel %vm4148, %v4147, %v3481
        %vm4166 = vcmask 457728
        %v4167 = vsel %vm4166, %v4157, 0
        %4169 = vmatprep.subr.mxu0 0.0
        %4170 = vmatpush1.msra.mxu0 %v2378
        %4171 = vmatprep.subr.mxu0 0.0
        %4172 = vmatpush1.msra.mxu0 %v2379
        %4173 = vmatprep.subr.mxu0 0.0
        %4174 = vmatpush1.msra.mxu0 %v2380
        %4175 = vmatprep.subr.mxu0 0.0
        %4176 = vmatpush1.msra.mxu0 %v2381
        %4177 = vmatprep.subr.mxu0 0.0
        %4178 = vmatpush1.msra.mxu0 %v2382
        %4179 = vmatprep.subr.mxu0 0.0
        %4180 = vmatpush1.msra.mxu0 %v2383
        %4181 = vmatprep.subr.mxu0 0.0
        %4182 = vmatpush1.msra.mxu0 %v2384
        %4183 = vmatprep.subr.mxu0 0.0
        %4184 = vmatpush1.msra.mxu0 %v2385
        %4185 = vmatprep.subr.mxu0 0.0
        %4186 = vmatpush1.msra.mxu0 %v2386
        %4187 = vmatprep.subr.mxu0 0.0
        %4188 = vmatpush1.msra.mxu0 %v2387
        %4189 = vmatprep.subr.mxu0 0.0
        %4190 = vmatpush1.msra.mxu0 %v2388
        %4191 = vmatprep.subr.mxu0 0.0
        %4192 = vmatpush1.msra.mxu0 %v2389
        %4193 = vmatprep.subr.mxu0 0.0
        %4194 = vmatpush1.msra.mxu0 %v2390
        %4195 = vmatprep.subr.mxu0 0.0
        %4196 = vmatpush1.msra.mxu0 %v2391
        %4197 = vmatprep.subr.mxu0 0.0
        %4198 = vmatpush1.msra.mxu0 %v2392
        %4199 = vmatprep.subr.mxu0 0.0
        %4200 = vmatpush1.msra.mxu0 %v2393
        %4201 = vmatprep.subr.mxu0 0.0
        %4202 = vmatpush1.msra.mxu0 %v2394
        %4203 = vmatprep.subr.mxu0 0.0
        %4204 = vmatpush1.msra.mxu0 %v2395
        %4205 = vmatprep.subr.mxu0 0.0
        %4206 = vmatpush1.msra.mxu0 %v2396
        %4207 = vmatprep.subr.mxu0 0.0
        %4208 = vmatpush1.msra.mxu0 %v2397
        %4209 = vmatprep.subr.mxu0 0.0
        %4210 = vmatpush1.msra.mxu0 %v2398
        %4211 = vmatprep.subr.mxu0 0.0
        %4212 = vmatpush1.msra.mxu0 %v2399
        %4213 = vmatprep.subr.mxu0 0.0
        %4214 = vmatpush1.msra.mxu0 %v2400
        %4215 = vmatprep.subr.mxu0 0.0
        %4216 = vmatpush1.msra.mxu0 %v2401
        %4217 = vmatprep.subr.mxu0 0.0
        %4218 = vmatpush1.msra.mxu0 %v2402
        %4219 = vmatprep.subr.mxu0 0.0
        %4220 = vmatpush1.msra.mxu0 %v2403
        %4221 = vmatprep.subr.mxu0 0.0
        %4222 = vmatpush1.msra.mxu0 %v2404
        %4223 = vmatprep.subr.mxu0 0.0
        %4224 = vmatpush1.msra.mxu0 %v2405
        %4225 = vmatprep.subr.mxu0 0.0
        %4226 = vmatpush1.msra.mxu0 %v2406
        %4227 = vmatprep.subr.mxu0 0.0
        %4228 = vmatpush1.msra.mxu0 %v2407
        %4229 = vmatprep.subr.mxu0 0.0
        %4230 = vmatpush1.msra.mxu0 %v2408
        %4231 = vmatprep.subr.mxu0 0.0
        %4232 = vmatpush1.msra.mxu0 %v2409
        %4233 = vmatprep.mubr.f32.mxu0 %v4150
        %4234 = vmatmul.mubr.f32.gmra.mrb[0].mxu0 %v4149
        %v4235 = vpop.f32.mrb[0].mxu0
        %v4236 = vadd.f32 0.0, %v4235
        %v4237 = vpop.f32.mrb[0].mxu0
        %4238 = vdwg.mxu0
        %4239 = vmatprep.subr.mxu0 0.0
        %4240 = vmatpush1.msra.mxu0 %v2410
        %4241 = vmatprep.subr.mxu0 0.0
        %4242 = vmatpush1.msra.mxu0 %v2411
        %4243 = vmatprep.subr.mxu0 0.0
        %4244 = vmatpush1.msra.mxu0 %v2412
        %4245 = vmatprep.subr.mxu0 0.0
        %4246 = vmatpush1.msra.mxu0 %v2413
        %4247 = vmatprep.subr.mxu0 0.0
        %4248 = vmatpush1.msra.mxu0 %v2414
        %4249 = vmatprep.subr.mxu0 0.0
        %4250 = vmatpush1.msra.mxu0 %v2415
        %4251 = vmatprep.subr.mxu0 0.0
        %4252 = vmatpush1.msra.mxu0 %v2416
        %4253 = vmatprep.subr.mxu0 0.0
        %4254 = vmatpush1.msra.mxu0 %v2417
        %4255 = vmatprep.subr.mxu0 0.0
        %4256 = vmatpush1.msra.mxu0 %v2418
        %4257 = vmatprep.subr.mxu0 0.0
        %4258 = vmatpush1.msra.mxu0 %v2419
        %4259 = vmatprep.subr.mxu0 0.0
        %4260 = vmatpush1.msra.mxu0 %v2420
        %4261 = vmatprep.subr.mxu0 0.0
        %4262 = vmatpush1.msra.mxu0 %v2421
        %4263 = vmatprep.subr.mxu0 0.0
        %4264 = vmatpush1.msra.mxu0 %v2422
        %4265 = vmatprep.subr.mxu0 0.0
        %4266 = vmatpush1.msra.mxu0 %v2423
        %4267 = vmatprep.subr.mxu0 0.0
        %4268 = vmatpush1.msra.mxu0 %v2424
        %4269 = vmatprep.subr.mxu0 0.0
        %4270 = vmatpush1.msra.mxu0 %v2425
        %4271 = vmatprep.subr.mxu0 0.0
        %4272 = vmatpush1.msra.mxu0 %v2426
        %4273 = vmatprep.subr.mxu0 0.0
        %4274 = vmatpush1.msra.mxu0 %v2427
        %4275 = vmatprep.subr.mxu0 0.0
        %4276 = vmatpush1.msra.mxu0 %v2428
        %4277 = vmatprep.subr.mxu0 0.0
        %4278 = vmatpush1.msra.mxu0 %v2429
        %4279 = vmatprep.subr.mxu0 0.0
        %4280 = vmatpush1.msra.mxu0 %v2430
        %4281 = vmatprep.subr.mxu0 0.0
        %4282 = vmatpush1.msra.mxu0 %v2431
        %4283 = vmatprep.subr.mxu0 0.0
        %4284 = vmatpush1.msra.mxu0 %v2432
        %4285 = vmatprep.subr.mxu0 0.0
        %4286 = vmatpush1.msra.mxu0 %v2433
        %4287 = vmatprep.subr.mxu0 0.0
        %4288 = vmatpush1.msra.mxu0 %v2434
        %4289 = vmatprep.subr.mxu0 0.0
        %4290 = vmatpush1.msra.mxu0 %v2435
        %4291 = vmatprep.subr.mxu0 0.0
        %4292 = vmatpush1.msra.mxu0 %v2436
        %4293 = vmatprep.subr.mxu0 0.0
        %4294 = vmatpush1.msra.mxu0 %v2437
        %4295 = vmatprep.subr.mxu0 0.0
        %4296 = vmatpush1.msra.mxu0 %v2438
        %4297 = vmatprep.subr.mxu0 0.0
        %4298 = vmatpush1.msra.mxu0 %v2439
        %4299 = vmatprep.subr.mxu0 0.0
        %4300 = vmatpush1.msra.mxu0 %v2440
        %4301 = vmatprep.subr.mxu0 0.0
        %4302 = vmatpush1.msra.mxu0 %v2441
        %4303 = vmatprep.mubr.f32.mxu0 %v4152
        %4304 = vmatmul.mubr.f32.gmra.mrb[0].mxu0 %v4151
        %v4305 = vpop.f32.mrb[0].mxu0
        %v4306 = vadd.f32 %v4236, %v4305
        %v4307 = vpop.f32.mrb[0].mxu0
        %4308 = vdwg.mxu0
        %4309 = vmatprep.subr.mxu0 0.0
        %4310 = vmatpush1.msra.mxu0 %v2442
        %4311 = vmatprep.subr.mxu0 0.0
        %4312 = vmatpush1.msra.mxu0 %v2443
        %4313 = vmatprep.subr.mxu0 0.0
        %4314 = vmatpush1.msra.mxu0 %v2444
        %4315 = vmatprep.subr.mxu0 0.0
        %4316 = vmatpush1.msra.mxu0 %v2445
        %4317 = vmatprep.subr.mxu0 0.0
        %4318 = vmatpush1.msra.mxu0 %v2446
        %4319 = vmatprep.subr.mxu0 0.0
        %4320 = vmatpush1.msra.mxu0 %v2447
        %4321 = vmatprep.subr.mxu0 0.0
        %4322 = vmatpush1.msra.mxu0 %v2448
        %4323 = vmatprep.subr.mxu0 0.0
        %4324 = vmatpush1.msra.mxu0 %v2449
        %4325 = vmatprep.subr.mxu0 0.0
        %4326 = vmatpush1.msra.mxu0 %v2450
        %4327 = vmatprep.subr.mxu0 0.0
        %4328 = vmatpush1.msra.mxu0 %v2451
        %4329 = vmatprep.subr.mxu0 0.0
        %4330 = vmatpush1.msra.mxu0 %v2452
        %4331 = vmatprep.subr.mxu0 0.0
        %4332 = vmatpush1.msra.mxu0 %v2453
        %4333 = vmatprep.subr.mxu0 0.0
        %4334 = vmatpush1.msra.mxu0 %v2454
        %4335 = vmatprep.subr.mxu0 0.0
        %4336 = vmatpush1.msra.mxu0 %v2455
        %4337 = vmatprep.subr.mxu0 0.0
        %4338 = vmatpush1.msra.mxu0 %v2456
        %4339 = vmatprep.subr.mxu0 0.0
        %4340 = vmatpush1.msra.mxu0 %v2457
        %4341 = vmatprep.subr.mxu0 0.0
        %4342 = vmatpush1.msra.mxu0 %v2458
        %4343 = vmatprep.subr.mxu0 0.0
        %4344 = vmatpush1.msra.mxu0 %v2459
        %4345 = vmatprep.subr.mxu0 0.0
        %4346 = vmatpush1.msra.mxu0 %v2460
        %4347 = vmatprep.subr.mxu0 0.0
        %4348 = vmatpush1.msra.mxu0 %v2461
        %4349 = vmatprep.subr.mxu0 0.0
        %4350 = vmatpush1.msra.mxu0 %v2462
        %4351 = vmatprep.subr.mxu0 0.0
        %4352 = vmatpush1.msra.mxu0 %v2463
        %4353 = vmatprep.subr.mxu0 0.0
        %4354 = vmatpush1.msra.mxu0 %v2464
        %4355 = vmatprep.subr.mxu0 0.0
        %4356 = vmatpush1.msra.mxu0 %v2465
        %4357 = vmatprep.subr.mxu0 0.0
        %4358 = vmatpush1.msra.mxu0 %v2466
        %4359 = vmatprep.subr.mxu0 0.0
        %4360 = vmatpush1.msra.mxu0 %v2467
        %4361 = vmatprep.subr.mxu0 0.0
        %4362 = vmatpush1.msra.mxu0 %v2468
        %4363 = vmatprep.subr.mxu0 0.0
        %4364 = vmatpush1.msra.mxu0 %v2469
        %4365 = vmatprep.subr.mxu0 0.0
        %4366 = vmatpush1.msra.mxu0 %v2470
        %4367 = vmatprep.subr.mxu0 0.0
        %4368 = vmatpush1.msra.mxu0 %v2471
        %4369 = vmatprep.subr.mxu0 0.0
        %4370 = vmatpush1.msra.mxu0 %v2472
        %4371 = vmatprep.subr.mxu0 0.0
        %4372 = vmatpush1.msra.mxu0 %v2473
        %4373 = vmatprep.mubr.f32.mxu0 %v4154
        %4374 = vmatmul.mubr.f32.gmra.mrb[0].mxu0 %v4153
        %v4375 = vpop.f32.mrb[0].mxu0
        %v4376 = vadd.f32 %v4306, %v4375
        %v4377 = vpop.f32.mrb[0].mxu0
        %4378 = vdwg.mxu0
        %4379 = vmatprep.subr.mxu0 0.0
        %4380 = vmatpush1.msra.mxu0 %v2474
        %4381 = vmatprep.subr.mxu0 0.0
        %4382 = vmatpush1.msra.mxu0 %v2475
        %4383 = vmatprep.subr.mxu0 0.0
        %4384 = vmatpush1.msra.mxu0 %v2476
        %4385 = vmatprep.subr.mxu0 0.0
        %4386 = vmatpush1.msra.mxu0 %v2477
        %4387 = vmatprep.subr.mxu0 0.0
        %4388 = vmatpush1.msra.mxu0 %v2478
        %4389 = vmatprep.subr.mxu0 0.0
        %4390 = vmatpush1.msra.mxu0 %v2479
        %4391 = vmatprep.subr.mxu0 0.0
        %4392 = vmatpush1.msra.mxu0 %v2480
        %4393 = vmatprep.subr.mxu0 0.0
        %4394 = vmatpush1.msra.mxu0 %v2481
        %4395 = vmatprep.subr.mxu0 0.0
        %4396 = vmatpush1.msra.mxu0 %v2482
        %4397 = vmatprep.subr.mxu0 0.0
        %4398 = vmatpush1.msra.mxu0 %v2483
        %4399 = vmatprep.subr.mxu0 0.0
        %4400 = vmatpush1.msra.mxu0 %v2484
        %4401 = vmatprep.subr.mxu0 0.0
        %4402 = vmatpush1.msra.mxu0 %v2485
        %4403 = vmatprep.subr.mxu0 0.0
        %4404 = vmatpush1.msra.mxu0 %v2486
        %4405 = vmatprep.subr.mxu0 0.0
        %4406 = vmatpush1.msra.mxu0 %v2487
        %4407 = vmatprep.subr.mxu0 0.0
        %4408 = vmatpush1.msra.mxu0 %v2488
        %4409 = vmatprep.subr.mxu0 0.0
        %4410 = vmatpush1.msra.mxu0 %v2489
        %4411 = vmatprep.subr.mxu0 0.0
        %4412 = vmatpush1.msra.mxu0 %v2490
        %4413 = vmatprep.subr.mxu0 0.0
        %4414 = vmatpush1.msra.mxu0 %v2491
        %4415 = vmatprep.subr.mxu0 0.0
        %4416 = vmatpush1.msra.mxu0 %v2492
        %4417 = vmatprep.subr.mxu0 0.0
        %4418 = vmatpush1.msra.mxu0 %v2493
        %4419 = vmatprep.subr.mxu0 0.0
        %4420 = vmatpush1.msra.mxu0 %v2494
        %4421 = vmatprep.subr.mxu0 0.0
        %4422 = vmatpush1.msra.mxu0 %v2495
        %4423 = vmatprep.subr.mxu0 0.0
        %4424 = vmatpush1.msra.mxu0 %v2496
        %4425 = vmatprep.subr.mxu0 0.0
        %4426 = vmatpush1.msra.mxu0 %v2497
        %4427 = vmatprep.subr.mxu0 0.0
        %4428 = vmatpush1.msra.mxu0 %v2498
        %4429 = vmatprep.subr.mxu0 0.0
        %4430 = vmatpush1.msra.mxu0 %v2499
        %4431 = vmatprep.subr.mxu0 0.0
        %4432 = vmatpush1.msra.mxu0 %v2500
        %4433 = vmatprep.subr.mxu0 0.0
        %4434 = vmatpush1.msra.mxu0 %v2501
        %4435 = vmatprep.subr.mxu0 0.0
        %4436 = vmatpush1.msra.mxu0 %v2502
        %4437 = vmatprep.subr.mxu0 0.0
        %4438 = vmatpush1.msra.mxu0 %v2503
        %4439 = vmatprep.subr.mxu0 0.0
        %4440 = vmatpush1.msra.mxu0 %v2504
        %4441 = vmatprep.subr.mxu0 0.0
        %4442 = vmatpush1.msra.mxu0 %v2505
        %4443 = vmatprep.mubr.f32.mxu0 %v4156
        %4444 = vmatmul.mubr.f32.gmra.mrb[0].mxu0 %v4155
        %v4445 = vpop.f32.mrb[0].mxu0
        %v4446 = vadd.f32 %v4376, %v4445
        %v4447 = vpop.f32.mrb[0].mxu0
        %4448 = vdwg.mxu0
        %4449 = vmatprep.subr.mxu0 0.0
        %4450 = vmatpush1.msra.mxu0 %v2506
        %4451 = vmatprep.subr.mxu0 0.0
        %4452 = vmatpush1.msra.mxu0 %v2507
        %4453 = vmatprep.subr.mxu0 0.0
        %4454 = vmatpush1.msra.mxu0 %v2508
        %4455 = vmatprep.subr.mxu0 0.0
        %4456 = vmatpush1.msra.mxu0 %v2509
        %4457 = vmatprep.subr.mxu0 0.0
        %4458 = vmatpush1.msra.mxu0 %v2510
        %4459 = vmatprep.subr.mxu0 0.0
        %4460 = vmatpush1.msra.mxu0 %v2511
        %4461 = vmatprep.subr.mxu0 0.0
        %4462 = vmatpush1.msra.mxu0 %v2512
        %4463 = vmatprep.subr.mxu0 0.0
        %4464 = vmatpush1.msra.mxu0 0.0
        %4465 = vmatprep.subr.mxu0 0.0
        %4466 = vmatpush1.msra.mxu0 0.0
        %4467 = vmatprep.subr.mxu0 0.0
        %4468 = vmatpush1.msra.mxu0 0.0
        %4469 = vmatprep.subr.mxu0 0.0
        %4470 = vmatpush1.msra.mxu0 0.0
        %4471 = vmatprep.subr.mxu0 0.0
        %4472 = vmatpush1.msra.mxu0 0.0
        %4473 = vmatprep.subr.mxu0 0.0
        %4474 = vmatpush1.msra.mxu0 0.0
        %4475 = vmatprep.subr.mxu0 0.0
        %4476 = vmatpush1.msra.mxu0 0.0
        %4477 = vmatprep.subr.mxu0 0.0
        %4478 = vmatpush1.msra.mxu0 0.0
        %4479 = vmatprep.subr.mxu0 0.0
        %4480 = vmatpush1.msra.mxu0 0.0
        %4481 = vmatprep.subr.mxu0 0.0
        %4482 = vmatpush1.msra.mxu0 0.0
        %4483 = vmatprep.subr.mxu0 0.0
        %4484 = vmatpush1.msra.mxu0 0.0
        %4485 = vmatprep.subr.mxu0 0.0
        %4486 = vmatpush1.msra.mxu0 0.0
        %4487 = vmatprep.subr.mxu0 0.0
        %4488 = vmatpush1.msra.mxu0 0.0
        %4489 = vmatprep.subr.mxu0 0.0
        %4490 = vmatpush1.msra.mxu0 0.0
        %4491 = vmatprep.subr.mxu0 0.0
        %4492 = vmatpush1.msra.mxu0 0.0
        %4493 = vmatprep.subr.mxu0 0.0
        %4494 = vmatpush1.msra.mxu0 0.0
        %4495 = vmatprep.subr.mxu0 0.0
        %4496 = vmatpush1.msra.mxu0 0.0
        %4497 = vmatprep.subr.mxu0 0.0
        %4498 = vmatpush1.msra.mxu0 0.0
        %4499 = vmatprep.subr.mxu0 0.0
        %4500 = vmatpush1.msra.mxu0 0.0
        %4501 = vmatprep.subr.mxu0 0.0
        %4502 = vmatpush1.msra.mxu0 0.0
        %4503 = vmatprep.subr.mxu0 0.0
        %4504 = vmatpush1.msra.mxu0 0.0
        %4505 = vmatprep.subr.mxu0 0.0
        %4506 = vmatpush1.msra.mxu0 0.0
        %4507 = vmatprep.subr.mxu0 0.0
        %4508 = vmatpush1.msra.mxu0 0.0
        %4509 = vmatprep.subr.mxu0 0.0
        %4510 = vmatpush1.msra.mxu0 0.0
        %4511 = vmatprep.subr.mxu0 0.0
        %4512 = vmatpush1.msra.mxu0 0.0
        %4513 = vmatprep.mubr.f32.mxu0 0.0
        %4514 = vmatmul.mubr.f32.gmra.mrb[0].mxu0 %v4167
        %v4515 = vpop.f32.mrb[0].mxu0
        %v4516 = vadd.f32 %v4446, %v4515
        %v4517 = vpop.f32.mrb[0].mxu0
        %4518 = vdwg.mxu0
        %v4519 = vadd.f32 %v2513, %v4516
        %4520 = vst [vmem:[#allocation2] sm:$0x3] %v4519
        %p4521 = scmp.eq.s32.totalorder %s20, 3
        // Predicated region
        $region75: #{tpu_custom_call.1} parent=65 // pred_check
          %p4522 = pneg %p4521
        $region76: #{tpu_custom_call.1} parent=65 // pred_check_branch
          %4524 = sbr.rel (%p4522) target = $region78
        $region77: #{tpu_custom_call.1} parent=65 // pred_region
          %v4525 = vld [vmem:[#allocation2] sm:$0x3]
          %v4526 = vmul.f32 %v4525, 0.0625
          %v4527 = vld [vmem:[%s2] sm:$0x1]
          %v4529 = vlaneseq
          %v4530 = vshrl.u32 %v4529, 7
          %v4531 = vsub.s32 0, %v4530
          %v4532 = vrot.slane %v4527, %v4531
          %v4534 = vadd.f32 %v4526, %v4532
          %4535 = vst [vmem:[#allocation4] sm:$0x3] %v4534
        $region78: #{tpu_custom_call.1} parent=65 // pred_fallthru
          _
        // Predicated region
        $region79: #{tpu_custom_call.1} parent=65 // pred_check
          %p4536 = pneg %p115
        $region80: #{tpu_custom_call.1} parent=65 // pred_check_branch
          %4538 = sbr.rel (%p4536) target = $region82
        $region81: #{tpu_custom_call.1} parent=65 // pred_region
          %s4540 = ssub.s32 32, 32
          %4541 = vsyncadd [#allocation5], %s4540
          %s4542 = smul.addr %s19, 32
          %s4543 = scalar_lea.hbm %s3, %s4542
          %s4545 = sshll.u32 [#allocation4], 4
          %s4546 = int_to_ptr.vmem [resolvable:$true] %s4545
          %4548 = dma.vmem_to_hbm [thread:$0]  %s4546, 32, %s4543, [#allocation5]
        $region82: #{tpu_custom_call.1} parent=65 // pred_fallthru
          _
        // Predicated region
        $region83: #{tpu_custom_call.1} parent=65 // pred_check
          %p4549 = pneg %p115
        $region84: #{tpu_custom_call.1} parent=65 // pred_check_branch
          %4551 = sbr.rel (%p4549) target = $region86
        $region85: #{tpu_custom_call.1} parent=65 // pred_region
          %4552 = dma.done [#allocation5], 32
        $region86: #{tpu_custom_call.1} parent=65 // pred_fallthru
          _
      $region66: #{tpu_custom_call.1} parent=5 // pred_fallthru
        _
      %p4553 = scmp.le.s32.totalorder 2, %s10
      // Predicated region
      $region87: #{tpu_custom_call.1} parent=5 // pred_check
        %p4554 = pneg %p4553
      $region88: #{tpu_custom_call.1} parent=5 // pred_check_branch
        %4556 = sbr.rel (%p4554) target = $region90
      $region89: #{tpu_custom_call.1} parent=5 // pred_region
        %s4557 = ssub.s32 %s10, 2
      $region90: #{tpu_custom_call.1} parent=5 // pred_fallthru
        _
    $region6: #{tpu_custom_call.1} parent=1 // loop_footer
      %s14 = sadd.s32 1, %s10
    $region7: #{tpu_custom_call.1} parent=1 // loop_footer_branch
      %9 = sbr.rel target = $region3
    $region8: #{tpu_custom_call.1} parent=1 // loop_exit
      _
    %4558 = vsyncpa [#allocation5], 1
    %s4559 = scalar_lea.sflag [#allocation5], 1
    %4560 = vsyncpa %s4559, 1

</llo_original>
